<compile_context>
chip_gen: v6e
topology: v6e:2x2x1
jax: 0.10.0
libtpu: 0.0.40
codegen_flags: <defaults>
</compile_context>

<pallas_src>
import jax
import jax.numpy as jnp
from jax import lax
from jax.experimental import pallas as pl
from jax.experimental.pallas import tpu as pltpu

LATENT_DIM = 256
LANDMARKS_DIM = 68 * 2            # 136
BN_EPS = 1e-5


# ---------------------------------------------------------------------------
# Fused forward kernel (one grid step per independent instance)
#   instance 0: rotation(z_s, c_t) -> z_t_hat      ; critic(z_t_hat, c_t)
#   instance 1: rotation(z_t, c_s) -> z_s_restored ; critic(z_s,      c_s)
# ---------------------------------------------------------------------------
def _make_forward_kernel(rot_layers: int, cri_layers: int, batch: int):
    inv_b = 1.0 / float(batch)

    def bn_mlp_layers(h, wl_ref, bl_ref, gamma_ref, beta_ref, num_layers):
        # Linear -> BatchNorm1d (training-mode batch stats, biased var) -> ReLU
        for l in range(num_layers):
            h = jnp.dot(h.astype(jnp.bfloat16), wl_ref[l],
                        preferred_element_type=jnp.float32) + bl_ref[l]
            # one-pass batch statistics: mean and E[x^2]
            s1 = jnp.sum(h, axis=0, keepdims=True)
            s2 = jnp.sum(h * h, axis=0, keepdims=True)
            mean = s1 * inv_b
            var = jnp.maximum(s2 * inv_b - mean * mean, 0.0)
            h = (h - mean) * lax.rsqrt(var + BN_EPS)
            h = gamma_ref[l] * h + beta_ref[l]
            h = jnp.maximum(h, 0.0)
        return h

    def kernel(z_rot_ref, c_ref, z_s_ref,
               r_wpz_ref, r_wpc_ref, r_bp_ref, r_wl_ref, r_bl_ref, r_g_ref, r_be_ref,
               c_wpz_ref, c_wpc_ref, c_bp_ref, c_wl_ref, c_bl_ref, c_g_ref, c_be_ref,
               wo_ref, bo_ref,
               out_rot_ref, out_crit_ref):
        g = pl.program_id(0)

        z_bf = z_rot_ref[...].astype(jnp.bfloat16)   # [B, 256]
        c_bf = c_ref[...].astype(jnp.bfloat16)       # [B, 136]

        # ---- LatentCodeRotation: split projection (no concat), no ReLU after it
        h = (jnp.dot(z_bf, r_wpz_ref[...], preferred_element_type=jnp.float32)
             + jnp.dot(c_bf, r_wpc_ref[...], preferred_element_type=jnp.float32)
             + r_bp_ref[...])
        h = bn_mlp_layers(h, r_wl_ref, r_bl_ref, r_g_ref, r_be_ref, rot_layers)
        out_rot_ref[...] = h.astype(out_rot_ref.dtype)

        # ---- Critic input: instance 0 uses the rotation output (kept in VMEM),
        #      instance 1 uses z_s.  Exact 0/1 float blend (no select lowering risk).
        use_rot = jnp.where(g == 0, jnp.float32(1.0), jnp.float32(0.0))
        z_c = use_rot * h + (jnp.float32(1.0) - use_rot) * z_s_ref[...]

        hc = (jnp.dot(z_c.astype(jnp.bfloat16), c_wpz_ref[...],
                      preferred_element_type=jnp.float32)
              + jnp.dot(c_bf, c_wpc_ref[...], preferred_element_type=jnp.float32)
              + c_bp_ref[...])
        hc = jnp.maximum(hc, 0.0)                    # critic projection has ReLU
        hc = bn_mlp_layers(hc, c_wl_ref, c_bl_ref, c_g_ref, c_be_ref, cri_layers)

        # ---- final D->1 layer: VPU multiply + lane reduction (no 1-col MXU push)
        crit = jnp.sum(hc * wo_ref[...].astype(jnp.float32),
                       axis=-1, keepdims=True) + bo_ref[...]     # [B, 1]
        # lane-dense store (B, 128); wrapper slices lane 0
        out_crit_ref[...] = jnp.broadcast_to(crit, out_crit_ref.shape)

    return kernel


def _instance_spec(a):
    """Per-instance block: leading grid axis selects the instance."""
    trail = (0,) * (a.ndim - 1)
    return pl.BlockSpec((None,) + a.shape[1:], lambda g, _t=trail: (g,) + _t)


def _resident_spec(a):
    """Whole array resident in VMEM; constant block index -> DMA'd once."""
    zeros = (0,) * a.ndim
    return pl.BlockSpec(a.shape, lambda g, _z=zeros: _z)


def _forward_pallas(rot_p, cri_p, z_s, z_t, c_t, c_s, *, rot_layers, cri_layers):
    B, D = z_s.shape
    cf_t = c_t.reshape(B, -1)
    cf_s = c_s.reshape(B, -1)

    # Stack the two independent instances along the grid axis.
    z_rot = jnp.stack([z_s, z_t], axis=0)        # [2, B, 256]
    c_stk = jnp.stack([cf_t, cf_s], axis=0)      # [2, B, 136]

    args = (z_rot, c_stk, z_s,
            rot_p["wp_z"], rot_p["wp_c"], rot_p["b_proj"],
            rot_p["w_l"], rot_p["b_l"], rot_p["gamma"], rot_p["beta"],
            cri_p["wp_z"], cri_p["wp_c"], cri_p["b_proj"],
            cri_p["w_l"], cri_p["b_l"], cri_p["gamma"], cri_p["beta"],
            cri_p["w_out"], cri_p["b_out"])

    in_specs = ([_instance_spec(z_rot), _instance_spec(c_stk)]
                + [_resident_spec(a) for a in args[2:]])

    out_shape = (jax.ShapeDtypeStruct((2, B, D), jnp.float32),
                 jax.ShapeDtypeStruct((2, B, 128), jnp.float32))
    out_specs = (pl.BlockSpec((None, B, D), lambda g: (g, 0, 0)),
                 pl.BlockSpec((None, B, 128), lambda g: (g, 0, 0)))

    out_rot, out_crit = pl.pallas_call(
        _make_forward_kernel(rot_layers, cri_layers, B),
        grid=(2,),
        out_shape=out_shape,
        in_specs=in_specs,
        out_specs=out_specs,
        compiler_params=pltpu.CompilerParams(
            dimension_semantics=("parallel",)),   # 2 instances -> 2 TCs on v7x
    )(*args)

    return {
        "z_t_hat": out_rot[0],
        "z_s_restored": out_rot[1],
        "critic_outputs_t": out_crit[0, :, 0:1],
        "critic_outputs_s": out_crit[1, :, 0:1],
    }


_forward_jit = jax.jit(_forward_pallas, static_argnames=("rot_layers", "cri_layers"))


# ---------------------------------------------------------------------------
# Parameter construction (PyTorch-Linear-style uniform init)
#   weight matrices stored bf16 (MXU operands), biases / BN affine in f32
# ---------------------------------------------------------------------------
def _linear_init(key, fan_in, fan_out):
    kw, kb = jax.random.split(key)
    bound = 1.0 / float(fan_in) ** 0.5
    w = jax.random.uniform(kw, (fan_in, fan_out), jnp.float32, -bound, bound)
    b = jax.random.uniform(kb, (1, fan_out), jnp.float32, -bound, bound)
    return w, b


def init_mlp_params(key, latent_dim, landmarks_dim, num_layers, with_output):
    proj_dim = latent_dim + landmarks_dim
    keys = jax.random.split(key, num_layers + 2)
    w_proj, b_proj = _linear_init(keys[0], proj_dim, latent_dim)
    w_ls, b_ls = [], []
    for l in range(num_layers):
        w, b = _linear_init(keys[1 + l], latent_dim, latent_dim)
        w_ls.append(w)
        b_ls.append(b)
    params = {
        "wp_z": w_proj[:latent_dim].astype(jnp.bfloat16),      # (256, 256)
        "wp_c": w_proj[latent_dim:].astype(jnp.bfloat16),      # (136, 256)
        "b_proj": b_proj,                                      # (1, 256) f32
        "w_l": jnp.stack(w_ls, axis=0).astype(jnp.bfloat16),   # (L, 256, 256)
        "b_l": jnp.stack(b_ls, axis=0),                        # (L, 1, 256) f32
        "gamma": jnp.ones((num_layers, 1, latent_dim), jnp.float32),
        "beta": jnp.zeros((num_layers, 1, latent_dim), jnp.float32),
    }
    if with_output:
        w_out, b_out = _linear_init(keys[-1], latent_dim, 1)
        params["w_out"] = w_out.T.astype(jnp.bfloat16)          # (1, 256)
        params["b_out"] = b_out                                 # (1, 1) f32
    return params


# ---------------------------------------------------------------------------
# Module wrapper
# ---------------------------------------------------------------------------
class FaceRotationModelPallas:
    """Pallas implementation of FaceRotationModel's own compute
    (LatentCodeRotation + Critic), fused into a single kernel per forward()."""

    def __init__(self, key, latent_dim=LATENT_DIM, landmarks_dim=LANDMARKS_DIM,
                 rotation_num_layers=3, critic_num_layers=2):
        k_rot, k_cri = jax.random.split(key)
        self.latent_dim = latent_dim
        self.landmarks_dim = landmarks_dim
        self.rotation_num_layers = rotation_num_layers
        self.critic_num_layers = critic_num_layers
        self.rotation_params = init_mlp_params(
            k_rot, latent_dim, landmarks_dim, rotation_num_layers, with_output=False)
        self.critic_params = init_mlp_params(
            k_cri, latent_dim, landmarks_dim, critic_num_layers, with_output=True)

    def forward(self, z_s, z_t, c_t, c_s):
        # TODO(synk): z_s / z_t / c_s are produced by the ALAE encoder + face
        # alignment in the original forward(); here they are inputs.
        assert z_s.ndim == 2 and z_t.ndim == 2 and c_t.ndim == 3 and c_s.ndim == 3
        out = _forward_jit(self.rotation_params, self.critic_params,
                           z_s, z_t, c_t, c_s,
                           rot_layers=self.rotation_num_layers,
                           cri_layers=self.critic_num_layers)
        out["z_t"] = z_t
        out["z_s"] = z_s
        return out


# ---------------------------------------------------------------------------
# Pure-JAX reference (same bf16-weight math, canonical two-pass BN)
# ---------------------------------------------------------------------------
def _ref_mlp(z, c, p, num_layers, proj_relu, with_output):
    def mm(x, w):
        return jnp.dot(x.astype(jnp.bfloat16), w, preferred_element_type=jnp.float32)

    h = mm(z, p["wp_z"]) + mm(c, p["wp_c"]) + p["b_proj"]
    if proj_relu:
        h = jnp.maximum(h, 0.0)
    for l in range(num_layers):
        h = mm(h, p["w_l"][l]) + p["b_l"][l]
        mean = jnp.mean(h, axis=0, keepdims=True)
        var = jnp.mean((h - mean) ** 2, axis=0, keepdims=True)
        h = (h - mean) / jnp.sqrt(var + BN_EPS)
        h = p["gamma"][l] * h + p["beta"][l]
        h = jnp.maximum(h, 0.0)
    if with_output:
        h = jnp.sum(h * p["w_out"].astype(jnp.float32),
                    axis=-1, keepdims=True) + p["b_out"]
    return h


def _ref_forward(rot_p, cri_p, z_s, z_t, c_t, c_s, rot_layers, cri_layers):
    B = z_s.shape[0]
    cf_t = c_t.reshape(B, -1)
    cf_s = c_s.reshape(B, -1)
    z_t_hat = _ref_mlp(z_s, cf_t, rot_p, rot_layers, False, False)
    z_s_restored = _ref_mlp(z_t, cf_s, rot_p, rot_layers, False, False)
    crit_t = _ref_mlp(z_t_hat, cf_t, cri_p, cri_layers, True, True)
    crit_s = _ref_mlp(z_s, cf_s, cri_p, cri_layers, True, True)
    return {"z_t_hat": z_t_hat, "z_s_restored": z_s_restored,
            "critic_outputs_t": crit_t, "critic_outputs_s": crit_s}


if __name__ == "__main__":
    key = jax.random.PRNGKey(0)
    k_model, k_zs, k_zt, k_ct, k_cs = jax.random.split(key, 5)

    B = 8
    model = FaceRotationModelPallas(k_model)

    z_s = jax.random.normal(k_zs, (B, LATENT_DIM), jnp.float32)
    z_t = jax.random.normal(k_zt, (B, LATENT_DIM), jnp.float32)
    c_t = jax.random.normal(k_ct, (B, 68, 2), jnp.float32)
    c_s = jax.random.normal(k_cs, (B, 68, 2), jnp.float32)

    out = model.forward(z_s, z_t, c_t, c_s)
    jax.block_until_ready(out)

    # shape checks
    assert out["z_t_hat"].shape == (B, LATENT_DIM)
    assert out["z_s_restored"].shape == (B, LATENT_DIM)
    assert out["critic_outputs_t"].shape == (B, 1)
    assert out["critic_outputs_s"].shape == (B, 1)

    # numerical sanity check against pure-JAX reference (same bf16 weights;
    # tolerance loosened for bf16 matmuls + small-batch BN amplification)
    ref = _ref_forward(model.rotation_params, model.critic_params,
                       z_s, z_t, c_t, c_s,
                       model.rotation_num_layers, model.critic_num_layers)
    for name in ("z_t_hat", "z_s_restored", "critic_outputs_t", "critic_outputs_s"):
        assert jnp.allclose(out[name], ref[name], atol=1e-2, rtol=1e-2), name

    print("KERNEL_OK")
</pallas_src>

<mosaic_0001>
module attributes {stable_mosaic.version = 11 : i64} {
  func.func @kernel(%arg0: i32, %arg1: memref<1x8x256xf32, #tpu.memory_space<vmem>>, %arg2: memref<1x8x136xf32, #tpu.memory_space<vmem>>, %arg3: memref<8x256xf32, #tpu.memory_space<vmem>>, %arg4: memref<256x256xbf16, #tpu.memory_space<vmem>>, %arg5: memref<136x256xbf16, #tpu.memory_space<vmem>>, %arg6: memref<1x256xf32, #tpu.memory_space<vmem>>, %arg7: memref<3x256x256xbf16, #tpu.memory_space<vmem>>, %arg8: memref<3x1x256xf32, #tpu.memory_space<vmem>>, %arg9: memref<3x1x256xf32, #tpu.memory_space<vmem>>, %arg10: memref<3x1x256xf32, #tpu.memory_space<vmem>>, %arg11: memref<256x256xbf16, #tpu.memory_space<vmem>>, %arg12: memref<136x256xbf16, #tpu.memory_space<vmem>>, %arg13: memref<1x256xf32, #tpu.memory_space<vmem>>, %arg14: memref<2x256x256xbf16, #tpu.memory_space<vmem>>, %arg15: memref<2x1x256xf32, #tpu.memory_space<vmem>>, %arg16: memref<2x1x256xf32, #tpu.memory_space<vmem>>, %arg17: memref<2x1x256xf32, #tpu.memory_space<vmem>>, %arg18: memref<1x256xbf16, #tpu.memory_space<vmem>>, %arg19: memref<1x1xf32, #tpu.memory_space<vmem>>, %arg20: memref<1x8x256xf32, #tpu.memory_space<vmem>>, %arg21: memref<1x8x128xf32, #tpu.memory_space<vmem>>) attributes {dimension_semantics = [#tpu.dimension_semantics<parallel>], iteration_bounds = array<i64: 2>, scalar_prefetch = 0 : i64, scratch_operands = 0 : i64, tpu.core_type = #tpu.core_type<tc>, window_params = [{transform_indices = @transform_0, window_bounds = array<i64: 1, 8, 256>}, {transform_indices = @transform_1, window_bounds = array<i64: 1, 8, 136>}, {pipeline_mode = #tpu.pipeline_mode<synchronous>, transform_indices = @transform_2, window_bounds = array<i64: 8, 256>}, {pipeline_mode = #tpu.pipeline_mode<synchronous>, transform_indices = @transform_3, window_bounds = array<i64: 256, 256>}, {pipeline_mode = #tpu.pipeline_mode<synchronous>, transform_indices = @transform_4, window_bounds = array<i64: 136, 256>}, {pipeline_mode = #tpu.pipeline_mode<synchronous>, transform_indices = @transform_5, window_bounds = array<i64: 1, 256>}, {pipeline_mode = #tpu.pipeline_mode<synchronous>, transform_indices = @transform_6, window_bounds = array<i64: 3, 256, 256>}, {pipeline_mode = #tpu.pipeline_mode<synchronous>, transform_indices = @transform_7, window_bounds = array<i64: 3, 1, 256>}, {pipeline_mode = #tpu.pipeline_mode<synchronous>, transform_indices = @transform_8, window_bounds = array<i64: 3, 1, 256>}, {pipeline_mode = #tpu.pipeline_mode<synchronous>, transform_indices = @transform_9, window_bounds = array<i64: 3, 1, 256>}, {pipeline_mode = #tpu.pipeline_mode<synchronous>, transform_indices = @transform_10, window_bounds = array<i64: 256, 256>}, {pipeline_mode = #tpu.pipeline_mode<synchronous>, transform_indices = @transform_11, window_bounds = array<i64: 136, 256>}, {pipeline_mode = #tpu.pipeline_mode<synchronous>, transform_indices = @transform_12, window_bounds = array<i64: 1, 256>}, {pipeline_mode = #tpu.pipeline_mode<synchronous>, transform_indices = @transform_13, window_bounds = array<i64: 2, 256, 256>}, {pipeline_mode = #tpu.pipeline_mode<synchronous>, transform_indices = @transform_14, window_bounds = array<i64: 2, 1, 256>}, {pipeline_mode = #tpu.pipeline_mode<synchronous>, transform_indices = @transform_15, window_bounds = array<i64: 2, 1, 256>}, {pipeline_mode = #tpu.pipeline_mode<synchronous>, transform_indices = @transform_16, window_bounds = array<i64: 2, 1, 256>}, {pipeline_mode = #tpu.pipeline_mode<synchronous>, transform_indices = @transform_17, window_bounds = array<i64: 1, 256>}, {pipeline_mode = #tpu.pipeline_mode<synchronous>, transform_indices = @transform_18, window_bounds = array<i64: 1, 1>}, {transform_indices = @transform_19, window_bounds = array<i64: 1, 8, 256>}, {transform_indices = @transform_20, window_bounds = array<i64: 1, 8, 128>}]} {
    %c0 = arith.constant 0 : index
    %c0_0 = arith.constant 0 : index
    %c0_1 = arith.constant 0 : index
    %0 = vector.load %arg1[%c0, %c0_0, %c0_1] : memref<1x8x256xf32, #tpu.memory_space<vmem>>, vector<1x8x256xf32>
    %1 = vector.shape_cast %0 : vector<1x8x256xf32> to vector<8x256xf32>
    %2 = arith.truncf %1 : vector<8x256xf32> to vector<8x256xbf16>
    %c0_2 = arith.constant 0 : index
    %c0_3 = arith.constant 0 : index
    %c0_4 = arith.constant 0 : index
    %3 = vector.load %arg2[%c0_2, %c0_3, %c0_4] : memref<1x8x136xf32, #tpu.memory_space<vmem>>, vector<1x8x136xf32>
    %4 = vector.shape_cast %3 : vector<1x8x136xf32> to vector<8x136xf32>
    %5 = arith.truncf %4 : vector<8x136xf32> to vector<8x136xbf16>
    %c0_5 = arith.constant 0 : index
    %c0_6 = arith.constant 0 : index
    %6 = vector.load %arg4[%c0_5, %c0_6] : memref<256x256xbf16, #tpu.memory_space<vmem>>, vector<256x256xbf16>
    %cst = arith.constant dense<0.000000e+00> : vector<8x256xf32>
    %7 = tpu.matmul %2, %6, %cst {dimension_numbers = #tpu.dot_dimension_numbers<[1], [0], [0], [1], [0, 0, 1, 1], [], []>} : vector<8x256xbf16>, vector<256x256xbf16>, vector<8x256xf32> -> vector<8x256xf32>
    %c0_7 = arith.constant 0 : index
    %c0_8 = arith.constant 0 : index
    %8 = vector.load %arg5[%c0_7, %c0_8] : memref<136x256xbf16, #tpu.memory_space<vmem>>, vector<136x256xbf16>
    %cst_9 = arith.constant dense<0.000000e+00> : vector<8x256xf32>
    %9 = tpu.matmul %5, %8, %cst_9 {dimension_numbers = #tpu.dot_dimension_numbers<[1], [0], [0], [1], [0, 0, 1, 1], [], []>} : vector<8x136xbf16>, vector<136x256xbf16>, vector<8x256xf32> -> vector<8x256xf32>
    %10 = arith.addf %7, %9 : vector<8x256xf32>
    %c0_10 = arith.constant 0 : index
    %c0_11 = arith.constant 0 : index
    %11 = vector.load %arg6[%c0_10, %c0_11] : memref<1x256xf32, #tpu.memory_space<vmem>>, vector<1x256xf32>
    %12 = vector.broadcast %11 : vector<1x256xf32> to vector<8x256xf32>
    %13 = arith.addf %10, %12 : vector<8x256xf32>
    %14 = arith.truncf %13 : vector<8x256xf32> to vector<8x256xbf16>
    %c0_12 = arith.constant 0 : index
    %c0_13 = arith.constant 0 : index
    %c0_14 = arith.constant 0 : index
    %15 = vector.load %arg7[%c0_12, %c0_13, %c0_14] : memref<3x256x256xbf16, #tpu.memory_space<vmem>>, vector<1x256x256xbf16>
    %16 = vector.shape_cast %15 : vector<1x256x256xbf16> to vector<256x256xbf16>
    %cst_15 = arith.constant dense<0.000000e+00> : vector<8x256xf32>
    %17 = tpu.matmul %14, %16, %cst_15 {dimension_numbers = #tpu.dot_dimension_numbers<[1], [0], [0], [1], [0, 0, 1, 1], [], []>} : vector<8x256xbf16>, vector<256x256xbf16>, vector<8x256xf32> -> vector<8x256xf32>
    %c0_16 = arith.constant 0 : index
    %c0_17 = arith.constant 0 : index
    %c0_18 = arith.constant 0 : index
    %18 = vector.load %arg8[%c0_16, %c0_17, %c0_18] : memref<3x1x256xf32, #tpu.memory_space<vmem>>, vector<1x1x256xf32>
    %19 = vector.shape_cast %18 : vector<1x1x256xf32> to vector<1x256xf32>
    %20 = vector.broadcast %19 : vector<1x256xf32> to vector<8x256xf32>
    %21 = arith.addf %17, %20 : vector<8x256xf32>
    %cst_19 = arith.constant dense<0.000000e+00> : vector<256xf32>
    %22 = vector.multi_reduction <add>, %21, %cst_19 [0] : vector<8x256xf32> to vector<256xf32>
    %23 = vector.shape_cast %22 : vector<256xf32> to vector<1x256xf32>
    %24 = arith.mulf %21, %21 : vector<8x256xf32>
    %cst_20 = arith.constant dense<0.000000e+00> : vector<256xf32>
    %25 = vector.multi_reduction <add>, %24, %cst_20 [0] : vector<8x256xf32> to vector<256xf32>
    %26 = vector.shape_cast %25 : vector<256xf32> to vector<1x256xf32>
    %cst_21 = arith.constant 1.250000e-01 : f32
    %27 = vector.broadcast %cst_21 : f32 to vector<1x256xf32>
    %28 = arith.mulf %23, %27 : vector<1x256xf32>
    %cst_22 = arith.constant 1.250000e-01 : f32
    %29 = vector.broadcast %cst_22 : f32 to vector<1x256xf32>
    %30 = arith.mulf %26, %29 : vector<1x256xf32>
    %31 = arith.mulf %28, %28 : vector<1x256xf32>
    %32 = arith.subf %30, %31 : vector<1x256xf32>
    %cst_23 = arith.constant 0.000000e+00 : f32
    %33 = vector.broadcast %cst_23 : f32 to vector<1x256xf32>
    %34 = arith.maximumf %32, %33 : vector<1x256xf32>
    %35 = vector.broadcast %28 : vector<1x256xf32> to vector<8x256xf32>
    %36 = arith.subf %21, %35 : vector<8x256xf32>
    %cst_24 = arith.constant 9.99999974E-6 : f32
    %37 = vector.broadcast %cst_24 : f32 to vector<1x256xf32>
    %38 = arith.addf %34, %37 : vector<1x256xf32>
    %39 = math.rsqrt %38 : vector<1x256xf32>
    %40 = vector.broadcast %39 : vector<1x256xf32> to vector<8x256xf32>
    %41 = arith.mulf %36, %40 : vector<8x256xf32>
    %c0_25 = arith.constant 0 : index
    %c0_26 = arith.constant 0 : index
    %c0_27 = arith.constant 0 : index
    %42 = vector.load %arg9[%c0_25, %c0_26, %c0_27] : memref<3x1x256xf32, #tpu.memory_space<vmem>>, vector<1x1x256xf32>
    %43 = vector.shape_cast %42 : vector<1x1x256xf32> to vector<1x256xf32>
    %44 = vector.broadcast %43 : vector<1x256xf32> to vector<8x256xf32>
    %45 = arith.mulf %44, %41 : vector<8x256xf32>
    %c0_28 = arith.constant 0 : index
    %c0_29 = arith.constant 0 : index
    %c0_30 = arith.constant 0 : index
    %46 = vector.load %arg10[%c0_28, %c0_29, %c0_30] : memref<3x1x256xf32, #tpu.memory_space<vmem>>, vector<1x1x256xf32>
    %47 = vector.shape_cast %46 : vector<1x1x256xf32> to vector<1x256xf32>
    %48 = vector.broadcast %47 : vector<1x256xf32> to vector<8x256xf32>
    %49 = arith.addf %45, %48 : vector<8x256xf32>
    %cst_31 = arith.constant 0.000000e+00 : f32
    %50 = vector.broadcast %cst_31 : f32 to vector<8x256xf32>
    %51 = arith.maximumf %49, %50 : vector<8x256xf32>
    %52 = arith.truncf %51 : vector<8x256xf32> to vector<8x256xbf16>
    %c1 = arith.constant 1 : index
    %c0_32 = arith.constant 0 : index
    %c0_33 = arith.constant 0 : index
    %53 = vector.load %arg7[%c1, %c0_32, %c0_33] : memref<3x256x256xbf16, #tpu.memory_space<vmem>>, vector<1x256x256xbf16>
    %54 = vector.shape_cast %53 : vector<1x256x256xbf16> to vector<256x256xbf16>
    %cst_34 = arith.constant dense<0.000000e+00> : vector<8x256xf32>
    %55 = tpu.matmul %52, %54, %cst_34 {dimension_numbers = #tpu.dot_dimension_numbers<[1], [0], [0], [1], [0, 0, 1, 1], [], []>} : vector<8x256xbf16>, vector<256x256xbf16>, vector<8x256xf32> -> vector<8x256xf32>
    %c1_35 = arith.constant 1 : index
    %c0_36 = arith.constant 0 : index
    %c0_37 = arith.constant 0 : index
    %56 = vector.load %arg8[%c1_35, %c0_36, %c0_37] : memref<3x1x256xf32, #tpu.memory_space<vmem>>, vector<1x1x256xf32>
    %57 = vector.shape_cast %56 : vector<1x1x256xf32> to vector<1x256xf32>
    %58 = vector.broadcast %57 : vector<1x256xf32> to vector<8x256xf32>
    %59 = arith.addf %55, %58 : vector<8x256xf32>
    %cst_38 = arith.constant dense<0.000000e+00> : vector<256xf32>
    %60 = vector.multi_reduction <add>, %59, %cst_38 [0] : vector<8x256xf32> to vector<256xf32>
    %61 = vector.shape_cast %60 : vector<256xf32> to vector<1x256xf32>
    %62 = arith.mulf %59, %59 : vector<8x256xf32>
    %cst_39 = arith.constant dense<0.000000e+00> : vector<256xf32>
    %63 = vector.multi_reduction <add>, %62, %cst_39 [0] : vector<8x256xf32> to vector<256xf32>
    %64 = vector.shape_cast %63 : vector<256xf32> to vector<1x256xf32>
    %cst_40 = arith.constant 1.250000e-01 : f32
    %65 = vector.broadcast %cst_40 : f32 to vector<1x256xf32>
    %66 = arith.mulf %61, %65 : vector<1x256xf32>
    %cst_41 = arith.constant 1.250000e-01 : f32
    %67 = vector.broadcast %cst_41 : f32 to vector<1x256xf32>
    %68 = arith.mulf %64, %67 : vector<1x256xf32>
    %69 = arith.mulf %66, %66 : vector<1x256xf32>
    %70 = arith.subf %68, %69 : vector<1x256xf32>
    %cst_42 = arith.constant 0.000000e+00 : f32
    %71 = vector.broadcast %cst_42 : f32 to vector<1x256xf32>
    %72 = arith.maximumf %70, %71 : vector<1x256xf32>
    %73 = vector.broadcast %66 : vector<1x256xf32> to vector<8x256xf32>
    %74 = arith.subf %59, %73 : vector<8x256xf32>
    %cst_43 = arith.constant 9.99999974E-6 : f32
    %75 = vector.broadcast %cst_43 : f32 to vector<1x256xf32>
    %76 = arith.addf %72, %75 : vector<1x256xf32>
    %77 = math.rsqrt %76 : vector<1x256xf32>
    %78 = vector.broadcast %77 : vector<1x256xf32> to vector<8x256xf32>
    %79 = arith.mulf %74, %78 : vector<8x256xf32>
    %c1_44 = arith.constant 1 : index
    %c0_45 = arith.constant 0 : index
    %c0_46 = arith.constant 0 : index
    %80 = vector.load %arg9[%c1_44, %c0_45, %c0_46] : memref<3x1x256xf32, #tpu.memory_space<vmem>>, vector<1x1x256xf32>
    %81 = vector.shape_cast %80 : vector<1x1x256xf32> to vector<1x256xf32>
    %82 = vector.broadcast %81 : vector<1x256xf32> to vector<8x256xf32>
    %83 = arith.mulf %82, %79 : vector<8x256xf32>
    %c1_47 = arith.constant 1 : index
    %c0_48 = arith.constant 0 : index
    %c0_49 = arith.constant 0 : index
    %84 = vector.load %arg10[%c1_47, %c0_48, %c0_49] : memref<3x1x256xf32, #tpu.memory_space<vmem>>, vector<1x1x256xf32>
    %85 = vector.shape_cast %84 : vector<1x1x256xf32> to vector<1x256xf32>
    %86 = vector.broadcast %85 : vector<1x256xf32> to vector<8x256xf32>
    %87 = arith.addf %83, %86 : vector<8x256xf32>
    %cst_50 = arith.constant 0.000000e+00 : f32
    %88 = vector.broadcast %cst_50 : f32 to vector<8x256xf32>
    %89 = arith.maximumf %87, %88 : vector<8x256xf32>
    %90 = arith.truncf %89 : vector<8x256xf32> to vector<8x256xbf16>
    %c2 = arith.constant 2 : index
    %c0_51 = arith.constant 0 : index
    %c0_52 = arith.constant 0 : index
    %91 = vector.load %arg7[%c2, %c0_51, %c0_52] : memref<3x256x256xbf16, #tpu.memory_space<vmem>>, vector<1x256x256xbf16>
    %92 = vector.shape_cast %91 : vector<1x256x256xbf16> to vector<256x256xbf16>
    %cst_53 = arith.constant dense<0.000000e+00> : vector<8x256xf32>
    %93 = tpu.matmul %90, %92, %cst_53 {dimension_numbers = #tpu.dot_dimension_numbers<[1], [0], [0], [1], [0, 0, 1, 1], [], []>} : vector<8x256xbf16>, vector<256x256xbf16>, vector<8x256xf32> -> vector<8x256xf32>
    %c2_54 = arith.constant 2 : index
    %c0_55 = arith.constant 0 : index
    %c0_56 = arith.constant 0 : index
    %94 = vector.load %arg8[%c2_54, %c0_55, %c0_56] : memref<3x1x256xf32, #tpu.memory_space<vmem>>, vector<1x1x256xf32>
    %95 = vector.shape_cast %94 : vector<1x1x256xf32> to vector<1x256xf32>
    %96 = vector.broadcast %95 : vector<1x256xf32> to vector<8x256xf32>
    %97 = arith.addf %93, %96 : vector<8x256xf32>
    %cst_57 = arith.constant dense<0.000000e+00> : vector<256xf32>
    %98 = vector.multi_reduction <add>, %97, %cst_57 [0] : vector<8x256xf32> to vector<256xf32>
    %99 = vector.shape_cast %98 : vector<256xf32> to vector<1x256xf32>
    %100 = arith.mulf %97, %97 : vector<8x256xf32>
    %cst_58 = arith.constant dense<0.000000e+00> : vector<256xf32>
    %101 = vector.multi_reduction <add>, %100, %cst_58 [0] : vector<8x256xf32> to vector<256xf32>
    %102 = vector.shape_cast %101 : vector<256xf32> to vector<1x256xf32>
    %cst_59 = arith.constant 1.250000e-01 : f32
    %103 = vector.broadcast %cst_59 : f32 to vector<1x256xf32>
    %104 = arith.mulf %99, %103 : vector<1x256xf32>
    %cst_60 = arith.constant 1.250000e-01 : f32
    %105 = vector.broadcast %cst_60 : f32 to vector<1x256xf32>
    %106 = arith.mulf %102, %105 : vector<1x256xf32>
    %107 = arith.mulf %104, %104 : vector<1x256xf32>
    %108 = arith.subf %106, %107 : vector<1x256xf32>
    %cst_61 = arith.constant 0.000000e+00 : f32
    %109 = vector.broadcast %cst_61 : f32 to vector<1x256xf32>
    %110 = arith.maximumf %108, %109 : vector<1x256xf32>
    %111 = vector.broadcast %104 : vector<1x256xf32> to vector<8x256xf32>
    %112 = arith.subf %97, %111 : vector<8x256xf32>
    %cst_62 = arith.constant 9.99999974E-6 : f32
    %113 = vector.broadcast %cst_62 : f32 to vector<1x256xf32>
    %114 = arith.addf %110, %113 : vector<1x256xf32>
    %115 = math.rsqrt %114 : vector<1x256xf32>
    %116 = vector.broadcast %115 : vector<1x256xf32> to vector<8x256xf32>
    %117 = arith.mulf %112, %116 : vector<8x256xf32>
    %c2_63 = arith.constant 2 : index
    %c0_64 = arith.constant 0 : index
    %c0_65 = arith.constant 0 : index
    %118 = vector.load %arg9[%c2_63, %c0_64, %c0_65] : memref<3x1x256xf32, #tpu.memory_space<vmem>>, vector<1x1x256xf32>
    %119 = vector.shape_cast %118 : vector<1x1x256xf32> to vector<1x256xf32>
    %120 = vector.broadcast %119 : vector<1x256xf32> to vector<8x256xf32>
    %121 = arith.mulf %120, %117 : vector<8x256xf32>
    %c2_66 = arith.constant 2 : index
    %c0_67 = arith.constant 0 : index
    %c0_68 = arith.constant 0 : index
    %122 = vector.load %arg10[%c2_66, %c0_67, %c0_68] : memref<3x1x256xf32, #tpu.memory_space<vmem>>, vector<1x1x256xf32>
    %123 = vector.shape_cast %122 : vector<1x1x256xf32> to vector<1x256xf32>
    %124 = vector.broadcast %123 : vector<1x256xf32> to vector<8x256xf32>
    %125 = arith.addf %121, %124 : vector<8x256xf32>
    %cst_69 = arith.constant 0.000000e+00 : f32
    %126 = vector.broadcast %cst_69 : f32 to vector<8x256xf32>
    %127 = arith.maximumf %125, %126 : vector<8x256xf32>
    %c0_70 = arith.constant 0 : index
    %c0_71 = arith.constant 0 : index
    %c0_72 = arith.constant 0 : index
    %128 = vector.load %arg20[%c0_70, %c0_71, %c0_72] : memref<1x8x256xf32, #tpu.memory_space<vmem>>, vector<1x8x256xf32>
    %129 = vector.shape_cast %128 : vector<1x8x256xf32> to vector<8x256xf32>
    %130 = vector.shape_cast %127 : vector<8x256xf32> to vector<1x8x256xf32>
    tpu.vector_store %arg20[%c0_70, %c0_71, %c0_72], %130 {strides = array<i32>} : memref<1x8x256xf32, #tpu.memory_space<vmem>>, vector<1x8x256xf32>,
    %c0_i32 = arith.constant 0 : i32
    %131 = arith.cmpi eq, %arg0, %c0_i32 : i32
    %cst_73 = arith.constant 1.000000e+00 : f32
    %cst_74 = arith.constant 0.000000e+00 : f32
    %132 = arith.select %131, %cst_73, %cst_74 : f32
    %133 = vector.broadcast %132 : f32 to vector<8x256xf32>
    %134 = arith.mulf %133, %127 : vector<8x256xf32>
    %cst_75 = arith.constant 1.000000e+00 : f32
    %135 = arith.subf %cst_75, %132 : f32
    %c0_76 = arith.constant 0 : index
    %c0_77 = arith.constant 0 : index
    %136 = vector.load %arg3[%c0_76, %c0_77] : memref<8x256xf32, #tpu.memory_space<vmem>>, vector<8x256xf32>
    %137 = vector.broadcast %135 : f32 to vector<8x256xf32>
    %138 = arith.mulf %137, %136 : vector<8x256xf32>
    %139 = arith.addf %134, %138 : vector<8x256xf32>
    %140 = arith.truncf %139 : vector<8x256xf32> to vector<8x256xbf16>
    %c0_78 = arith.constant 0 : index
    %c0_79 = arith.constant 0 : index
    %141 = vector.load %arg11[%c0_78, %c0_79] : memref<256x256xbf16, #tpu.memory_space<vmem>>, vector<256x256xbf16>
    %cst_80 = arith.constant dense<0.000000e+00> : vector<8x256xf32>
    %142 = tpu.matmul %140, %141, %cst_80 {dimension_numbers = #tpu.dot_dimension_numbers<[1], [0], [0], [1], [0, 0, 1, 1], [], []>} : vector<8x256xbf16>, vector<256x256xbf16>, vector<8x256xf32> -> vector<8x256xf32>
    %c0_81 = arith.constant 0 : index
    %c0_82 = arith.constant 0 : index
    %143 = vector.load %arg12[%c0_81, %c0_82] : memref<136x256xbf16, #tpu.memory_space<vmem>>, vector<136x256xbf16>
    %cst_83 = arith.constant dense<0.000000e+00> : vector<8x256xf32>
    %144 = tpu.matmul %5, %143, %cst_83 {dimension_numbers = #tpu.dot_dimension_numbers<[1], [0], [0], [1], [0, 0, 1, 1], [], []>} : vector<8x136xbf16>, vector<136x256xbf16>, vector<8x256xf32> -> vector<8x256xf32>
    %145 = arith.addf %142, %144 : vector<8x256xf32>
    %c0_84 = arith.constant 0 : index
    %c0_85 = arith.constant 0 : index
    %146 = vector.load %arg13[%c0_84, %c0_85] : memref<1x256xf32, #tpu.memory_space<vmem>>, vector<1x256xf32>
    %147 = vector.broadcast %146 : vector<1x256xf32> to vector<8x256xf32>
    %148 = arith.addf %145, %147 : vector<8x256xf32>
    %cst_86 = arith.constant 0.000000e+00 : f32
    %149 = vector.broadcast %cst_86 : f32 to vector<8x256xf32>
    %150 = arith.maximumf %148, %149 : vector<8x256xf32>
    %151 = arith.truncf %150 : vector<8x256xf32> to vector<8x256xbf16>
    %c0_87 = arith.constant 0 : index
    %c0_88 = arith.constant 0 : index
    %c0_89 = arith.constant 0 : index
    %152 = vector.load %arg14[%c0_87, %c0_88, %c0_89] : memref<2x256x256xbf16, #tpu.memory_space<vmem>>, vector<1x256x256xbf16>
    %153 = vector.shape_cast %152 : vector<1x256x256xbf16> to vector<256x256xbf16>
    %cst_90 = arith.constant dense<0.000000e+00> : vector<8x256xf32>
    %154 = tpu.matmul %151, %153, %cst_90 {dimension_numbers = #tpu.dot_dimension_numbers<[1], [0], [0], [1], [0, 0, 1, 1], [], []>} : vector<8x256xbf16>, vector<256x256xbf16>, vector<8x256xf32> -> vector<8x256xf32>
    %c0_91 = arith.constant 0 : index
    %c0_92 = arith.constant 0 : index
    %c0_93 = arith.constant 0 : index
    %155 = vector.load %arg15[%c0_91, %c0_92, %c0_93] : memref<2x1x256xf32, #tpu.memory_space<vmem>>, vector<1x1x256xf32>
    %156 = vector.shape_cast %155 : vector<1x1x256xf32> to vector<1x256xf32>
    %157 = vector.broadcast %156 : vector<1x256xf32> to vector<8x256xf32>
    %158 = arith.addf %154, %157 : vector<8x256xf32>
    %cst_94 = arith.constant dense<0.000000e+00> : vector<256xf32>
    %159 = vector.multi_reduction <add>, %158, %cst_94 [0] : vector<8x256xf32> to vector<256xf32>
    %160 = vector.shape_cast %159 : vector<256xf32> to vector<1x256xf32>
    %161 = arith.mulf %158, %158 : vector<8x256xf32>
    %cst_95 = arith.constant dense<0.000000e+00> : vector<256xf32>
    %162 = vector.multi_reduction <add>, %161, %cst_95 [0] : vector<8x256xf32> to vector<256xf32>
    %163 = vector.shape_cast %162 : vector<256xf32> to vector<1x256xf32>
    %cst_96 = arith.constant 1.250000e-01 : f32
    %164 = vector.broadcast %cst_96 : f32 to vector<1x256xf32>
    %165 = arith.mulf %160, %164 : vector<1x256xf32>
    %cst_97 = arith.constant 1.250000e-01 : f32
    %166 = vector.broadcast %cst_97 : f32 to vector<1x256xf32>
    %167 = arith.mulf %163, %166 : vector<1x256xf32>
    %168 = arith.mulf %165, %165 : vector<1x256xf32>
    %169 = arith.subf %167, %168 : vector<1x256xf32>
    %cst_98 = arith.constant 0.000000e+00 : f32
    %170 = vector.broadcast %cst_98 : f32 to vector<1x256xf32>
    %171 = arith.maximumf %169, %170 : vector<1x256xf32>
    %172 = vector.broadcast %165 : vector<1x256xf32> to vector<8x256xf32>
    %173 = arith.subf %158, %172 : vector<8x256xf32>
    %cst_99 = arith.constant 9.99999974E-6 : f32
    %174 = vector.broadcast %cst_99 : f32 to vector<1x256xf32>
    %175 = arith.addf %171, %174 : vector<1x256xf32>
    %176 = math.rsqrt %175 : vector<1x256xf32>
    %177 = vector.broadcast %176 : vector<1x256xf32> to vector<8x256xf32>
    %178 = arith.mulf %173, %177 : vector<8x256xf32>
    %c0_100 = arith.constant 0 : index
    %c0_101 = arith.constant 0 : index
    %c0_102 = arith.constant 0 : index
    %179 = vector.load %arg16[%c0_100, %c0_101, %c0_102] : memref<2x1x256xf32, #tpu.memory_space<vmem>>, vector<1x1x256xf32>
    %180 = vector.shape_cast %179 : vector<1x1x256xf32> to vector<1x256xf32>
    %181 = vector.broadcast %180 : vector<1x256xf32> to vector<8x256xf32>
    %182 = arith.mulf %181, %178 : vector<8x256xf32>
    %c0_103 = arith.constant 0 : index
    %c0_104 = arith.constant 0 : index
    %c0_105 = arith.constant 0 : index
    %183 = vector.load %arg17[%c0_103, %c0_104, %c0_105] : memref<2x1x256xf32, #tpu.memory_space<vmem>>, vector<1x1x256xf32>
    %184 = vector.shape_cast %183 : vector<1x1x256xf32> to vector<1x256xf32>
    %185 = vector.broadcast %184 : vector<1x256xf32> to vector<8x256xf32>
    %186 = arith.addf %182, %185 : vector<8x256xf32>
    %cst_106 = arith.constant 0.000000e+00 : f32
    %187 = vector.broadcast %cst_106 : f32 to vector<8x256xf32>
    %188 = arith.maximumf %186, %187 : vector<8x256xf32>
    %189 = arith.truncf %188 : vector<8x256xf32> to vector<8x256xbf16>
    %c1_107 = arith.constant 1 : index
    %c0_108 = arith.constant 0 : index
    %c0_109 = arith.constant 0 : index
    %190 = vector.load %arg14[%c1_107, %c0_108, %c0_109] : memref<2x256x256xbf16, #tpu.memory_space<vmem>>, vector<1x256x256xbf16>
    %191 = vector.shape_cast %190 : vector<1x256x256xbf16> to vector<256x256xbf16>
    %cst_110 = arith.constant dense<0.000000e+00> : vector<8x256xf32>
    %192 = tpu.matmul %189, %191, %cst_110 {dimension_numbers = #tpu.dot_dimension_numbers<[1], [0], [0], [1], [0, 0, 1, 1], [], []>} : vector<8x256xbf16>, vector<256x256xbf16>, vector<8x256xf32> -> vector<8x256xf32>
    %c1_111 = arith.constant 1 : index
    %c0_112 = arith.constant 0 : index
    %c0_113 = arith.constant 0 : index
    %193 = vector.load %arg15[%c1_111, %c0_112, %c0_113] : memref<2x1x256xf32, #tpu.memory_space<vmem>>, vector<1x1x256xf32>
    %194 = vector.shape_cast %193 : vector<1x1x256xf32> to vector<1x256xf32>
    %195 = vector.broadcast %194 : vector<1x256xf32> to vector<8x256xf32>
    %196 = arith.addf %192, %195 : vector<8x256xf32>
    %cst_114 = arith.constant dense<0.000000e+00> : vector<256xf32>
    %197 = vector.multi_reduction <add>, %196, %cst_114 [0] : vector<8x256xf32> to vector<256xf32>
    %198 = vector.shape_cast %197 : vector<256xf32> to vector<1x256xf32>
    %199 = arith.mulf %196, %196 : vector<8x256xf32>
    %cst_115 = arith.constant dense<0.000000e+00> : vector<256xf32>
    %200 = vector.multi_reduction <add>, %199, %cst_115 [0] : vector<8x256xf32> to vector<256xf32>
    %201 = vector.shape_cast %200 : vector<256xf32> to vector<1x256xf32>
    %cst_116 = arith.constant 1.250000e-01 : f32
    %202 = vector.broadcast %cst_116 : f32 to vector<1x256xf32>
    %203 = arith.mulf %198, %202 : vector<1x256xf32>
    %cst_117 = arith.constant 1.250000e-01 : f32
    %204 = vector.broadcast %cst_117 : f32 to vector<1x256xf32>
    %205 = arith.mulf %201, %204 : vector<1x256xf32>
    %206 = arith.mulf %203, %203 : vector<1x256xf32>
    %207 = arith.subf %205, %206 : vector<1x256xf32>
    %cst_118 = arith.constant 0.000000e+00 : f32
    %208 = vector.broadcast %cst_118 : f32 to vector<1x256xf32>
    %209 = arith.maximumf %207, %208 : vector<1x256xf32>
    %210 = vector.broadcast %203 : vector<1x256xf32> to vector<8x256xf32>
    %211 = arith.subf %196, %210 : vector<8x256xf32>
    %cst_119 = arith.constant 9.99999974E-6 : f32
    %212 = vector.broadcast %cst_119 : f32 to vector<1x256xf32>
    %213 = arith.addf %209, %212 : vector<1x256xf32>
    %214 = math.rsqrt %213 : vector<1x256xf32>
    %215 = vector.broadcast %214 : vector<1x256xf32> to vector<8x256xf32>
    %216 = arith.mulf %211, %215 : vector<8x256xf32>
    %c1_120 = arith.constant 1 : index
    %c0_121 = arith.constant 0 : index
    %c0_122 = arith.constant 0 : index
    %217 = vector.load %arg16[%c1_120, %c0_121, %c0_122] : memref<2x1x256xf32, #tpu.memory_space<vmem>>, vector<1x1x256xf32>
    %218 = vector.shape_cast %217 : vector<1x1x256xf32> to vector<1x256xf32>
    %219 = vector.broadcast %218 : vector<1x256xf32> to vector<8x256xf32>
    %220 = arith.mulf %219, %216 : vector<8x256xf32>
    %c1_123 = arith.constant 1 : index
    %c0_124 = arith.constant 0 : index
    %c0_125 = arith.constant 0 : index
    %221 = vector.load %arg17[%c1_123, %c0_124, %c0_125] : memref<2x1x256xf32, #tpu.memory_space<vmem>>, vector<1x1x256xf32>
    %222 = vector.shape_cast %221 : vector<1x1x256xf32> to vector<1x256xf32>
    %223 = vector.broadcast %222 : vector<1x256xf32> to vector<8x256xf32>
    %224 = arith.addf %220, %223 : vector<8x256xf32>
    %cst_126 = arith.constant 0.000000e+00 : f32
    %225 = vector.broadcast %cst_126 : f32 to vector<8x256xf32>
    %226 = arith.maximumf %224, %225 : vector<8x256xf32>
    %c0_127 = arith.constant 0 : index
    %c0_128 = arith.constant 0 : index
    %227 = vector.load %arg18[%c0_127, %c0_128] : memref<1x256xbf16, #tpu.memory_space<vmem>>, vector<1x256xbf16>
    %228 = arith.extf %227 : vector<1x256xbf16> to vector<1x256xf32>
    %229 = vector.broadcast %228 : vector<1x256xf32> to vector<8x256xf32>
    %230 = arith.mulf %226, %229 : vector<8x256xf32>
    %cst_129 = arith.constant dense<0.000000e+00> : vector<8xf32>
    %231 = vector.multi_reduction <add>, %230, %cst_129 [1] : vector<8x256xf32> to vector<8xf32>
    %232 = vector.shape_cast %231 : vector<8xf32> to vector<8x1xf32>
    %c0_130 = arith.constant 0 : index
    %c0_131 = arith.constant 0 : index
    %233 = vector.load %arg19[%c0_130, %c0_131] : memref<1x1xf32, #tpu.memory_space<vmem>>, vector<1x1xf32>
    %234 = vector.broadcast %233 : vector<1x1xf32> to vector<8x1xf32>
    %235 = arith.addf %232, %234 : vector<8x1xf32>
    %236 = vector.shape_cast %235 : vector<8x1xf32> to vector<8x1xf32>
    %237 = vector.broadcast %236 : vector<8x1xf32> to vector<8x128xf32>
    %c0_132 = arith.constant 0 : index
    %c0_133 = arith.constant 0 : index
    %c0_134 = arith.constant 0 : index
    %238 = vector.load %arg21[%c0_132, %c0_133, %c0_134] : memref<1x8x128xf32, #tpu.memory_space<vmem>>, vector<1x8x128xf32>
    %239 = vector.shape_cast %238 : vector<1x8x128xf32> to vector<8x128xf32>
    %240 = vector.shape_cast %237 : vector<8x128xf32> to vector<1x8x128xf32>
    tpu.vector_store %arg21[%c0_132, %c0_133, %c0_134], %240 {strides = array<i32>} : memref<1x8x128xf32, #tpu.memory_space<vmem>>, vector<1x8x128xf32>,
    return
  }
  func.func @transform_0(%arg0: i32) -> (i32, i32, i32) {
    %c0_i32 = arith.constant 0 : i32
    %c0_i32_0 = arith.constant 0 : i32
    %c0_i32_1 = arith.constant 0 : i32
    return %arg0, %c0_i32, %c0_i32_0 : i32, i32, i32
  }
  func.func @transform_1(%arg0: i32) -> (i32, i32, i32) {
    %c0_i32 = arith.constant 0 : i32
    %c0_i32_0 = arith.constant 0 : i32
    %c0_i32_1 = arith.constant 0 : i32
    return %arg0, %c0_i32, %c0_i32_0 : i32, i32, i32
  }
  func.func @transform_2(%arg0: i32) -> (i32, i32) {
    %c0_i32 = arith.constant 0 : i32
    %c0_i32_0 = arith.constant 0 : i32
    %c0_i32_1 = arith.constant 0 : i32
    return %c0_i32, %c0_i32_0 : i32, i32
  }
  func.func @transform_3(%arg0: i32) -> (i32, i32) {
    %c0_i32 = arith.constant 0 : i32
    %c0_i32_0 = arith.constant 0 : i32
    %c0_i32_1 = arith.constant 0 : i32
    return %c0_i32, %c0_i32_0 : i32, i32
  }
  func.func @transform_4(%arg0: i32) -> (i32, i32) {
    %c0_i32 = arith.constant 0 : i32
    %c0_i32_0 = arith.constant 0 : i32
    %c0_i32_1 = arith.constant 0 : i32
    return %c0_i32, %c0_i32_0 : i32, i32
  }
  func.func @transform_5(%arg0: i32) -> (i32, i32) {
    %c0_i32 = arith.constant 0 : i32
    %c0_i32_0 = arith.constant 0 : i32
    %c0_i32_1 = arith.constant 0 : i32
    return %c0_i32, %c0_i32_0 : i32, i32
  }
  func.func @transform_6(%arg0: i32) -> (i32, i32, i32) {
    %c0_i32 = arith.constant 0 : i32
    %c0_i32_0 = arith.constant 0 : i32
    %c0_i32_1 = arith.constant 0 : i32
    %c0_i32_2 = arith.constant 0 : i32
    return %c0_i32, %c0_i32_0, %c0_i32_1 : i32, i32, i32
  }
  func.func @transform_7(%arg0: i32) -> (i32, i32, i32) {
    %c0_i32 = arith.constant 0 : i32
    %c0_i32_0 = arith.constant 0 : i32
    %c0_i32_1 = arith.constant 0 : i32
    %c0_i32_2 = arith.constant 0 : i32
    return %c0_i32, %c0_i32_0, %c0_i32_1 : i32, i32, i32
  }
  func.func @transform_8(%arg0: i32) -> (i32, i32, i32) {
    %c0_i32 = arith.constant 0 : i32
    %c0_i32_0 = arith.constant 0 : i32
    %c0_i32_1 = arith.constant 0 : i32
    %c0_i32_2 = arith.constant 0 : i32
    return %c0_i32, %c0_i32_0, %c0_i32_1 : i32, i32, i32
  }
  func.func @transform_9(%arg0: i32) -> (i32, i32, i32) {
    %c0_i32 = arith.constant 0 : i32
    %c0_i32_0 = arith.constant 0 : i32
    %c0_i32_1 = arith.constant 0 : i32
    %c0_i32_2 = arith.constant 0 : i32
    return %c0_i32, %c0_i32_0, %c0_i32_1 : i32, i32, i32
  }
  func.func @transform_10(%arg0: i32) -> (i32, i32) {
    %c0_i32 = arith.constant 0 : i32
    %c0_i32_0 = arith.constant 0 : i32
    %c0_i32_1 = arith.constant 0 : i32
    return %c0_i32, %c0_i32_0 : i32, i32
  }
  func.func @transform_11(%arg0: i32) -> (i32, i32) {
    %c0_i32 = arith.constant 0 : i32
    %c0_i32_0 = arith.constant 0 : i32
    %c0_i32_1 = arith.constant 0 : i32
    return %c0_i32, %c0_i32_0 : i32, i32
  }
  func.func @transform_12(%arg0: i32) -> (i32, i32) {
    %c0_i32 = arith.constant 0 : i32
    %c0_i32_0 = arith.constant 0 : i32
    %c0_i32_1 = arith.constant 0 : i32
    return %c0_i32, %c0_i32_0 : i32, i32
  }
  func.func @transform_13(%arg0: i32) -> (i32, i32, i32) {
    %c0_i32 = arith.constant 0 : i32
    %c0_i32_0 = arith.constant 0 : i32
    %c0_i32_1 = arith.constant 0 : i32
    %c0_i32_2 = arith.constant 0 : i32
    return %c0_i32, %c0_i32_0, %c0_i32_1 : i32, i32, i32
  }
  func.func @transform_14(%arg0: i32) -> (i32, i32, i32) {
    %c0_i32 = arith.constant 0 : i32
    %c0_i32_0 = arith.constant 0 : i32
    %c0_i32_1 = arith.constant 0 : i32
    %c0_i32_2 = arith.constant 0 : i32
    return %c0_i32, %c0_i32_0, %c0_i32_1 : i32, i32, i32
  }
  func.func @transform_15(%arg0: i32) -> (i32, i32, i32) {
    %c0_i32 = arith.constant 0 : i32
    %c0_i32_0 = arith.constant 0 : i32
    %c0_i32_1 = arith.constant 0 : i32
    %c0_i32_2 = arith.constant 0 : i32
    return %c0_i32, %c0_i32_0, %c0_i32_1 : i32, i32, i32
  }
  func.func @transform_16(%arg0: i32) -> (i32, i32, i32) {
    %c0_i32 = arith.constant 0 : i32
    %c0_i32_0 = arith.constant 0 : i32
    %c0_i32_1 = arith.constant 0 : i32
    %c0_i32_2 = arith.constant 0 : i32
    return %c0_i32, %c0_i32_0, %c0_i32_1 : i32, i32, i32
  }
  func.func @transform_17(%arg0: i32) -> (i32, i32) {
    %c0_i32 = arith.constant 0 : i32
    %c0_i32_0 = arith.constant 0 : i32
    %c0_i32_1 = arith.constant 0 : i32
    return %c0_i32, %c0_i32_0 : i32, i32
  }
  func.func @transform_18(%arg0: i32) -> (i32, i32) {
    %c0_i32 = arith.constant 0 : i32
    %c0_i32_0 = arith.constant 0 : i32
    %c0_i32_1 = arith.constant 0 : i32
    return %c0_i32, %c0_i32_0 : i32, i32
  }
  func.func @transform_19(%arg0: i32) -> (i32, i32, i32) {
    %c0_i32 = arith.constant 0 : i32
    %c0_i32_0 = arith.constant 0 : i32
    %c0_i32_1 = arith.constant 0 : i32
    return %arg0, %c0_i32, %c0_i32_0 : i32, i32, i32
  }
  func.func @transform_20(%arg0: i32) -> (i32, i32, i32) {
    %c0_i32 = arith.constant 0 : i32
    %c0_i32_0 = arith.constant 0 : i32
    %c0_i32_1 = arith.constant 0 : i32
    return %arg0, %c0_i32, %c0_i32_0 : i32, i32, i32
  }
}

</mosaic_0001>

<llo_original>
// kernel: _forward_pallas.1
$region0: #{_forward_pallas.1}
  #allocation0 [shape = 'u32[]', space=smem, size = 0x4, offset = 0x4, fixed_abs, tag = 'smem constant byte address 0x4 - core index']
  #allocation1 [shape = 'u32[144,128]{1,0:T(1,128)}', space=vmem, size = 0x12000, scoped, tag = 'internal scratch']
  #allocation2 [shape = 'f32[1,1]{1,0:T(1,128)S(1)}', space=vmem, size = 0x200, scoped, tag = 'scoped memory for _forward_pallas.1']
  %s0 = inlined_call_operand.vmem [shape: f32[2,8,256], index: 0, kind: input, shape index: {}]
  %s1 = inlined_call_operand.vmem [shape: f32[2,8,136], index: 1, kind: input, shape index: {}]
  %s2 = inlined_call_operand.vmem [shape: f32[8,256], index: 2, kind: input, shape index: {}]
  %s3 = inlined_call_operand.hbm [shape: bf16[256,256], index: 3, kind: input, shape index: {}]
  %s4 = inlined_call_operand.vmem [shape: bf16[136,256], index: 4, kind: input, shape index: {}]
  %s5 = inlined_call_operand.vmem [shape: f32[1,256], index: 5, kind: input, shape index: {}]
  %s6 = inlined_call_operand.hbm [shape: bf16[3,256,256], index: 6, kind: input, shape index: {}]
  %s7 = inlined_call_operand.vmem [shape: f32[3,1,256], index: 7, kind: input, shape index: {}]
  %s8 = inlined_call_operand.vmem [shape: f32[3,1,256], index: 8, kind: input, shape index: {}]
  %s9 = inlined_call_operand.vmem [shape: f32[3,1,256], index: 9, kind: input, shape index: {}]
  %s10 = inlined_call_operand.hbm [shape: bf16[256,256], index: 10, kind: input, shape index: {}]
  %s11 = inlined_call_operand.hbm [shape: bf16[136,256], index: 11, kind: input, shape index: {}]
  %s12 = inlined_call_operand.vmem [shape: f32[1,256], index: 12, kind: input, shape index: {}]
  %s13 = inlined_call_operand.vmem [shape: bf16[2,256,256], index: 13, kind: input, shape index: {}]
  %s14 = inlined_call_operand.vmem [shape: f32[2,1,256], index: 14, kind: input, shape index: {}]
  %s15 = inlined_call_operand.vmem [shape: f32[2,1,256], index: 15, kind: input, shape index: {}]
  %s16 = inlined_call_operand.vmem [shape: f32[2,1,256], index: 16, kind: input, shape index: {}]
  %s17 = inlined_call_operand.vmem [shape: bf16[1,256], index: 17, kind: input, shape index: {}]
  %s18 = inlined_call_operand.<no memory space> [shape: f32[1,1], index: 18, kind: input, shape index: {}]
  %s19 = inlined_call_operand.vmem [shape: f32[2,8,256], index: 19, kind: output, shape index: {0}]
  %s20 = inlined_call_operand.vmem [shape: f32[2,8,128], index: 20, kind: output, shape index: {1}]
  %21 = xla_tuple %s19, %s20
  %s22 = sld [smem:[#allocation0]]
  $region133: #{_forward_pallas.1} parent=0
    _
  %s24 = ssub.s32 1, %s22
  %s25 = scalar_select 0, %s24, %s22
  %v26 = vstv %s18
  %27 = vst [vmem:[#allocation2] sm:$0x1] %v26
  $region1: #{_forward_pallas.1} parent=0
    #allocation3 [shape = 'u8[131072]{0}', space=vmem, size = 0x20000, scoped, tag = 'input window, operand 3, single buffered']
    #allocation4 [shape = 's32[2]{0}', space=sflag, size = 0x8, scoped, tag = 'scoped memory for _forward_pallas.1']
    #allocation5 [shape = 'u8[393216]{0}', space=vmem, size = 0x60000, scoped, tag = 'input window, operand 6, single buffered']
    #allocation6 [shape = 's32[1]{0}', space=sflag, size = 0x4, scoped, tag = 'scoped memory for _forward_pallas.1']
    #allocation7 [shape = 'u8[131072]{0}', space=vmem, size = 0x20000, scoped, tag = 'input window, operand 10, single buffered']
    #allocation8 [shape = 'u8[69632]{0}', space=vmem, size = 0x11000, scoped, tag = 'input window, operand 11, single buffered']
    #allocation9 [shape = 's32[1]{0}', space=sflag, size = 0x4, scoped, tag = 'scoped memory for _forward_pallas.1']
    %28 = vsyncpa [#allocation4], 0
    %29 = vsyncpa [#allocation6], 0
    %30 = vsyncpa [#allocation9], 0
    loop: start=0, step=1, limit=4
    $region2: #{_forward_pallas.1} parent=1 // loop_pre_header
      _
    $region3: #{_forward_pallas.1} parent=1 // loop_header
      %s32 = sphi 0, %s36
      %p33 = scmp.ge.s32.totalorder %s32, 4
      %s42 = sphi 0, %s44
      %s45 = sphi 0, %s42
      %s46 = sphi 0, %s45
      %s62 = sphi 0, %s46
      %s68 = sphi 0, %s70
      %s71 = sphi 0, %s68
      %s72 = sphi 0, %s71
      %s88 = sphi 0, %s72
      %s92 = sphi 0, %s92
      %s94 = sphi 0, %s92
      %s95 = sphi 0, %s94
      %s109 = sphi 0, %s95
      %s113 = sphi 0, %s113
      %s115 = sphi 0, %s113
      %s116 = sphi 0, %s115
      %s130 = sphi 0, %s116
      %s134 = sphi 0, %s134
      %s136 = sphi 0, %s134
      %s137 = sphi 0, %s136
      %s151 = sphi 0, %s137
      %s155 = sphi 0, %s155
      %s157 = sphi 0, %s155
      %s158 = sphi 0, %s157
      %s172 = sphi 0, %s158
      %s176 = sphi 0, %s176
      %s178 = sphi 0, %s176
      %s179 = sphi 0, %s178
      %s193 = sphi 0, %s179
      %s197 = sphi 0, %s197
      %s199 = sphi 0, %s197
      %s200 = sphi 0, %s199
      %s214 = sphi 0, %s200
      %s218 = sphi 0, %s218
      %s220 = sphi 0, %s218
      %s221 = sphi 0, %s220
      %s235 = sphi 0, %s221
      %s239 = sphi 0, %s239
      %s241 = sphi 0, %s239
      %s242 = sphi 0, %s241
      %s256 = sphi 0, %s242
      %s260 = sphi 0, %s260
      %s262 = sphi 0, %s260
      %s263 = sphi 0, %s262
      %s277 = sphi 0, %s263
      %s281 = sphi 0, %s281
      %s283 = sphi 0, %s281
      %s284 = sphi 0, %s283
      %s298 = sphi 0, %s284
      %s302 = sphi 0, %s302
      %s304 = sphi 0, %s302
      %s305 = sphi 0, %s304
      %s319 = sphi 0, %s305
      %s323 = sphi 0, %s323
      %s325 = sphi 0, %s323
      %s326 = sphi 0, %s325
      %s340 = sphi 0, %s326
      %s344 = sphi 0, %s344
      %s346 = sphi 0, %s344
      %s347 = sphi 0, %s346
      %s361 = sphi 0, %s347
      %s365 = sphi 0, %s365
      %s367 = sphi 0, %s365
      %s368 = sphi 0, %s367
      %s382 = sphi 0, %s368
      %s386 = sphi 0, %s386
      %s388 = sphi 0, %s386
      %s389 = sphi 0, %s388
      %s403 = sphi 0, %s389
      %s407 = sphi 0, %s407
      %s409 = sphi 0, %s407
      %s410 = sphi 0, %s409
      %s424 = sphi 0, %s410
      %s428 = sphi 0, %s428
      %s430 = sphi 0, %s428
      %s431 = sphi 0, %s430
      %s445 = sphi 0, %s431
      %s451 = sphi 0, %s453
      %s454 = sphi 0, %s451
      %s455 = sphi 0, %s454
      %s471 = sphi 0, %s455
      %s477 = sphi 0, %s479
      %s480 = sphi 0, %s477
      %s481 = sphi 0, %s480
      %s497 = sphi 0, %s481
    $region4: #{_forward_pallas.1} parent=1 // loop_header_branch
      %35 = sbr.rel (%p33) target = $region8
    $region5: #{_forward_pallas.1} parent=1 // loop_body
      %s37 = ssub.s32 %s32, 1
      %s38 = ssub.s32 %s32, 2
      %s39 = sadd.s32 %s32, 1
      %s40 = ssub.s32 %s32, %s39
      %p41 = scmp.eq.s32.totalorder %s40, 0
      %s43 = sadd.s32 %s42, 1
      %s44 = scalar_select %p41, %s42, %s43
      %p47 = pneg %p41
      %p48 = scmp.eq.s32.totalorder %s32, 1
      %p49 = por %p47, %p48
      %p50 = scmp.ne.s32.totalorder %s42, %s45
      %p51 = scmp.eq.s32.totalorder %s32, 0
      %p52 = por %p50, %p51
      %p53 = scmp.ne.s32.totalorder %s42, %s45
      %p54 = scmp.eq.s32.totalorder %s37, 1
      %p55 = por %p53, %p54
      %p56 = scmp.ne.s32.totalorder %s45, %s46
      %p57 = scmp.eq.s32.totalorder %s37, 0
      %p58 = por %p56, %p57
      %p59 = scmp.ne.s32.totalorder %s45, %s46
      %p60 = scmp.eq.s32.totalorder %s38, 1
      %p61 = por %p59, %p60
      %p63 = scmp.ne.s32.totalorder %s46, %s62
      %p64 = scmp.eq.s32.totalorder %s38, 0
      %p65 = por %p63, %p64
      %s66 = ssub.s32 %s32, %s39
      %p67 = scmp.eq.s32.totalorder %s66, 0
      %s69 = sadd.s32 %s68, 1
      %s70 = scalar_select %p67, %s68, %s69
      %p73 = pneg %p67
      %p74 = scmp.eq.s32.totalorder %s32, 1
      %p75 = por %p73, %p74
      %p76 = scmp.ne.s32.totalorder %s68, %s71
      %p77 = scmp.eq.s32.totalorder %s32, 0
      %p78 = por %p76, %p77
      %p79 = scmp.ne.s32.totalorder %s68, %s71
      %p80 = scmp.eq.s32.totalorder %s37, 1
      %p81 = por %p79, %p80
      %p82 = scmp.ne.s32.totalorder %s71, %s72
      %p83 = scmp.eq.s32.totalorder %s37, 0
      %p84 = por %p82, %p83
      %p85 = scmp.ne.s32.totalorder %s71, %s72
      %p86 = scmp.eq.s32.totalorder %s38, 1
      %p87 = por %p85, %p86
      %p89 = scmp.ne.s32.totalorder %s72, %s88
      %p90 = scmp.eq.s32.totalorder %s38, 0
      %p91 = por %p89, %p90
      %s93 = sadd.s32 %s92, 1
      %p96 = scmp.eq.s32.totalorder %s32, 1
      %p97 = scmp.ne.s32.totalorder %s92, %s94
      %p98 = scmp.eq.s32.totalorder %s32, 0
      %p99 = por %p97, %p98
      %p100 = scmp.ne.s32.totalorder %s92, %s94
      %p101 = scmp.eq.s32.totalorder %s37, 1
      %p102 = por %p100, %p101
      %p103 = scmp.ne.s32.totalorder %s94, %s95
      %p104 = scmp.eq.s32.totalorder %s37, 0
      %p105 = por %p103, %p104
      %p106 = scmp.ne.s32.totalorder %s94, %s95
      %p107 = scmp.eq.s32.totalorder %s38, 1
      %p108 = por %p106, %p107
      %p110 = scmp.ne.s32.totalorder %s95, %s109
      %p111 = scmp.eq.s32.totalorder %s38, 0
      %p112 = por %p110, %p111
      %s114 = sadd.s32 %s113, 1
      %p117 = scmp.eq.s32.totalorder %s32, 1
      %p118 = scmp.ne.s32.totalorder %s113, %s115
      %p119 = scmp.eq.s32.totalorder %s32, 0
      %p120 = por %p118, %p119
      %p121 = scmp.ne.s32.totalorder %s113, %s115
      %p122 = scmp.eq.s32.totalorder %s37, 1
      %p123 = por %p121, %p122
      %p124 = scmp.ne.s32.totalorder %s115, %s116
      %p125 = scmp.eq.s32.totalorder %s37, 0
      %p126 = por %p124, %p125
      %p127 = scmp.ne.s32.totalorder %s115, %s116
      %p128 = scmp.eq.s32.totalorder %s38, 1
      %p129 = por %p127, %p128
      %p131 = scmp.ne.s32.totalorder %s116, %s130
      %p132 = scmp.eq.s32.totalorder %s38, 0
      %p133 = por %p131, %p132
      %s135 = sadd.s32 %s134, 1
      %p138 = scmp.eq.s32.totalorder %s32, 1
      %p139 = scmp.ne.s32.totalorder %s134, %s136
      %p140 = scmp.eq.s32.totalorder %s32, 0
      %p141 = por %p139, %p140
      %p142 = scmp.ne.s32.totalorder %s134, %s136
      %p143 = scmp.eq.s32.totalorder %s37, 1
      %p144 = por %p142, %p143
      %p145 = scmp.ne.s32.totalorder %s136, %s137
      %p146 = scmp.eq.s32.totalorder %s37, 0
      %p147 = por %p145, %p146
      %p148 = scmp.ne.s32.totalorder %s136, %s137
      %p149 = scmp.eq.s32.totalorder %s38, 1
      %p150 = por %p148, %p149
      %p152 = scmp.ne.s32.totalorder %s137, %s151
      %p153 = scmp.eq.s32.totalorder %s38, 0
      %p154 = por %p152, %p153
      %s156 = sadd.s32 %s155, 1
      %p159 = scmp.eq.s32.totalorder %s32, 1
      %p160 = scmp.ne.s32.totalorder %s155, %s157
      %p161 = scmp.eq.s32.totalorder %s32, 0
      %p162 = por %p160, %p161
      %p163 = scmp.ne.s32.totalorder %s155, %s157
      %p164 = scmp.eq.s32.totalorder %s37, 1
      %p165 = por %p163, %p164
      %p166 = scmp.ne.s32.totalorder %s157, %s158
      %p167 = scmp.eq.s32.totalorder %s37, 0
      %p168 = por %p166, %p167
      %p169 = scmp.ne.s32.totalorder %s157, %s158
      %p170 = scmp.eq.s32.totalorder %s38, 1
      %p171 = por %p169, %p170
      %p173 = scmp.ne.s32.totalorder %s158, %s172
      %p174 = scmp.eq.s32.totalorder %s38, 0
      %p175 = por %p173, %p174
      %s177 = sadd.s32 %s176, 1
      %p180 = scmp.eq.s32.totalorder %s32, 1
      %p181 = scmp.ne.s32.totalorder %s176, %s178
      %p182 = scmp.eq.s32.totalorder %s32, 0
      %p183 = por %p181, %p182
      %p184 = scmp.ne.s32.totalorder %s176, %s178
      %p185 = scmp.eq.s32.totalorder %s37, 1
      %p186 = por %p184, %p185
      %p187 = scmp.ne.s32.totalorder %s178, %s179
      %p188 = scmp.eq.s32.totalorder %s37, 0
      %p189 = por %p187, %p188
      %p190 = scmp.ne.s32.totalorder %s178, %s179
      %p191 = scmp.eq.s32.totalorder %s38, 1
      %p192 = por %p190, %p191
      %p194 = scmp.ne.s32.totalorder %s179, %s193
      %p195 = scmp.eq.s32.totalorder %s38, 0
      %p196 = por %p194, %p195
      %s198 = sadd.s32 %s197, 1
      %p201 = scmp.eq.s32.totalorder %s32, 1
      %p202 = scmp.ne.s32.totalorder %s197, %s199
      %p203 = scmp.eq.s32.totalorder %s32, 0
      %p204 = por %p202, %p203
      %p205 = scmp.ne.s32.totalorder %s197, %s199
      %p206 = scmp.eq.s32.totalorder %s37, 1
      %p207 = por %p205, %p206
      %p208 = scmp.ne.s32.totalorder %s199, %s200
      %p209 = scmp.eq.s32.totalorder %s37, 0
      %p210 = por %p208, %p209
      %p211 = scmp.ne.s32.totalorder %s199, %s200
      %p212 = scmp.eq.s32.totalorder %s38, 1
      %p213 = por %p211, %p212
      %p215 = scmp.ne.s32.totalorder %s200, %s214
      %p216 = scmp.eq.s32.totalorder %s38, 0
      %p217 = por %p215, %p216
      %s219 = sadd.s32 %s218, 1
      %p222 = scmp.eq.s32.totalorder %s32, 1
      %p223 = scmp.ne.s32.totalorder %s218, %s220
      %p224 = scmp.eq.s32.totalorder %s32, 0
      %p225 = por %p223, %p224
      %p226 = scmp.ne.s32.totalorder %s218, %s220
      %p227 = scmp.eq.s32.totalorder %s37, 1
      %p228 = por %p226, %p227
      %p229 = scmp.ne.s32.totalorder %s220, %s221
      %p230 = scmp.eq.s32.totalorder %s37, 0
      %p231 = por %p229, %p230
      %p232 = scmp.ne.s32.totalorder %s220, %s221
      %p233 = scmp.eq.s32.totalorder %s38, 1
      %p234 = por %p232, %p233
      %p236 = scmp.ne.s32.totalorder %s221, %s235
      %p237 = scmp.eq.s32.totalorder %s38, 0
      %p238 = por %p236, %p237
      %s240 = sadd.s32 %s239, 1
      %p243 = scmp.eq.s32.totalorder %s32, 1
      %p244 = scmp.ne.s32.totalorder %s239, %s241
      %p245 = scmp.eq.s32.totalorder %s32, 0
      %p246 = por %p244, %p245
      %p247 = scmp.ne.s32.totalorder %s239, %s241
      %p248 = scmp.eq.s32.totalorder %s37, 1
      %p249 = por %p247, %p248
      %p250 = scmp.ne.s32.totalorder %s241, %s242
      %p251 = scmp.eq.s32.totalorder %s37, 0
      %p252 = por %p250, %p251
      %p253 = scmp.ne.s32.totalorder %s241, %s242
      %p254 = scmp.eq.s32.totalorder %s38, 1
      %p255 = por %p253, %p254
      %p257 = scmp.ne.s32.totalorder %s242, %s256
      %p258 = scmp.eq.s32.totalorder %s38, 0
      %p259 = por %p257, %p258
      %s261 = sadd.s32 %s260, 1
      %p264 = scmp.eq.s32.totalorder %s32, 1
      %p265 = scmp.ne.s32.totalorder %s260, %s262
      %p266 = scmp.eq.s32.totalorder %s32, 0
      %p267 = por %p265, %p266
      %p268 = scmp.ne.s32.totalorder %s260, %s262
      %p269 = scmp.eq.s32.totalorder %s37, 1
      %p270 = por %p268, %p269
      %p271 = scmp.ne.s32.totalorder %s262, %s263
      %p272 = scmp.eq.s32.totalorder %s37, 0
      %p273 = por %p271, %p272
      %p274 = scmp.ne.s32.totalorder %s262, %s263
      %p275 = scmp.eq.s32.totalorder %s38, 1
      %p276 = por %p274, %p275
      %p278 = scmp.ne.s32.totalorder %s263, %s277
      %p279 = scmp.eq.s32.totalorder %s38, 0
      %p280 = por %p278, %p279
      %s282 = sadd.s32 %s281, 1
      %p285 = scmp.eq.s32.totalorder %s32, 1
      %p286 = scmp.ne.s32.totalorder %s281, %s283
      %p287 = scmp.eq.s32.totalorder %s32, 0
      %p288 = por %p286, %p287
      %p289 = scmp.ne.s32.totalorder %s281, %s283
      %p290 = scmp.eq.s32.totalorder %s37, 1
      %p291 = por %p289, %p290
      %p292 = scmp.ne.s32.totalorder %s283, %s284
      %p293 = scmp.eq.s32.totalorder %s37, 0
      %p294 = por %p292, %p293
      %p295 = scmp.ne.s32.totalorder %s283, %s284
      %p296 = scmp.eq.s32.totalorder %s38, 1
      %p297 = por %p295, %p296
      %p299 = scmp.ne.s32.totalorder %s284, %s298
      %p300 = scmp.eq.s32.totalorder %s38, 0
      %p301 = por %p299, %p300
      %s303 = sadd.s32 %s302, 1
      %p306 = scmp.eq.s32.totalorder %s32, 1
      %p307 = scmp.ne.s32.totalorder %s302, %s304
      %p308 = scmp.eq.s32.totalorder %s32, 0
      %p309 = por %p307, %p308
      %p310 = scmp.ne.s32.totalorder %s302, %s304
      %p311 = scmp.eq.s32.totalorder %s37, 1
      %p312 = por %p310, %p311
      %p313 = scmp.ne.s32.totalorder %s304, %s305
      %p314 = scmp.eq.s32.totalorder %s37, 0
      %p315 = por %p313, %p314
      %p316 = scmp.ne.s32.totalorder %s304, %s305
      %p317 = scmp.eq.s32.totalorder %s38, 1
      %p318 = por %p316, %p317
      %p320 = scmp.ne.s32.totalorder %s305, %s319
      %p321 = scmp.eq.s32.totalorder %s38, 0
      %p322 = por %p320, %p321
      %s324 = sadd.s32 %s323, 1
      %p327 = scmp.eq.s32.totalorder %s32, 1
      %p328 = scmp.ne.s32.totalorder %s323, %s325
      %p329 = scmp.eq.s32.totalorder %s32, 0
      %p330 = por %p328, %p329
      %p331 = scmp.ne.s32.totalorder %s323, %s325
      %p332 = scmp.eq.s32.totalorder %s37, 1
      %p333 = por %p331, %p332
      %p334 = scmp.ne.s32.totalorder %s325, %s326
      %p335 = scmp.eq.s32.totalorder %s37, 0
      %p336 = por %p334, %p335
      %p337 = scmp.ne.s32.totalorder %s325, %s326
      %p338 = scmp.eq.s32.totalorder %s38, 1
      %p339 = por %p337, %p338
      %p341 = scmp.ne.s32.totalorder %s326, %s340
      %p342 = scmp.eq.s32.totalorder %s38, 0
      %p343 = por %p341, %p342
      %s345 = sadd.s32 %s344, 1
      %p348 = scmp.eq.s32.totalorder %s32, 1
      %p349 = scmp.ne.s32.totalorder %s344, %s346
      %p350 = scmp.eq.s32.totalorder %s32, 0
      %p351 = por %p349, %p350
      %p352 = scmp.ne.s32.totalorder %s344, %s346
      %p353 = scmp.eq.s32.totalorder %s37, 1
      %p354 = por %p352, %p353
      %p355 = scmp.ne.s32.totalorder %s346, %s347
      %p356 = scmp.eq.s32.totalorder %s37, 0
      %p357 = por %p355, %p356
      %p358 = scmp.ne.s32.totalorder %s346, %s347
      %p359 = scmp.eq.s32.totalorder %s38, 1
      %p360 = por %p358, %p359
      %p362 = scmp.ne.s32.totalorder %s347, %s361
      %p363 = scmp.eq.s32.totalorder %s38, 0
      %p364 = por %p362, %p363
      %s366 = sadd.s32 %s365, 1
      %p369 = scmp.eq.s32.totalorder %s32, 1
      %p370 = scmp.ne.s32.totalorder %s365, %s367
      %p371 = scmp.eq.s32.totalorder %s32, 0
      %p372 = por %p370, %p371
      %p373 = scmp.ne.s32.totalorder %s365, %s367
      %p374 = scmp.eq.s32.totalorder %s37, 1
      %p375 = por %p373, %p374
      %p376 = scmp.ne.s32.totalorder %s367, %s368
      %p377 = scmp.eq.s32.totalorder %s37, 0
      %p378 = por %p376, %p377
      %p379 = scmp.ne.s32.totalorder %s367, %s368
      %p380 = scmp.eq.s32.totalorder %s38, 1
      %p381 = por %p379, %p380
      %p383 = scmp.ne.s32.totalorder %s368, %s382
      %p384 = scmp.eq.s32.totalorder %s38, 0
      %p385 = por %p383, %p384
      %s387 = sadd.s32 %s386, 1
      %p390 = scmp.eq.s32.totalorder %s32, 1
      %p391 = scmp.ne.s32.totalorder %s386, %s388
      %p392 = scmp.eq.s32.totalorder %s32, 0
      %p393 = por %p391, %p392
      %p394 = scmp.ne.s32.totalorder %s386, %s388
      %p395 = scmp.eq.s32.totalorder %s37, 1
      %p396 = por %p394, %p395
      %p397 = scmp.ne.s32.totalorder %s388, %s389
      %p398 = scmp.eq.s32.totalorder %s37, 0
      %p399 = por %p397, %p398
      %p400 = scmp.ne.s32.totalorder %s388, %s389
      %p401 = scmp.eq.s32.totalorder %s38, 1
      %p402 = por %p400, %p401
      %p404 = scmp.ne.s32.totalorder %s389, %s403
      %p405 = scmp.eq.s32.totalorder %s38, 0
      %p406 = por %p404, %p405
      %s408 = sadd.s32 %s407, 1
      %p411 = scmp.eq.s32.totalorder %s32, 1
      %p412 = scmp.ne.s32.totalorder %s407, %s409
      %p413 = scmp.eq.s32.totalorder %s32, 0
      %p414 = por %p412, %p413
      %p415 = scmp.ne.s32.totalorder %s407, %s409
      %p416 = scmp.eq.s32.totalorder %s37, 1
      %p417 = por %p415, %p416
      %p418 = scmp.ne.s32.totalorder %s409, %s410
      %p419 = scmp.eq.s32.totalorder %s37, 0
      %p420 = por %p418, %p419
      %p421 = scmp.ne.s32.totalorder %s409, %s410
      %p422 = scmp.eq.s32.totalorder %s38, 1
      %p423 = por %p421, %p422
      %p425 = scmp.ne.s32.totalorder %s410, %s424
      %p426 = scmp.eq.s32.totalorder %s38, 0
      %p427 = por %p425, %p426
      %s429 = sadd.s32 %s428, 1
      %p432 = scmp.eq.s32.totalorder %s32, 1
      %p433 = scmp.ne.s32.totalorder %s428, %s430
      %p434 = scmp.eq.s32.totalorder %s32, 0
      %p435 = por %p433, %p434
      %p436 = scmp.ne.s32.totalorder %s428, %s430
      %p437 = scmp.eq.s32.totalorder %s37, 1
      %p438 = por %p436, %p437
      %p439 = scmp.ne.s32.totalorder %s430, %s431
      %p440 = scmp.eq.s32.totalorder %s37, 0
      %p441 = por %p439, %p440
      %p442 = scmp.ne.s32.totalorder %s430, %s431
      %p443 = scmp.eq.s32.totalorder %s38, 1
      %p444 = por %p442, %p443
      %p446 = scmp.ne.s32.totalorder %s431, %s445
      %p447 = scmp.eq.s32.totalorder %s38, 0
      %p448 = por %p446, %p447
      %s449 = ssub.s32 %s32, %s39
      %p450 = scmp.eq.s32.totalorder %s449, 0
      %s452 = sadd.s32 %s451, 1
      %s453 = scalar_select %p450, %s451, %s452
      %p456 = pneg %p450
      %p457 = scmp.eq.s32.totalorder %s32, 1
      %p458 = por %p456, %p457
      %p459 = scmp.ne.s32.totalorder %s451, %s454
      %p460 = scmp.eq.s32.totalorder %s32, 0
      %p461 = por %p459, %p460
      %p462 = scmp.ne.s32.totalorder %s451, %s454
      %p463 = scmp.eq.s32.totalorder %s37, 1
      %p464 = por %p462, %p463
      %p465 = scmp.ne.s32.totalorder %s454, %s455
      %p466 = scmp.eq.s32.totalorder %s37, 0
      %p467 = por %p465, %p466
      %p468 = scmp.ne.s32.totalorder %s454, %s455
      %p469 = scmp.eq.s32.totalorder %s38, 1
      %p470 = por %p468, %p469
      %p472 = scmp.ne.s32.totalorder %s455, %s471
      %p473 = scmp.eq.s32.totalorder %s38, 0
      %p474 = por %p472, %p473
      %s475 = ssub.s32 %s32, %s39
      %p476 = scmp.eq.s32.totalorder %s475, 0
      %s478 = sadd.s32 %s477, 1
      %s479 = scalar_select %p476, %s477, %s478
      %p482 = pneg %p476
      %p483 = scmp.eq.s32.totalorder %s32, 1
      %p484 = por %p482, %p483
      %p485 = scmp.ne.s32.totalorder %s477, %s480
      %p486 = scmp.eq.s32.totalorder %s32, 0
      %p487 = por %p485, %p486
      %p488 = scmp.ne.s32.totalorder %s477, %s480
      %p489 = scmp.eq.s32.totalorder %s37, 1
      %p490 = por %p488, %p489
      %p491 = scmp.ne.s32.totalorder %s480, %s481
      %p492 = scmp.eq.s32.totalorder %s37, 0
      %p493 = por %p491, %p492
      %p494 = scmp.ne.s32.totalorder %s480, %s481
      %p495 = scmp.eq.s32.totalorder %s38, 1
      %p496 = por %p494, %p495
      %p498 = scmp.ne.s32.totalorder %s481, %s497
      %p499 = scmp.eq.s32.totalorder %s38, 0
      %p500 = por %p498, %p499
      %p501 = scmp.le.s32.totalorder 1, %s32
      %p502 = scmp.lt.s32.totalorder %s32, 3
      %p503 = pnand %p501, %p502
      %p504 = pneg %p503
      // Predicated region
      $region9: #{_forward_pallas.1} parent=5 // pred_check
        _
      $region10: #{_forward_pallas.1} parent=5 // pred_check_branch
        %506 = sbr.rel (%p503) target = $region12
      $region11: #{_forward_pallas.1} parent=5 // pred_region
        %s507 = ssub.s32 %s32, 1
        // Predicated region
        $region13: #{_forward_pallas.1} parent=11 // pred_check
          %p508 = pneg %p105
        $region14: #{_forward_pallas.1} parent=11 // pred_check_branch
          %510 = sbr.rel (%p508) target = $region16
        $region15: #{_forward_pallas.1} parent=11 // pred_region
          _
        $region16: #{_forward_pallas.1} parent=11 // pred_fallthru
          _
        // Predicated region
        $region17: #{_forward_pallas.1} parent=11 // pred_check
          %p511 = pneg %p126
        $region18: #{_forward_pallas.1} parent=11 // pred_check_branch
          %513 = sbr.rel (%p511) target = $region20
        $region19: #{_forward_pallas.1} parent=11 // pred_region
          %s515 = ssub.s32 4096, 4096
          %516 = vsyncadd [#allocation4], %s515
          %s517 = sshll.u32 [#allocation3], 4
          %s518 = int_to_ptr.vmem [resolvable:$true] %s517
          %523 = dma.hbm_to_vmem [thread:$0]  %s3, 4096, %s518, [#allocation4], 128, 128, 8
        $region20: #{_forward_pallas.1} parent=11 // pred_fallthru
          _
        // Predicated region
        $region21: #{_forward_pallas.1} parent=11 // pred_check
          %p524 = pneg %p147
        $region22: #{_forward_pallas.1} parent=11 // pred_check_branch
          %526 = sbr.rel (%p524) target = $region24
        $region23: #{_forward_pallas.1} parent=11 // pred_region
          _
        $region24: #{_forward_pallas.1} parent=11 // pred_fallthru
          _
        // Predicated region
        $region25: #{_forward_pallas.1} parent=11 // pred_check
          %p527 = pneg %p168
        $region26: #{_forward_pallas.1} parent=11 // pred_check_branch
          %529 = sbr.rel (%p527) target = $region28
        $region27: #{_forward_pallas.1} parent=11 // pred_region
          _
        $region28: #{_forward_pallas.1} parent=11 // pred_fallthru
          _
        // Predicated region
        $region29: #{_forward_pallas.1} parent=11 // pred_check
          %p530 = pneg %p189
        $region30: #{_forward_pallas.1} parent=11 // pred_check_branch
          %532 = sbr.rel (%p530) target = $region32
        $region31: #{_forward_pallas.1} parent=11 // pred_region
          %s534 = ssub.s32 12288, 12288
          %535 = vsyncadd [#allocation6], %s534
          %s536 = sshll.u32 [#allocation5], 4
          %s537 = int_to_ptr.vmem [resolvable:$true] %s536
          %542 = dma.hbm_to_vmem [thread:$0]  %s6, 12288, %s537, [#allocation6], 128, 128, 8
        $region32: #{_forward_pallas.1} parent=11 // pred_fallthru
          _
        // Predicated region
        $region33: #{_forward_pallas.1} parent=11 // pred_check
          %p543 = pneg %p210
        $region34: #{_forward_pallas.1} parent=11 // pred_check_branch
          %545 = sbr.rel (%p543) target = $region36
        $region35: #{_forward_pallas.1} parent=11 // pred_region
          _
        $region36: #{_forward_pallas.1} parent=11 // pred_fallthru
          _
        // Predicated region
        $region37: #{_forward_pallas.1} parent=11 // pred_check
          %p546 = pneg %p231
        $region38: #{_forward_pallas.1} parent=11 // pred_check_branch
          %548 = sbr.rel (%p546) target = $region40
        $region39: #{_forward_pallas.1} parent=11 // pred_region
          _
        $region40: #{_forward_pallas.1} parent=11 // pred_fallthru
          _
        // Predicated region
        $region41: #{_forward_pallas.1} parent=11 // pred_check
          %p549 = pneg %p252
        $region42: #{_forward_pallas.1} parent=11 // pred_check_branch
          %551 = sbr.rel (%p549) target = $region44
        $region43: #{_forward_pallas.1} parent=11 // pred_region
          _
        $region44: #{_forward_pallas.1} parent=11 // pred_fallthru
          _
        // Predicated region
        $region45: #{_forward_pallas.1} parent=11 // pred_check
          %p552 = pneg %p273
        $region46: #{_forward_pallas.1} parent=11 // pred_check_branch
          %554 = sbr.rel (%p552) target = $region48
        $region47: #{_forward_pallas.1} parent=11 // pred_region
          %s556 = ssub.s32 4096, 4096
          %557 = vsyncadd [#allocation6], %s556
          %s558 = sshll.u32 [#allocation7], 4
          %s559 = int_to_ptr.vmem [resolvable:$true] %s558
          %564 = dma.hbm_to_vmem [thread:$0]  %s10, 4096, %s559, [#allocation6], 128, 128, 8
        $region48: #{_forward_pallas.1} parent=11 // pred_fallthru
          _
        // Predicated region
        $region49: #{_forward_pallas.1} parent=11 // pred_check
          %p565 = pneg %p294
        $region50: #{_forward_pallas.1} parent=11 // pred_check_branch
          %567 = sbr.rel (%p565) target = $region52
        $region51: #{_forward_pallas.1} parent=11 // pred_region
          %s569 = ssub.s32 2176, 2176
          %570 = vsyncadd [#allocation9], %s569
          %s571 = sshll.u32 [#allocation8], 4
          %s572 = int_to_ptr.vmem [resolvable:$true] %s571
          %577 = dma.hbm_to_vmem [thread:$0]  %s11, 2176, %s572, [#allocation9], 128, 128, 8
        $region52: #{_forward_pallas.1} parent=11 // pred_fallthru
          _
        // Predicated region
        $region53: #{_forward_pallas.1} parent=11 // pred_check
          %p578 = pneg %p315
        $region54: #{_forward_pallas.1} parent=11 // pred_check_branch
          %580 = sbr.rel (%p578) target = $region56
        $region55: #{_forward_pallas.1} parent=11 // pred_region
          _
        $region56: #{_forward_pallas.1} parent=11 // pred_fallthru
          _
        // Predicated region
        $region57: #{_forward_pallas.1} parent=11 // pred_check
          %p581 = pneg %p336
        $region58: #{_forward_pallas.1} parent=11 // pred_check_branch
          %583 = sbr.rel (%p581) target = $region60
        $region59: #{_forward_pallas.1} parent=11 // pred_region
          _
        $region60: #{_forward_pallas.1} parent=11 // pred_fallthru
          _
        // Predicated region
        $region61: #{_forward_pallas.1} parent=11 // pred_check
          %p584 = pneg %p357
        $region62: #{_forward_pallas.1} parent=11 // pred_check_branch
          %586 = sbr.rel (%p584) target = $region64
        $region63: #{_forward_pallas.1} parent=11 // pred_region
          _
        $region64: #{_forward_pallas.1} parent=11 // pred_fallthru
          _
        // Predicated region
        $region65: #{_forward_pallas.1} parent=11 // pred_check
          %p587 = pneg %p378
        $region66: #{_forward_pallas.1} parent=11 // pred_check_branch
          %589 = sbr.rel (%p587) target = $region68
        $region67: #{_forward_pallas.1} parent=11 // pred_region
          _
        $region68: #{_forward_pallas.1} parent=11 // pred_fallthru
          _
        // Predicated region
        $region69: #{_forward_pallas.1} parent=11 // pred_check
          %p590 = pneg %p399
        $region70: #{_forward_pallas.1} parent=11 // pred_check_branch
          %592 = sbr.rel (%p590) target = $region72
        $region71: #{_forward_pallas.1} parent=11 // pred_region
          _
        $region72: #{_forward_pallas.1} parent=11 // pred_fallthru
          _
        // Predicated region
        $region73: #{_forward_pallas.1} parent=11 // pred_check
          %p593 = pneg %p420
        $region74: #{_forward_pallas.1} parent=11 // pred_check_branch
          %595 = sbr.rel (%p593) target = $region76
        $region75: #{_forward_pallas.1} parent=11 // pred_region
          _
        $region76: #{_forward_pallas.1} parent=11 // pred_fallthru
          _
        // Predicated region
        $region77: #{_forward_pallas.1} parent=11 // pred_check
          %p596 = pneg %p441
        $region78: #{_forward_pallas.1} parent=11 // pred_check_branch
          %598 = sbr.rel (%p596) target = $region80
        $region79: #{_forward_pallas.1} parent=11 // pred_region
          _
        $region80: #{_forward_pallas.1} parent=11 // pred_fallthru
          _
      $region12: #{_forward_pallas.1} parent=5 // pred_fallthru
        _
      %p599 = scmp.lt.s32.totalorder %s32, 2
      // Predicated region
      $region81: #{_forward_pallas.1} parent=5 // pred_check
        %p600 = pneg %p599
      $region82: #{_forward_pallas.1} parent=5 // pred_check_branch
        %602 = sbr.rel (%p600) target = $region84
      $region83: #{_forward_pallas.1} parent=5 // pred_region
        // Predicated region
        $region85: #{_forward_pallas.1} parent=83 // pred_check
          %p603 = pneg %p52
        $region86: #{_forward_pallas.1} parent=83 // pred_check_branch
          %605 = sbr.rel (%p603) target = $region88
        $region87: #{_forward_pallas.1} parent=83 // pred_region
          %p606 = scmp.lt.s32.totalorder %s32, 1
          %s607 = scalar_select %p606, %s32, 1
          %s608 = smul.addr %s607, 2
          %s609 = smul.addr %s608, 8
          %s610 = scalar_lea.vmem %s0, %s609
        $region88: #{_forward_pallas.1} parent=83 // pred_fallthru
          _
        // Predicated region
        $region89: #{_forward_pallas.1} parent=83 // pred_check
          %p611 = pneg %p78
        $region90: #{_forward_pallas.1} parent=83 // pred_check_branch
          %613 = sbr.rel (%p611) target = $region92
        $region91: #{_forward_pallas.1} parent=83 // pred_region
          %p614 = scmp.lt.s32.totalorder %s32, 1
          %s615 = scalar_select %p614, %s32, 1
          %s616 = smul.addr %s615, 2
          %s617 = smul.addr %s616, 8
          %s618 = scalar_lea.vmem %s1, %s617
        $region92: #{_forward_pallas.1} parent=83 // pred_fallthru
          _
      $region84: #{_forward_pallas.1} parent=5 // pred_fallthru
        _
      %p619 = scmp.le.s32.totalorder 1, %s32
      %p620 = scmp.lt.s32.totalorder %s32, 3
      %p621 = pnand %p619, %p620
      %p622 = pneg %p621
      // Predicated region
      $region93: #{_forward_pallas.1} parent=5 // pred_check
        _
      $region94: #{_forward_pallas.1} parent=5 // pred_check_branch
        %624 = sbr.rel (%p621) target = $region96
      $region95: #{_forward_pallas.1} parent=5 // pred_region
        %s625 = ssub.s32 %s32, 1
        // Predicated region
        $region97: #{_forward_pallas.1} parent=95 // pred_check
          %p626 = pneg %p126
        $region98: #{_forward_pallas.1} parent=95 // pred_check_branch
          %628 = sbr.rel (%p626) target = $region100
        $region99: #{_forward_pallas.1} parent=95 // pred_region
          %629 = dma.done [#allocation4], 4096
        $region100: #{_forward_pallas.1} parent=95 // pred_fallthru
          _
        // Predicated region
        $region101: #{_forward_pallas.1} parent=95 // pred_check
          %p630 = pneg %p189
        $region102: #{_forward_pallas.1} parent=95 // pred_check_branch
          %632 = sbr.rel (%p630) target = $region104
        $region103: #{_forward_pallas.1} parent=95 // pred_region
          %633 = dma.done [#allocation6], 12288
        $region104: #{_forward_pallas.1} parent=95 // pred_fallthru
          _
        // Predicated region
        $region105: #{_forward_pallas.1} parent=95 // pred_check
          %p634 = pneg %p273
        $region106: #{_forward_pallas.1} parent=95 // pred_check_branch
          %636 = sbr.rel (%p634) target = $region108
        $region107: #{_forward_pallas.1} parent=95 // pred_region
          %637 = dma.done [#allocation6], 4096
        $region108: #{_forward_pallas.1} parent=95 // pred_fallthru
          _
        // Predicated region
        $region109: #{_forward_pallas.1} parent=95 // pred_check
          %p638 = pneg %p294
        $region110: #{_forward_pallas.1} parent=95 // pred_check_branch
          %640 = sbr.rel (%p638) target = $region112
        $region111: #{_forward_pallas.1} parent=95 // pred_region
          %641 = dma.done [#allocation9], 2176
        $region112: #{_forward_pallas.1} parent=95 // pred_fallthru
          _
        %p642 = scmp.lt.s32.totalorder %s37, 1
        %s643 = scalar_select %p642, %s37, 1
        %s644 = smul.addr %s643, 2
        %s645 = smul.addr %s644, 8
        %s646 = scalar_lea.vmem %s0, %s645
        %p647 = pneg %p58
        %p648 = pneg %p55
        %p649 = scmp.lt.s32.totalorder %s37, 1
        %s650 = scalar_select %p649, %s37, 1
        %s651 = smul.addr %s650, 2
        %s652 = smul.addr %s651, 8
        %s653 = scalar_lea.vmem %s1, %s652
        %p654 = pneg %p84
        %p655 = pneg %p81
        %p656 = pneg %p105
        %p657 = pneg %p102
        %p658 = pneg %p126
        %p659 = pneg %p123
        %p660 = pneg %p147
        %p661 = pneg %p144
        %p662 = pneg %p168
        %p663 = pneg %p165
        %p664 = pneg %p189
        %p665 = pneg %p186
        %p666 = pneg %p210
        %p667 = pneg %p207
        %p668 = pneg %p231
        %p669 = pneg %p228
        %p670 = pneg %p252
        %p671 = pneg %p249
        %p672 = pneg %p273
        %p673 = pneg %p270
        %p674 = pneg %p294
        %p675 = pneg %p291
        %p676 = pneg %p315
        %p677 = pneg %p312
        %p678 = pneg %p336
        %p679 = pneg %p333
        %p680 = pneg %p357
        %p681 = pneg %p354
        %p682 = pneg %p378
        %p683 = pneg %p375
        %p684 = pneg %p399
        %p685 = pneg %p396
        %p686 = pneg %p420
        %p687 = pneg %p417
        %p688 = pneg %p441
        %p689 = pneg %p438
        %p690 = pneg %p467
        %p691 = pneg %p464
        %p692 = scmp.lt.s32.totalorder %s37, 1
        %s693 = scalar_select %p692, %s37, 1
        %s694 = smul.addr %s693, 2
        %s695 = smul.addr %s694, 8
        %s696 = scalar_lea.vmem %s19, %s695
        %p697 = pneg %p493
        %p698 = pneg %p490
        %p699 = scmp.lt.s32.totalorder %s37, 1
        %s700 = scalar_select %p699, %s37, 1
        %s701 = smul.addr %s700, 8
        %s702 = scalar_lea.vmem %s20, %s701
        %p703 = scmp.lt.s32.totalorder %s37, 1
        %s704 = scalar_select %p703, %s37, 1
        %s705 = smul.addr %s704, 2
        %s706 = smul.addr %s705, 8
        %s707 = scalar_lea.vmem %s0, %s706
        %p708 = scmp.lt.s32.totalorder %s37, 1
        %s709 = scalar_select %p708, %s37, 1
        %s710 = smul.addr %s709, 2
        %s711 = smul.addr %s710, 8
        %s712 = scalar_lea.vmem %s1, %s711
        %p713 = scmp.lt.s32.totalorder %s37, 1
        %s714 = scalar_select %p713, %s37, 1
        %s715 = smul.addr %s714, 2
        %s716 = smul.addr %s715, 8
        %s717 = scalar_lea.vmem %s19, %s716
        %p718 = scmp.lt.s32.totalorder %s37, 1
        %s719 = scalar_select %p718, %s37, 1
        %s720 = smul.addr %s719, 8
        %s721 = scalar_lea.vmem %s20, %s720
        %v723 = vld [vmem:[%s707] sm:$0xff]
        %v724 = vld [vmem:[%s707 + $0x8] sm:$0xff]
        %v725 = vpack.c.bf16 %v723, %v723
        %v726 = vpack.c.bf16 %v724, %v724
        %v727 = vld [vmem:[%s712] sm:$0xff]
        %v728 = vld [vmem:[%s712 + $0x8] sm:$0xff]
        %v729 = vpack.c.bf16 %v727, %v727
        %v730 = vpack.c.bf16 %v728, %v728
        %v731 = vld [vmem:[#allocation3] sm:$0xff]
        %v732 = vld [vmem:[#allocation3 + $0x8] sm:$0xff]
        %v733 = vld [vmem:[#allocation3 + $0x10] sm:$0xff]
        %v734 = vld [vmem:[#allocation3 + $0x18] sm:$0xff]
        %v735 = vld [vmem:[#allocation3 + $0x20] sm:$0xff]
        %v736 = vld [vmem:[#allocation3 + $0x28] sm:$0xff]
        %v737 = vld [vmem:[#allocation3 + $0x30] sm:$0xff]
        %v738 = vld [vmem:[#allocation3 + $0x38] sm:$0xff]
        %v739 = vld [vmem:[#allocation3 + $0x40] sm:$0xff]
        %v740 = vld [vmem:[#allocation3 + $0x48] sm:$0xff]
        %v741 = vld [vmem:[#allocation3 + $0x50] sm:$0xff]
        %v742 = vld [vmem:[#allocation3 + $0x58] sm:$0xff]
        %v743 = vld [vmem:[#allocation3 + $0x60] sm:$0xff]
        %v744 = vld [vmem:[#allocation3 + $0x68] sm:$0xff]
        %v745 = vld [vmem:[#allocation3 + $0x70] sm:$0xff]
        %v746 = vld [vmem:[#allocation3 + $0x78] sm:$0xff]
        %v747 = vld [vmem:[#allocation3 + $0x80] sm:$0xff]
        %v748 = vld [vmem:[#allocation3 + $0x88] sm:$0xff]
        %v749 = vld [vmem:[#allocation3 + $0x90] sm:$0xff]
        %v750 = vld [vmem:[#allocation3 + $0x98] sm:$0xff]
        %v751 = vld [vmem:[#allocation3 + $0xa0] sm:$0xff]
        %v752 = vld [vmem:[#allocation3 + $0xa8] sm:$0xff]
        %v753 = vld [vmem:[#allocation3 + $0xb0] sm:$0xff]
        %v754 = vld [vmem:[#allocation3 + $0xb8] sm:$0xff]
        %v755 = vld [vmem:[#allocation3 + $0xc0] sm:$0xff]
        %v756 = vld [vmem:[#allocation3 + $0xc8] sm:$0xff]
        %v757 = vld [vmem:[#allocation3 + $0xd0] sm:$0xff]
        %v758 = vld [vmem:[#allocation3 + $0xd8] sm:$0xff]
        %v759 = vld [vmem:[#allocation3 + $0xe0] sm:$0xff]
        %v760 = vld [vmem:[#allocation3 + $0xe8] sm:$0xff]
        %v761 = vld [vmem:[#allocation3 + $0xf0] sm:$0xff]
        %v762 = vld [vmem:[#allocation3 + $0xf8] sm:$0xff]
        %v763 = vld [vmem:[%s4] sm:$0xff]
        %v764 = vld [vmem:[%s4 + $0x8] sm:$0xff]
        %v765 = vld [vmem:[%s4 + $0x10] sm:$0xff]
        %v766 = vld [vmem:[%s4 + $0x18] sm:$0xff]
        %v767 = vld [vmem:[%s4 + $0x20] sm:$0xff]
        %v768 = vld [vmem:[%s4 + $0x28] sm:$0xff]
        %v769 = vld [vmem:[%s4 + $0x30] sm:$0xff]
        %v770 = vld [vmem:[%s4 + $0x38] sm:$0xff]
        %v771 = vld [vmem:[%s4 + $0x40] sm:$0xff]
        %v772 = vld [vmem:[%s4 + $0x48] sm:$0xff]
        %v773 = vld [vmem:[%s4 + $0x50] sm:$0xff]
        %v774 = vld [vmem:[%s4 + $0x58] sm:$0xff]
        %v775 = vld [vmem:[%s4 + $0x60] sm:$0xff]
        %v776 = vld [vmem:[%s4 + $0x68] sm:$0xff]
        %v777 = vld [vmem:[%s4 + $0x70] sm:$0xff]
        %v778 = vld [vmem:[%s4 + $0x78] sm:$0xff]
        %v779 = vld [vmem:[%s4 + $0x80] sm:$0xff]
        %v797 = vunpack.c.l.b16 %v763
        %v798 = vunpack.c.h.b16 %v763
        %v799 = vunpack.c.l.b16 %v764
        %v800 = vunpack.c.h.b16 %v764
        %v801 = vunpack.c.l.b16 %v765
        %v802 = vunpack.c.h.b16 %v765
        %v803 = vunpack.c.l.b16 %v766
        %v804 = vunpack.c.h.b16 %v766
        %v805 = vunpack.c.l.b16 %v767
        %v806 = vunpack.c.h.b16 %v767
        %v807 = vunpack.c.l.b16 %v768
        %v808 = vunpack.c.h.b16 %v768
        %v809 = vunpack.c.l.b16 %v769
        %v810 = vunpack.c.h.b16 %v769
        %v811 = vunpack.c.l.b16 %v770
        %v812 = vunpack.c.h.b16 %v770
        %v813 = vunpack.c.l.b16 %v771
        %v814 = vunpack.c.h.b16 %v771
        %v815 = vunpack.c.l.b16 %v772
        %v816 = vunpack.c.h.b16 %v772
        %v817 = vunpack.c.l.b16 %v773
        %v818 = vunpack.c.h.b16 %v773
        %v819 = vunpack.c.l.b16 %v774
        %v820 = vunpack.c.h.b16 %v774
        %v821 = vunpack.c.l.b16 %v775
        %v822 = vunpack.c.h.b16 %v775
        %v823 = vunpack.c.l.b16 %v776
        %v824 = vunpack.c.h.b16 %v776
        %v825 = vunpack.c.l.b16 %v777
        %v826 = vunpack.c.h.b16 %v777
        %v827 = vunpack.c.l.b16 %v778
        %v828 = vunpack.c.h.b16 %v778
        %v829 = vunpack.c.l.b16 %v779
        %v830 = vunpack.c.h.b16 %v779
        %v831 = vpack.c.b16 %v799, %v797
        %v832 = vpack.c.b16 %v800, %v798
        %v833 = vpack.c.b16 %v803, %v801
        %v834 = vpack.c.b16 %v804, %v802
        %v835 = vpack.c.b16 %v807, %v805
        %v836 = vpack.c.b16 %v808, %v806
        %v837 = vpack.c.b16 %v811, %v809
        %v838 = vpack.c.b16 %v812, %v810
        %v839 = vpack.c.b16 %v815, %v813
        %v840 = vpack.c.b16 %v816, %v814
        %v841 = vpack.c.b16 %v819, %v817
        %v842 = vpack.c.b16 %v820, %v818
        %v843 = vpack.c.b16 %v823, %v821
        %v844 = vpack.c.b16 %v824, %v822
        %v845 = vpack.c.b16 %v827, %v825
        %v846 = vpack.c.b16 %v828, %v826
        %v847 = vpack.c.b16 %v829, %v829
        %v848 = vpack.c.b16 %v830, %v830
        %vm865 = vcmask 64512
        %v867 = vsel %vm865, %v730, 0
        %vm869 = vcmask 1043456
        %v871 = vsel %vm869, %v847, 0
        %v874 = vsel %vm869, %v848, 0
        %876 = vmatprep.subr.bf16.mxu0 %v846
        %877 = vmatpush1.bf16.msra.mxu0 %v845
        %878 = vmatprep.subr.bf16.mxu0 %v844
        %879 = vmatpush1.bf16.msra.mxu0 %v843
        %880 = vmatprep.subr.bf16.mxu0 %v842
        %881 = vmatpush1.bf16.msra.mxu0 %v841
        %882 = vmatprep.subr.bf16.mxu0 %v840
        %883 = vmatpush1.bf16.msra.mxu0 %v839
        %884 = vmatprep.subr.bf16.mxu0 %v838
        %885 = vmatpush1.bf16.msra.mxu0 %v837
        %886 = vmatprep.subr.bf16.mxu0 %v836
        %887 = vmatpush1.bf16.msra.mxu0 %v835
        %888 = vmatprep.subr.bf16.mxu0 %v834
        %889 = vmatpush1.bf16.msra.mxu0 %v833
        %890 = vmatprep.subr.bf16.mxu0 %v832
        %891 = vmatpush1.bf16.msra.mxu0 %v831
        %892 = vmatprep.subr.bf16.mxu0 0
        %893 = vmatpush2.bf16.msra.mxu0 0
        %894 = vmatprep.subr.bf16.mxu0 0
        %895 = vmatpush2.bf16.msra.mxu0 0
        %896 = vmatprep.subr.bf16.mxu0 0
        %897 = vmatpush2.bf16.msra.mxu0 0
        %898 = vmatprep.subr.bf16.mxu0 0
        %899 = vmatpush2.bf16.msra.mxu0 0
        %900 = vmatprep.subr.bf16.mxu0 0
        %901 = vmatpush2.bf16.msra.mxu0 0
        %902 = vmatprep.subr.bf16.mxu0 0
        %903 = vmatpush2.bf16.msra.mxu0 0
        %904 = vmatprep.subr.bf16.mxu0 0
        %905 = vmatpush2.bf16.msra.mxu0 0
        %906 = vmatprep.subr.bf16.mxu0 %v874
        %907 = vmatpush2.bf16.msra.mxu0 %v871
        %908 = vmatprep.mubr.bf16.mxu0 %v867
        %909 = vmatmul.mubr.bf16.gmra.mxu0 %v729
        %v910 = vpop.f32.mrf.mxu0
        %v911 = vadd.f32 0.0, %v910
        %v912 = vpop.f32.mrf.mxu0
        %v913 = vadd.f32 0.0, %v912
        %v914 = vpop.f32.mrf.mxu0
        %v915 = vpop.f32.mrf.mxu0
        %916 = vdwg.mxu0
        %v949 = vunpack.c.l.b16 %v731
        %v950 = vunpack.c.h.b16 %v731
        %v951 = vunpack.c.l.b16 %v732
        %v952 = vunpack.c.h.b16 %v732
        %v953 = vunpack.c.l.b16 %v733
        %v954 = vunpack.c.h.b16 %v733
        %v955 = vunpack.c.l.b16 %v734
        %v956 = vunpack.c.h.b16 %v734
        %v957 = vunpack.c.l.b16 %v735
        %v958 = vunpack.c.h.b16 %v735
        %v959 = vunpack.c.l.b16 %v736
        %v960 = vunpack.c.h.b16 %v736
        %v961 = vunpack.c.l.b16 %v737
        %v962 = vunpack.c.h.b16 %v737
        %v963 = vunpack.c.l.b16 %v738
        %v964 = vunpack.c.h.b16 %v738
        %v965 = vunpack.c.l.b16 %v739
        %v966 = vunpack.c.h.b16 %v739
        %v967 = vunpack.c.l.b16 %v740
        %v968 = vunpack.c.h.b16 %v740
        %v969 = vunpack.c.l.b16 %v741
        %v970 = vunpack.c.h.b16 %v741
        %v971 = vunpack.c.l.b16 %v742
        %v972 = vunpack.c.h.b16 %v742
        %v973 = vunpack.c.l.b16 %v743
        %v974 = vunpack.c.h.b16 %v743
        %v975 = vunpack.c.l.b16 %v744
        %v976 = vunpack.c.h.b16 %v744
        %v977 = vunpack.c.l.b16 %v745
        %v978 = vunpack.c.h.b16 %v745
        %v979 = vunpack.c.l.b16 %v746
        %v980 = vunpack.c.h.b16 %v746
        %v981 = vunpack.c.l.b16 %v747
        %v982 = vunpack.c.h.b16 %v747
        %v983 = vunpack.c.l.b16 %v748
        %v984 = vunpack.c.h.b16 %v748
        %v985 = vunpack.c.l.b16 %v749
        %v986 = vunpack.c.h.b16 %v749
        %v987 = vunpack.c.l.b16 %v750
        %v988 = vunpack.c.h.b16 %v750
        %v989 = vunpack.c.l.b16 %v751
        %v990 = vunpack.c.h.b16 %v751
        %v991 = vunpack.c.l.b16 %v752
        %v992 = vunpack.c.h.b16 %v752
        %v993 = vunpack.c.l.b16 %v753
        %v994 = vunpack.c.h.b16 %v753
        %v995 = vunpack.c.l.b16 %v754
        %v996 = vunpack.c.h.b16 %v754
        %v997 = vunpack.c.l.b16 %v755
        %v998 = vunpack.c.h.b16 %v755
        %v999 = vunpack.c.l.b16 %v756
        %v1000 = vunpack.c.h.b16 %v756
        %v1001 = vunpack.c.l.b16 %v757
        %v1002 = vunpack.c.h.b16 %v757
        %v1003 = vunpack.c.l.b16 %v758
        %v1004 = vunpack.c.h.b16 %v758
        %v1005 = vunpack.c.l.b16 %v759
        %v1006 = vunpack.c.h.b16 %v759
        %v1007 = vunpack.c.l.b16 %v760
        %v1008 = vunpack.c.h.b16 %v760
        %v1009 = vunpack.c.l.b16 %v761
        %v1010 = vunpack.c.h.b16 %v761
        %v1011 = vunpack.c.l.b16 %v762
        %v1012 = vunpack.c.h.b16 %v762
        %v1013 = vpack.c.b16 %v951, %v949
        %v1014 = vpack.c.b16 %v952, %v950
        %v1015 = vpack.c.b16 %v955, %v953
        %v1016 = vpack.c.b16 %v956, %v954
        %v1017 = vpack.c.b16 %v959, %v957
        %v1018 = vpack.c.b16 %v960, %v958
        %v1019 = vpack.c.b16 %v963, %v961
        %v1020 = vpack.c.b16 %v964, %v962
        %v1021 = vpack.c.b16 %v967, %v965
        %v1022 = vpack.c.b16 %v968, %v966
        %v1023 = vpack.c.b16 %v971, %v969
        %v1024 = vpack.c.b16 %v972, %v970
        %v1025 = vpack.c.b16 %v975, %v973
        %v1026 = vpack.c.b16 %v976, %v974
        %v1027 = vpack.c.b16 %v979, %v977
        %v1028 = vpack.c.b16 %v980, %v978
        %v1029 = vpack.c.b16 %v983, %v981
        %v1030 = vpack.c.b16 %v984, %v982
        %v1031 = vpack.c.b16 %v987, %v985
        %v1032 = vpack.c.b16 %v988, %v986
        %v1033 = vpack.c.b16 %v991, %v989
        %v1034 = vpack.c.b16 %v992, %v990
        %v1035 = vpack.c.b16 %v995, %v993
        %v1036 = vpack.c.b16 %v996, %v994
        %v1037 = vpack.c.b16 %v999, %v997
        %v1038 = vpack.c.b16 %v1000, %v998
        %v1039 = vpack.c.b16 %v1003, %v1001
        %v1040 = vpack.c.b16 %v1004, %v1002
        %v1041 = vpack.c.b16 %v1007, %v1005
        %v1042 = vpack.c.b16 %v1008, %v1006
        %v1043 = vpack.c.b16 %v1011, %v1009
        %v1044 = vpack.c.b16 %v1012, %v1010
        %1077 = vmatprep.subr.bf16.mxu0 %v1028
        %1078 = vmatpush1.bf16.msra.mxu0 %v1027
        %1079 = vmatprep.subr.bf16.mxu0 %v1026
        %1080 = vmatpush1.bf16.msra.mxu0 %v1025
        %1081 = vmatprep.subr.bf16.mxu0 %v1024
        %1082 = vmatpush1.bf16.msra.mxu0 %v1023
        %1083 = vmatprep.subr.bf16.mxu0 %v1022
        %1084 = vmatpush1.bf16.msra.mxu0 %v1021
        %1085 = vmatprep.subr.bf16.mxu0 %v1020
        %1086 = vmatpush1.bf16.msra.mxu0 %v1019
        %1087 = vmatprep.subr.bf16.mxu0 %v1018
        %1088 = vmatpush1.bf16.msra.mxu0 %v1017
        %1089 = vmatprep.subr.bf16.mxu0 %v1016
        %1090 = vmatpush1.bf16.msra.mxu0 %v1015
        %1091 = vmatprep.subr.bf16.mxu0 %v1014
        %1092 = vmatpush1.bf16.msra.mxu0 %v1013
        %1093 = vmatprep.subr.bf16.mxu0 %v1044
        %1094 = vmatpush2.bf16.msra.mxu0 %v1043
        %1095 = vmatprep.subr.bf16.mxu0 %v1042
        %1096 = vmatpush2.bf16.msra.mxu0 %v1041
        %1097 = vmatprep.subr.bf16.mxu0 %v1040
        %1098 = vmatpush2.bf16.msra.mxu0 %v1039
        %1099 = vmatprep.subr.bf16.mxu0 %v1038
        %1100 = vmatpush2.bf16.msra.mxu0 %v1037
        %1101 = vmatprep.subr.bf16.mxu0 %v1036
        %1102 = vmatpush2.bf16.msra.mxu0 %v1035
        %1103 = vmatprep.subr.bf16.mxu0 %v1034
        %1104 = vmatpush2.bf16.msra.mxu0 %v1033
        %1105 = vmatprep.subr.bf16.mxu0 %v1032
        %1106 = vmatpush2.bf16.msra.mxu0 %v1031
        %1107 = vmatprep.subr.bf16.mxu0 %v1030
        %1108 = vmatpush2.bf16.msra.mxu0 %v1029
        %1109 = vmatprep.mubr.bf16.mxu0 %v726
        %1110 = vmatmul.mubr.bf16.gmra.mxu0 %v725
        %v1111 = vpop.f32.mrf.mxu0
        %v1112 = vadd.f32 %v911, %v1111
        %v1113 = vpop.f32.mrf.mxu0
        %v1114 = vadd.f32 %v913, %v1113
        %v1115 = vpop.f32.mrf.mxu0
        %v1116 = vpop.f32.mrf.mxu0
        %1117 = vdwg.mxu0
        %v1118 = vld [vmem:[%s5] sm:$0x3]
        %v1120 = vlaneseq
        %v1121 = vshrl.u32 %v1120, 7
        %v1122 = vsub.s32 0, %v1121
        %v1123 = vrot.slane %v1118, %v1122
        %v1124 = vlaneseq
        %v1125 = vshrl.u32 %v1124, 7
        %v1126 = vsub.s32 1, %v1125
        %v1127 = vrot.slane %v1118, %v1126
        %v1130 = vadd.f32 %v1112, %v1123
        %v1131 = vadd.f32 %v1114, %v1127
        %v1132 = vpack.c.bf16 %v1130, %v1130
        %v1133 = vpack.c.bf16 %v1131, %v1131
        %v1134 = vld [vmem:[#allocation5] sm:$0xff]
        %v1135 = vld [vmem:[#allocation5 + $0x8] sm:$0xff]
        %v1136 = vld [vmem:[#allocation5 + $0x10] sm:$0xff]
        %v1137 = vld [vmem:[#allocation5 + $0x18] sm:$0xff]
        %v1138 = vld [vmem:[#allocation5 + $0x20] sm:$0xff]
        %v1139 = vld [vmem:[#allocation5 + $0x28] sm:$0xff]
        %v1140 = vld [vmem:[#allocation5 + $0x30] sm:$0xff]
        %v1141 = vld [vmem:[#allocation5 + $0x38] sm:$0xff]
        %v1142 = vld [vmem:[#allocation5 + $0x40] sm:$0xff]
        %v1143 = vld [vmem:[#allocation5 + $0x48] sm:$0xff]
        %v1144 = vld [vmem:[#allocation5 + $0x50] sm:$0xff]
        %v1145 = vld [vmem:[#allocation5 + $0x58] sm:$0xff]
        %v1146 = vld [vmem:[#allocation5 + $0x60] sm:$0xff]
        %v1147 = vld [vmem:[#allocation5 + $0x68] sm:$0xff]
        %v1148 = vld [vmem:[#allocation5 + $0x70] sm:$0xff]
        %v1149 = vld [vmem:[#allocation5 + $0x78] sm:$0xff]
        %v1150 = vld [vmem:[#allocation5 + $0x80] sm:$0xff]
        %v1151 = vld [vmem:[#allocation5 + $0x88] sm:$0xff]
        %v1152 = vld [vmem:[#allocation5 + $0x90] sm:$0xff]
        %v1153 = vld [vmem:[#allocation5 + $0x98] sm:$0xff]
        %v1154 = vld [vmem:[#allocation5 + $0xa0] sm:$0xff]
        %v1155 = vld [vmem:[#allocation5 + $0xa8] sm:$0xff]
        %v1156 = vld [vmem:[#allocation5 + $0xb0] sm:$0xff]
        %v1157 = vld [vmem:[#allocation5 + $0xb8] sm:$0xff]
        %v1158 = vld [vmem:[#allocation5 + $0xc0] sm:$0xff]
        %v1159 = vld [vmem:[#allocation5 + $0xc8] sm:$0xff]
        %v1160 = vld [vmem:[#allocation5 + $0xd0] sm:$0xff]
        %v1161 = vld [vmem:[#allocation5 + $0xd8] sm:$0xff]
        %v1162 = vld [vmem:[#allocation5 + $0xe0] sm:$0xff]
        %v1163 = vld [vmem:[#allocation5 + $0xe8] sm:$0xff]
        %v1164 = vld [vmem:[#allocation5 + $0xf0] sm:$0xff]
        %v1165 = vld [vmem:[#allocation5 + $0xf8] sm:$0xff]
        %v1166 = vld [vmem:[%s7] sm:$0x3]
        %v1168 = vlaneseq
        %v1169 = vshrl.u32 %v1168, 7
        %v1170 = vsub.s32 0, %v1169
        %v1171 = vrot.slane %v1166, %v1170
        %v1172 = vlaneseq
        %v1173 = vshrl.u32 %v1172, 7
        %v1174 = vsub.s32 1, %v1173
        %v1175 = vrot.slane %v1166, %v1174
        %v1210 = vunpack.c.l.b16 %v1134
        %v1211 = vunpack.c.h.b16 %v1134
        %v1212 = vunpack.c.l.b16 %v1135
        %v1213 = vunpack.c.h.b16 %v1135
        %v1214 = vunpack.c.l.b16 %v1136
        %v1215 = vunpack.c.h.b16 %v1136
        %v1216 = vunpack.c.l.b16 %v1137
        %v1217 = vunpack.c.h.b16 %v1137
        %v1218 = vunpack.c.l.b16 %v1138
        %v1219 = vunpack.c.h.b16 %v1138
        %v1220 = vunpack.c.l.b16 %v1139
        %v1221 = vunpack.c.h.b16 %v1139
        %v1222 = vunpack.c.l.b16 %v1140
        %v1223 = vunpack.c.h.b16 %v1140
        %v1224 = vunpack.c.l.b16 %v1141
        %v1225 = vunpack.c.h.b16 %v1141
        %v1226 = vunpack.c.l.b16 %v1142
        %v1227 = vunpack.c.h.b16 %v1142
        %v1228 = vunpack.c.l.b16 %v1143
        %v1229 = vunpack.c.h.b16 %v1143
        %v1230 = vunpack.c.l.b16 %v1144
        %v1231 = vunpack.c.h.b16 %v1144
        %v1232 = vunpack.c.l.b16 %v1145
        %v1233 = vunpack.c.h.b16 %v1145
        %v1234 = vunpack.c.l.b16 %v1146
        %v1235 = vunpack.c.h.b16 %v1146
        %v1236 = vunpack.c.l.b16 %v1147
        %v1237 = vunpack.c.h.b16 %v1147
        %v1238 = vunpack.c.l.b16 %v1148
        %v1239 = vunpack.c.h.b16 %v1148
        %v1240 = vunpack.c.l.b16 %v1149
        %v1241 = vunpack.c.h.b16 %v1149
        %v1242 = vunpack.c.l.b16 %v1150
        %v1243 = vunpack.c.h.b16 %v1150
        %v1244 = vunpack.c.l.b16 %v1151
        %v1245 = vunpack.c.h.b16 %v1151
        %v1246 = vunpack.c.l.b16 %v1152
        %v1247 = vunpack.c.h.b16 %v1152
        %v1248 = vunpack.c.l.b16 %v1153
        %v1249 = vunpack.c.h.b16 %v1153
        %v1250 = vunpack.c.l.b16 %v1154
        %v1251 = vunpack.c.h.b16 %v1154
        %v1252 = vunpack.c.l.b16 %v1155
        %v1253 = vunpack.c.h.b16 %v1155
        %v1254 = vunpack.c.l.b16 %v1156
        %v1255 = vunpack.c.h.b16 %v1156
        %v1256 = vunpack.c.l.b16 %v1157
        %v1257 = vunpack.c.h.b16 %v1157
        %v1258 = vunpack.c.l.b16 %v1158
        %v1259 = vunpack.c.h.b16 %v1158
        %v1260 = vunpack.c.l.b16 %v1159
        %v1261 = vunpack.c.h.b16 %v1159
        %v1262 = vunpack.c.l.b16 %v1160
        %v1263 = vunpack.c.h.b16 %v1160
        %v1264 = vunpack.c.l.b16 %v1161
        %v1265 = vunpack.c.h.b16 %v1161
        %v1266 = vunpack.c.l.b16 %v1162
        %v1267 = vunpack.c.h.b16 %v1162
        %v1268 = vunpack.c.l.b16 %v1163
        %v1269 = vunpack.c.h.b16 %v1163
        %v1270 = vunpack.c.l.b16 %v1164
        %v1271 = vunpack.c.h.b16 %v1164
        %v1272 = vunpack.c.l.b16 %v1165
        %v1273 = vunpack.c.h.b16 %v1165
        %v1274 = vpack.c.b16 %v1212, %v1210
        %v1275 = vpack.c.b16 %v1213, %v1211
        %v1276 = vpack.c.b16 %v1216, %v1214
        %v1277 = vpack.c.b16 %v1217, %v1215
        %v1278 = vpack.c.b16 %v1220, %v1218
        %v1279 = vpack.c.b16 %v1221, %v1219
        %v1280 = vpack.c.b16 %v1224, %v1222
        %v1281 = vpack.c.b16 %v1225, %v1223
        %v1282 = vpack.c.b16 %v1228, %v1226
        %v1283 = vpack.c.b16 %v1229, %v1227
        %v1284 = vpack.c.b16 %v1232, %v1230
        %v1285 = vpack.c.b16 %v1233, %v1231
        %v1286 = vpack.c.b16 %v1236, %v1234
        %v1287 = vpack.c.b16 %v1237, %v1235
        %v1288 = vpack.c.b16 %v1240, %v1238
        %v1289 = vpack.c.b16 %v1241, %v1239
        %v1290 = vpack.c.b16 %v1244, %v1242
        %v1291 = vpack.c.b16 %v1245, %v1243
        %v1292 = vpack.c.b16 %v1248, %v1246
        %v1293 = vpack.c.b16 %v1249, %v1247
        %v1294 = vpack.c.b16 %v1252, %v1250
        %v1295 = vpack.c.b16 %v1253, %v1251
        %v1296 = vpack.c.b16 %v1256, %v1254
        %v1297 = vpack.c.b16 %v1257, %v1255
        %v1298 = vpack.c.b16 %v1260, %v1258
        %v1299 = vpack.c.b16 %v1261, %v1259
        %v1300 = vpack.c.b16 %v1264, %v1262
        %v1301 = vpack.c.b16 %v1265, %v1263
        %v1302 = vpack.c.b16 %v1268, %v1266
        %v1303 = vpack.c.b16 %v1269, %v1267
        %v1304 = vpack.c.b16 %v1272, %v1270
        %v1305 = vpack.c.b16 %v1273, %v1271
        %1338 = vmatprep.subr.bf16.mxu0 %v1289
        %1339 = vmatpush1.bf16.msra.mxu0 %v1288
        %1340 = vmatprep.subr.bf16.mxu0 %v1287
        %1341 = vmatpush1.bf16.msra.mxu0 %v1286
        %1342 = vmatprep.subr.bf16.mxu0 %v1285
        %1343 = vmatpush1.bf16.msra.mxu0 %v1284
        %1344 = vmatprep.subr.bf16.mxu0 %v1283
        %1345 = vmatpush1.bf16.msra.mxu0 %v1282
        %1346 = vmatprep.subr.bf16.mxu0 %v1281
        %1347 = vmatpush1.bf16.msra.mxu0 %v1280
        %1348 = vmatprep.subr.bf16.mxu0 %v1279
        %1349 = vmatpush1.bf16.msra.mxu0 %v1278
        %1350 = vmatprep.subr.bf16.mxu0 %v1277
        %1351 = vmatpush1.bf16.msra.mxu0 %v1276
        %1352 = vmatprep.subr.bf16.mxu0 %v1275
        %1353 = vmatpush1.bf16.msra.mxu0 %v1274
        %1354 = vmatprep.subr.bf16.mxu0 %v1305
        %1355 = vmatpush2.bf16.msra.mxu0 %v1304
        %1356 = vmatprep.subr.bf16.mxu0 %v1303
        %1357 = vmatpush2.bf16.msra.mxu0 %v1302
        %1358 = vmatprep.subr.bf16.mxu0 %v1301
        %1359 = vmatpush2.bf16.msra.mxu0 %v1300
        %1360 = vmatprep.subr.bf16.mxu0 %v1299
        %1361 = vmatpush2.bf16.msra.mxu0 %v1298
        %1362 = vmatprep.subr.bf16.mxu0 %v1297
        %1363 = vmatpush2.bf16.msra.mxu0 %v1296
        %1364 = vmatprep.subr.bf16.mxu0 %v1295
        %1365 = vmatpush2.bf16.msra.mxu0 %v1294
        %1366 = vmatprep.subr.bf16.mxu0 %v1293
        %1367 = vmatpush2.bf16.msra.mxu0 %v1292
        %1368 = vmatprep.subr.bf16.mxu0 %v1291
        %1369 = vmatpush2.bf16.msra.mxu0 %v1290
        %1370 = vmatprep.mubr.bf16.mxu0 %v1133
        %1371 = vmatmul.mubr.bf16.gmra.mxu0 %v1132
        %v1372 = vpop.f32.mrf.mxu0
        %v1373 = vadd.f32 %v1171, %v1372
        %v1374 = vpop.f32.mrf.mxu0
        %v1375 = vadd.f32 %v1175, %v1374
        %v1376 = vpop.f32.mrf.mxu0
        %v1377 = vpop.f32.mrf.mxu0
        %1378 = vdwg.mxu0
        %v1379 = vrot.slane %v1373, 4
        %v1380 = vadd.f32 %v1373, %v1379
        %v1381 = vrot.slane %v1380, 2
        %v1382 = vadd.f32 %v1380, %v1381
        %v1383 = vrot.slane %v1382, 1
        %v1384 = vadd.f32 %v1382, %v1383
        %v1385 = vrot.slane %v1375, 4
        %v1386 = vadd.f32 %v1375, %v1385
        %v1387 = vrot.slane %v1386, 2
        %v1388 = vadd.f32 %v1386, %v1387
        %v1389 = vrot.slane %v1388, 1
        %v1390 = vadd.f32 %v1388, %v1389
        %v1391 = vmul.f32 %v1373, %v1373
        %v1392 = vmul.f32 %v1375, %v1375
        %v1393 = vrot.slane %v1391, 4
        %v1394 = vadd.f32 %v1391, %v1393
        %v1395 = vrot.slane %v1394, 2
        %v1396 = vadd.f32 %v1394, %v1395
        %v1397 = vrot.slane %v1396, 1
        %v1398 = vadd.f32 %v1396, %v1397
        %v1399 = vrot.slane %v1392, 4
        %v1400 = vadd.f32 %v1392, %v1399
        %v1401 = vrot.slane %v1400, 2
        %v1402 = vadd.f32 %v1400, %v1401
        %v1403 = vrot.slane %v1402, 1
        %v1404 = vadd.f32 %v1402, %v1403
        %v1405 = vmul.f32 %v1384, 0.125
        %v1406 = vmul.f32 %v1390, 0.125
        %v1407 = vmul.f32 %v1398, 0.125
        %v1408 = vmul.f32 %v1404, 0.125
        %v1409 = vmul.f32 %v1405, %v1405
        %v1410 = vmul.f32 %v1406, %v1406
        %v1411 = vsub.f32 %v1407, %v1409
        %v1412 = vsub.f32 %v1408, %v1410
        %v1413 = vmax.f32 %v1411, 0.0
        %v1414 = vmax.f32 %v1412, 0.0
        %v1415 = vsub.f32 %v1373, %v1405
        %v1416 = vsub.f32 %v1375, %v1406
        %v1417 = vadd.f32 %v1413, 1e-05
        %v1418 = vadd.f32 %v1414, 1e-05
        %v1419 = vrsqrt.pop %v1417
        %v1420 = vrsqrt.pop %v1418
        %v1421 = vmul.f32 %v1415, %v1419
        %v1422 = vmul.f32 %v1416, %v1420
        %v1423 = vld [vmem:[%s8] sm:$0x3]
        %v1425 = vlaneseq
        %v1426 = vshrl.u32 %v1425, 7
        %v1427 = vsub.s32 0, %v1426
        %v1428 = vrot.slane %v1423, %v1427
        %v1429 = vlaneseq
        %v1430 = vshrl.u32 %v1429, 7
        %v1431 = vsub.s32 1, %v1430
        %v1432 = vrot.slane %v1423, %v1431
        %v1435 = vmul.f32 %v1428, %v1421
        %v1436 = vmul.f32 %v1432, %v1422
        %v1437 = vld [vmem:[%s9] sm:$0x3]
        %v1439 = vlaneseq
        %v1440 = vshrl.u32 %v1439, 7
        %v1441 = vsub.s32 0, %v1440
        %v1442 = vrot.slane %v1437, %v1441
        %v1443 = vlaneseq
        %v1444 = vshrl.u32 %v1443, 7
        %v1445 = vsub.s32 1, %v1444
        %v1446 = vrot.slane %v1437, %v1445
        %v1449 = vadd.f32 %v1435, %v1442
        %v1450 = vadd.f32 %v1436, %v1446
        %v1451 = vmax.f32 %v1449, 0.0
        %v1452 = vmax.f32 %v1450, 0.0
        %v1453 = vpack.c.bf16 %v1451, %v1451
        %v1454 = vpack.c.bf16 %v1452, %v1452
        %s1455 = scalar_lea.vmem [#allocation5], 256
        %v1456 = vld [vmem:[%s1455] sm:$0xff]
        %v1457 = vld [vmem:[%s1455 + $0x8] sm:$0xff]
        %v1458 = vld [vmem:[%s1455 + $0x10] sm:$0xff]
        %v1459 = vld [vmem:[%s1455 + $0x18] sm:$0xff]
        %v1460 = vld [vmem:[%s1455 + $0x20] sm:$0xff]
        %v1461 = vld [vmem:[%s1455 + $0x28] sm:$0xff]
        %v1462 = vld [vmem:[%s1455 + $0x30] sm:$0xff]
        %v1463 = vld [vmem:[%s1455 + $0x38] sm:$0xff]
        %v1464 = vld [vmem:[%s1455 + $0x40] sm:$0xff]
        %v1465 = vld [vmem:[%s1455 + $0x48] sm:$0xff]
        %v1466 = vld [vmem:[%s1455 + $0x50] sm:$0xff]
        %v1467 = vld [vmem:[%s1455 + $0x58] sm:$0xff]
        %v1468 = vld [vmem:[%s1455 + $0x60] sm:$0xff]
        %v1469 = vld [vmem:[%s1455 + $0x68] sm:$0xff]
        %v1470 = vld [vmem:[%s1455 + $0x70] sm:$0xff]
        %v1471 = vld [vmem:[%s1455 + $0x78] sm:$0xff]
        %v1472 = vld [vmem:[%s1455 + $0x80] sm:$0xff]
        %v1473 = vld [vmem:[%s1455 + $0x88] sm:$0xff]
        %v1474 = vld [vmem:[%s1455 + $0x90] sm:$0xff]
        %v1475 = vld [vmem:[%s1455 + $0x98] sm:$0xff]
        %v1476 = vld [vmem:[%s1455 + $0xa0] sm:$0xff]
        %v1477 = vld [vmem:[%s1455 + $0xa8] sm:$0xff]
        %v1478 = vld [vmem:[%s1455 + $0xb0] sm:$0xff]
        %v1479 = vld [vmem:[%s1455 + $0xb8] sm:$0xff]
        %v1480 = vld [vmem:[%s1455 + $0xc0] sm:$0xff]
        %v1481 = vld [vmem:[%s1455 + $0xc8] sm:$0xff]
        %v1482 = vld [vmem:[%s1455 + $0xd0] sm:$0xff]
        %v1483 = vld [vmem:[%s1455 + $0xd8] sm:$0xff]
        %v1484 = vld [vmem:[%s1455 + $0xe0] sm:$0xff]
        %v1485 = vld [vmem:[%s1455 + $0xe8] sm:$0xff]
        %v1486 = vld [vmem:[%s1455 + $0xf0] sm:$0xff]
        %v1487 = vld [vmem:[%s1455 + $0xf8] sm:$0xff]
        %s1488 = scalar_lea.vmem %s7, 2
        %v1489 = vld [vmem:[%s1488] sm:$0x3]
        %v1491 = vlaneseq
        %v1492 = vshrl.u32 %v1491, 7
        %v1493 = vsub.s32 0, %v1492
        %v1494 = vrot.slane %v1489, %v1493
        %v1495 = vlaneseq
        %v1496 = vshrl.u32 %v1495, 7
        %v1497 = vsub.s32 1, %v1496
        %v1498 = vrot.slane %v1489, %v1497
        %v1533 = vunpack.c.l.b16 %v1456
        %v1534 = vunpack.c.h.b16 %v1456
        %v1535 = vunpack.c.l.b16 %v1457
        %v1536 = vunpack.c.h.b16 %v1457
        %v1537 = vunpack.c.l.b16 %v1458
        %v1538 = vunpack.c.h.b16 %v1458
        %v1539 = vunpack.c.l.b16 %v1459
        %v1540 = vunpack.c.h.b16 %v1459
        %v1541 = vunpack.c.l.b16 %v1460
        %v1542 = vunpack.c.h.b16 %v1460
        %v1543 = vunpack.c.l.b16 %v1461
        %v1544 = vunpack.c.h.b16 %v1461
        %v1545 = vunpack.c.l.b16 %v1462
        %v1546 = vunpack.c.h.b16 %v1462
        %v1547 = vunpack.c.l.b16 %v1463
        %v1548 = vunpack.c.h.b16 %v1463
        %v1549 = vunpack.c.l.b16 %v1464
        %v1550 = vunpack.c.h.b16 %v1464
        %v1551 = vunpack.c.l.b16 %v1465
        %v1552 = vunpack.c.h.b16 %v1465
        %v1553 = vunpack.c.l.b16 %v1466
        %v1554 = vunpack.c.h.b16 %v1466
        %v1555 = vunpack.c.l.b16 %v1467
        %v1556 = vunpack.c.h.b16 %v1467
        %v1557 = vunpack.c.l.b16 %v1468
        %v1558 = vunpack.c.h.b16 %v1468
        %v1559 = vunpack.c.l.b16 %v1469
        %v1560 = vunpack.c.h.b16 %v1469
        %v1561 = vunpack.c.l.b16 %v1470
        %v1562 = vunpack.c.h.b16 %v1470
        %v1563 = vunpack.c.l.b16 %v1471
        %v1564 = vunpack.c.h.b16 %v1471
        %v1565 = vunpack.c.l.b16 %v1472
        %v1566 = vunpack.c.h.b16 %v1472
        %v1567 = vunpack.c.l.b16 %v1473
        %v1568 = vunpack.c.h.b16 %v1473
        %v1569 = vunpack.c.l.b16 %v1474
        %v1570 = vunpack.c.h.b16 %v1474
        %v1571 = vunpack.c.l.b16 %v1475
        %v1572 = vunpack.c.h.b16 %v1475
        %v1573 = vunpack.c.l.b16 %v1476
        %v1574 = vunpack.c.h.b16 %v1476
        %v1575 = vunpack.c.l.b16 %v1477
        %v1576 = vunpack.c.h.b16 %v1477
        %v1577 = vunpack.c.l.b16 %v1478
        %v1578 = vunpack.c.h.b16 %v1478
        %v1579 = vunpack.c.l.b16 %v1479
        %v1580 = vunpack.c.h.b16 %v1479
        %v1581 = vunpack.c.l.b16 %v1480
        %v1582 = vunpack.c.h.b16 %v1480
        %v1583 = vunpack.c.l.b16 %v1481
        %v1584 = vunpack.c.h.b16 %v1481
        %v1585 = vunpack.c.l.b16 %v1482
        %v1586 = vunpack.c.h.b16 %v1482
        %v1587 = vunpack.c.l.b16 %v1483
        %v1588 = vunpack.c.h.b16 %v1483
        %v1589 = vunpack.c.l.b16 %v1484
        %v1590 = vunpack.c.h.b16 %v1484
        %v1591 = vunpack.c.l.b16 %v1485
        %v1592 = vunpack.c.h.b16 %v1485
        %v1593 = vunpack.c.l.b16 %v1486
        %v1594 = vunpack.c.h.b16 %v1486
        %v1595 = vunpack.c.l.b16 %v1487
        %v1596 = vunpack.c.h.b16 %v1487
        %v1597 = vpack.c.b16 %v1535, %v1533
        %v1598 = vpack.c.b16 %v1536, %v1534
        %v1599 = vpack.c.b16 %v1539, %v1537
        %v1600 = vpack.c.b16 %v1540, %v1538
        %v1601 = vpack.c.b16 %v1543, %v1541
        %v1602 = vpack.c.b16 %v1544, %v1542
        %v1603 = vpack.c.b16 %v1547, %v1545
        %v1604 = vpack.c.b16 %v1548, %v1546
        %v1605 = vpack.c.b16 %v1551, %v1549
        %v1606 = vpack.c.b16 %v1552, %v1550
        %v1607 = vpack.c.b16 %v1555, %v1553
        %v1608 = vpack.c.b16 %v1556, %v1554
        %v1609 = vpack.c.b16 %v1559, %v1557
        %v1610 = vpack.c.b16 %v1560, %v1558
        %v1611 = vpack.c.b16 %v1563, %v1561
        %v1612 = vpack.c.b16 %v1564, %v1562
        %v1613 = vpack.c.b16 %v1567, %v1565
        %v1614 = vpack.c.b16 %v1568, %v1566
        %v1615 = vpack.c.b16 %v1571, %v1569
        %v1616 = vpack.c.b16 %v1572, %v1570
        %v1617 = vpack.c.b16 %v1575, %v1573
        %v1618 = vpack.c.b16 %v1576, %v1574
        %v1619 = vpack.c.b16 %v1579, %v1577
        %v1620 = vpack.c.b16 %v1580, %v1578
        %v1621 = vpack.c.b16 %v1583, %v1581
        %v1622 = vpack.c.b16 %v1584, %v1582
        %v1623 = vpack.c.b16 %v1587, %v1585
        %v1624 = vpack.c.b16 %v1588, %v1586
        %v1625 = vpack.c.b16 %v1591, %v1589
        %v1626 = vpack.c.b16 %v1592, %v1590
        %v1627 = vpack.c.b16 %v1595, %v1593
        %v1628 = vpack.c.b16 %v1596, %v1594
        %1661 = vmatprep.subr.bf16.mxu0 %v1612
        %1662 = vmatpush1.bf16.msra.mxu0 %v1611
        %1663 = vmatprep.subr.bf16.mxu0 %v1610
        %1664 = vmatpush1.bf16.msra.mxu0 %v1609
        %1665 = vmatprep.subr.bf16.mxu0 %v1608
        %1666 = vmatpush1.bf16.msra.mxu0 %v1607
        %1667 = vmatprep.subr.bf16.mxu0 %v1606
        %1668 = vmatpush1.bf16.msra.mxu0 %v1605
        %1669 = vmatprep.subr.bf16.mxu0 %v1604
        %1670 = vmatpush1.bf16.msra.mxu0 %v1603
        %1671 = vmatprep.subr.bf16.mxu0 %v1602
        %1672 = vmatpush1.bf16.msra.mxu0 %v1601
        %1673 = vmatprep.subr.bf16.mxu0 %v1600
        %1674 = vmatpush1.bf16.msra.mxu0 %v1599
        %1675 = vmatprep.subr.bf16.mxu0 %v1598
        %1676 = vmatpush1.bf16.msra.mxu0 %v1597
        %1677 = vmatprep.subr.bf16.mxu0 %v1628
        %1678 = vmatpush2.bf16.msra.mxu0 %v1627
        %1679 = vmatprep.subr.bf16.mxu0 %v1626
        %1680 = vmatpush2.bf16.msra.mxu0 %v1625
        %1681 = vmatprep.subr.bf16.mxu0 %v1624
        %1682 = vmatpush2.bf16.msra.mxu0 %v1623
        %1683 = vmatprep.subr.bf16.mxu0 %v1622
        %1684 = vmatpush2.bf16.msra.mxu0 %v1621
        %1685 = vmatprep.subr.bf16.mxu0 %v1620
        %1686 = vmatpush2.bf16.msra.mxu0 %v1619
        %1687 = vmatprep.subr.bf16.mxu0 %v1618
        %1688 = vmatpush2.bf16.msra.mxu0 %v1617
        %1689 = vmatprep.subr.bf16.mxu0 %v1616
        %1690 = vmatpush2.bf16.msra.mxu0 %v1615
        %1691 = vmatprep.subr.bf16.mxu0 %v1614
        %1692 = vmatpush2.bf16.msra.mxu0 %v1613
        %1693 = vmatprep.mubr.bf16.mxu0 %v1454
        %1694 = vmatmul.mubr.bf16.gmra.mxu0 %v1453
        %v1695 = vpop.f32.mrf.mxu0
        %v1696 = vadd.f32 %v1494, %v1695
        %v1697 = vpop.f32.mrf.mxu0
        %v1698 = vadd.f32 %v1498, %v1697
        %v1699 = vpop.f32.mrf.mxu0
        %v1700 = vpop.f32.mrf.mxu0
        %1701 = vdwg.mxu0
        %v1702 = vrot.slane %v1696, 4
        %v1703 = vadd.f32 %v1696, %v1702
        %v1704 = vrot.slane %v1703, 2
        %v1705 = vadd.f32 %v1703, %v1704
        %v1706 = vrot.slane %v1705, 1
        %v1707 = vadd.f32 %v1705, %v1706
        %v1708 = vrot.slane %v1698, 4
        %v1709 = vadd.f32 %v1698, %v1708
        %v1710 = vrot.slane %v1709, 2
        %v1711 = vadd.f32 %v1709, %v1710
        %v1712 = vrot.slane %v1711, 1
        %v1713 = vadd.f32 %v1711, %v1712
        %v1714 = vmul.f32 %v1696, %v1696
        %v1715 = vmul.f32 %v1698, %v1698
        %v1716 = vrot.slane %v1714, 4
        %v1717 = vadd.f32 %v1714, %v1716
        %v1718 = vrot.slane %v1717, 2
        %v1719 = vadd.f32 %v1717, %v1718
        %v1720 = vrot.slane %v1719, 1
        %v1721 = vadd.f32 %v1719, %v1720
        %v1722 = vrot.slane %v1715, 4
        %v1723 = vadd.f32 %v1715, %v1722
        %v1724 = vrot.slane %v1723, 2
        %v1725 = vadd.f32 %v1723, %v1724
        %v1726 = vrot.slane %v1725, 1
        %v1727 = vadd.f32 %v1725, %v1726
        %v1728 = vmul.f32 %v1707, 0.125
        %v1729 = vmul.f32 %v1713, 0.125
        %v1730 = vmul.f32 %v1721, 0.125
        %v1731 = vmul.f32 %v1727, 0.125
        %v1732 = vmul.f32 %v1728, %v1728
        %v1733 = vmul.f32 %v1729, %v1729
        %v1734 = vsub.f32 %v1730, %v1732
        %v1735 = vsub.f32 %v1731, %v1733
        %v1736 = vmax.f32 %v1734, 0.0
        %v1737 = vmax.f32 %v1735, 0.0
        %v1738 = vsub.f32 %v1696, %v1728
        %v1739 = vsub.f32 %v1698, %v1729
        %v1740 = vadd.f32 %v1736, 1e-05
        %v1741 = vadd.f32 %v1737, 1e-05
        %v1742 = vrsqrt.pop %v1740
        %v1743 = vrsqrt.pop %v1741
        %v1744 = vmul.f32 %v1738, %v1742
        %v1745 = vmul.f32 %v1739, %v1743
        %s1746 = scalar_lea.vmem %s8, 2
        %v1747 = vld [vmem:[%s1746] sm:$0x3]
        %v1749 = vlaneseq
        %v1750 = vshrl.u32 %v1749, 7
        %v1751 = vsub.s32 0, %v1750
        %v1752 = vrot.slane %v1747, %v1751
        %v1753 = vlaneseq
        %v1754 = vshrl.u32 %v1753, 7
        %v1755 = vsub.s32 1, %v1754
        %v1756 = vrot.slane %v1747, %v1755
        %v1759 = vmul.f32 %v1752, %v1744
        %v1760 = vmul.f32 %v1756, %v1745
        %s1761 = scalar_lea.vmem %s9, 2
        %v1762 = vld [vmem:[%s1761] sm:$0x3]
        %v1764 = vlaneseq
        %v1765 = vshrl.u32 %v1764, 7
        %v1766 = vsub.s32 0, %v1765
        %v1767 = vrot.slane %v1762, %v1766
        %v1768 = vlaneseq
        %v1769 = vshrl.u32 %v1768, 7
        %v1770 = vsub.s32 1, %v1769
        %v1771 = vrot.slane %v1762, %v1770
        %v1774 = vadd.f32 %v1759, %v1767
        %v1775 = vadd.f32 %v1760, %v1771
        %v1776 = vmax.f32 %v1774, 0.0
        %v1777 = vmax.f32 %v1775, 0.0
        %v1778 = vpack.c.bf16 %v1776, %v1776
        %v1779 = vpack.c.bf16 %v1777, %v1777
        %s1780 = scalar_lea.vmem [#allocation5], 512
        %v1781 = vld [vmem:[%s1780] sm:$0xff]
        %v1782 = vld [vmem:[%s1780 + $0x8] sm:$0xff]
        %v1783 = vld [vmem:[%s1780 + $0x10] sm:$0xff]
        %v1784 = vld [vmem:[%s1780 + $0x18] sm:$0xff]
        %v1785 = vld [vmem:[%s1780 + $0x20] sm:$0xff]
        %v1786 = vld [vmem:[%s1780 + $0x28] sm:$0xff]
        %v1787 = vld [vmem:[%s1780 + $0x30] sm:$0xff]
        %v1788 = vld [vmem:[%s1780 + $0x38] sm:$0xff]
        %v1789 = vld [vmem:[%s1780 + $0x40] sm:$0xff]
        %v1790 = vld [vmem:[%s1780 + $0x48] sm:$0xff]
        %v1791 = vld [vmem:[%s1780 + $0x50] sm:$0xff]
        %v1792 = vld [vmem:[%s1780 + $0x58] sm:$0xff]
        %v1793 = vld [vmem:[%s1780 + $0x60] sm:$0xff]
        %v1794 = vld [vmem:[%s1780 + $0x68] sm:$0xff]
        %v1795 = vld [vmem:[%s1780 + $0x70] sm:$0xff]
        %v1796 = vld [vmem:[%s1780 + $0x78] sm:$0xff]
        %v1797 = vld [vmem:[%s1780 + $0x80] sm:$0xff]
        %v1798 = vld [vmem:[%s1780 + $0x88] sm:$0xff]
        %v1799 = vld [vmem:[%s1780 + $0x90] sm:$0xff]
        %v1800 = vld [vmem:[%s1780 + $0x98] sm:$0xff]
        %v1801 = vld [vmem:[%s1780 + $0xa0] sm:$0xff]
        %v1802 = vld [vmem:[%s1780 + $0xa8] sm:$0xff]
        %v1803 = vld [vmem:[%s1780 + $0xb0] sm:$0xff]
        %v1804 = vld [vmem:[%s1780 + $0xb8] sm:$0xff]
        %v1805 = vld [vmem:[%s1780 + $0xc0] sm:$0xff]
        %v1806 = vld [vmem:[%s1780 + $0xc8] sm:$0xff]
        %v1807 = vld [vmem:[%s1780 + $0xd0] sm:$0xff]
        %v1808 = vld [vmem:[%s1780 + $0xd8] sm:$0xff]
        %v1809 = vld [vmem:[%s1780 + $0xe0] sm:$0xff]
        %v1810 = vld [vmem:[%s1780 + $0xe8] sm:$0xff]
        %v1811 = vld [vmem:[%s1780 + $0xf0] sm:$0xff]
        %v1812 = vld [vmem:[%s1780 + $0xf8] sm:$0xff]
        %s1813 = scalar_lea.vmem %s7, 4
        %v1814 = vld [vmem:[%s1813] sm:$0x3]
        %v1816 = vlaneseq
        %v1817 = vshrl.u32 %v1816, 7
        %v1818 = vsub.s32 0, %v1817
        %v1819 = vrot.slane %v1814, %v1818
        %v1820 = vlaneseq
        %v1821 = vshrl.u32 %v1820, 7
        %v1822 = vsub.s32 1, %v1821
        %v1823 = vrot.slane %v1814, %v1822
        %v1858 = vunpack.c.l.b16 %v1781
        %v1859 = vunpack.c.h.b16 %v1781
        %v1860 = vunpack.c.l.b16 %v1782
        %v1861 = vunpack.c.h.b16 %v1782
        %v1862 = vunpack.c.l.b16 %v1783
        %v1863 = vunpack.c.h.b16 %v1783
        %v1864 = vunpack.c.l.b16 %v1784
        %v1865 = vunpack.c.h.b16 %v1784
        %v1866 = vunpack.c.l.b16 %v1785
        %v1867 = vunpack.c.h.b16 %v1785
        %v1868 = vunpack.c.l.b16 %v1786
        %v1869 = vunpack.c.h.b16 %v1786
        %v1870 = vunpack.c.l.b16 %v1787
        %v1871 = vunpack.c.h.b16 %v1787
        %v1872 = vunpack.c.l.b16 %v1788
        %v1873 = vunpack.c.h.b16 %v1788
        %v1874 = vunpack.c.l.b16 %v1789
        %v1875 = vunpack.c.h.b16 %v1789
        %v1876 = vunpack.c.l.b16 %v1790
        %v1877 = vunpack.c.h.b16 %v1790
        %v1878 = vunpack.c.l.b16 %v1791
        %v1879 = vunpack.c.h.b16 %v1791
        %v1880 = vunpack.c.l.b16 %v1792
        %v1881 = vunpack.c.h.b16 %v1792
        %v1882 = vunpack.c.l.b16 %v1793
        %v1883 = vunpack.c.h.b16 %v1793
        %v1884 = vunpack.c.l.b16 %v1794
        %v1885 = vunpack.c.h.b16 %v1794
        %v1886 = vunpack.c.l.b16 %v1795
        %v1887 = vunpack.c.h.b16 %v1795
        %v1888 = vunpack.c.l.b16 %v1796
        %v1889 = vunpack.c.h.b16 %v1796
        %v1890 = vunpack.c.l.b16 %v1797
        %v1891 = vunpack.c.h.b16 %v1797
        %v1892 = vunpack.c.l.b16 %v1798
        %v1893 = vunpack.c.h.b16 %v1798
        %v1894 = vunpack.c.l.b16 %v1799
        %v1895 = vunpack.c.h.b16 %v1799
        %v1896 = vunpack.c.l.b16 %v1800
        %v1897 = vunpack.c.h.b16 %v1800
        %v1898 = vunpack.c.l.b16 %v1801
        %v1899 = vunpack.c.h.b16 %v1801
        %v1900 = vunpack.c.l.b16 %v1802
        %v1901 = vunpack.c.h.b16 %v1802
        %v1902 = vunpack.c.l.b16 %v1803
        %v1903 = vunpack.c.h.b16 %v1803
        %v1904 = vunpack.c.l.b16 %v1804
        %v1905 = vunpack.c.h.b16 %v1804
        %v1906 = vunpack.c.l.b16 %v1805
        %v1907 = vunpack.c.h.b16 %v1805
        %v1908 = vunpack.c.l.b16 %v1806
        %v1909 = vunpack.c.h.b16 %v1806
        %v1910 = vunpack.c.l.b16 %v1807
        %v1911 = vunpack.c.h.b16 %v1807
        %v1912 = vunpack.c.l.b16 %v1808
        %v1913 = vunpack.c.h.b16 %v1808
        %v1914 = vunpack.c.l.b16 %v1809
        %v1915 = vunpack.c.h.b16 %v1809
        %v1916 = vunpack.c.l.b16 %v1810
        %v1917 = vunpack.c.h.b16 %v1810
        %v1918 = vunpack.c.l.b16 %v1811
        %v1919 = vunpack.c.h.b16 %v1811
        %v1920 = vunpack.c.l.b16 %v1812
        %v1921 = vunpack.c.h.b16 %v1812
        %v1922 = vpack.c.b16 %v1860, %v1858
        %v1923 = vpack.c.b16 %v1861, %v1859
        %v1924 = vpack.c.b16 %v1864, %v1862
        %v1925 = vpack.c.b16 %v1865, %v1863
        %v1926 = vpack.c.b16 %v1868, %v1866
        %v1927 = vpack.c.b16 %v1869, %v1867
        %v1928 = vpack.c.b16 %v1872, %v1870
        %v1929 = vpack.c.b16 %v1873, %v1871
        %v1930 = vpack.c.b16 %v1876, %v1874
        %v1931 = vpack.c.b16 %v1877, %v1875
        %v1932 = vpack.c.b16 %v1880, %v1878
        %v1933 = vpack.c.b16 %v1881, %v1879
        %v1934 = vpack.c.b16 %v1884, %v1882
        %v1935 = vpack.c.b16 %v1885, %v1883
        %v1936 = vpack.c.b16 %v1888, %v1886
        %v1937 = vpack.c.b16 %v1889, %v1887
        %v1938 = vpack.c.b16 %v1892, %v1890
        %v1939 = vpack.c.b16 %v1893, %v1891
        %v1940 = vpack.c.b16 %v1896, %v1894
        %v1941 = vpack.c.b16 %v1897, %v1895
        %v1942 = vpack.c.b16 %v1900, %v1898
        %v1943 = vpack.c.b16 %v1901, %v1899
        %v1944 = vpack.c.b16 %v1904, %v1902
        %v1945 = vpack.c.b16 %v1905, %v1903
        %v1946 = vpack.c.b16 %v1908, %v1906
        %v1947 = vpack.c.b16 %v1909, %v1907
        %v1948 = vpack.c.b16 %v1912, %v1910
        %v1949 = vpack.c.b16 %v1913, %v1911
        %v1950 = vpack.c.b16 %v1916, %v1914
        %v1951 = vpack.c.b16 %v1917, %v1915
        %v1952 = vpack.c.b16 %v1920, %v1918
        %v1953 = vpack.c.b16 %v1921, %v1919
        %1986 = vmatprep.subr.bf16.mxu0 %v1937
        %1987 = vmatpush1.bf16.msra.mxu0 %v1936
        %1988 = vmatprep.subr.bf16.mxu0 %v1935
        %1989 = vmatpush1.bf16.msra.mxu0 %v1934
        %1990 = vmatprep.subr.bf16.mxu0 %v1933
        %1991 = vmatpush1.bf16.msra.mxu0 %v1932
        %1992 = vmatprep.subr.bf16.mxu0 %v1931
        %1993 = vmatpush1.bf16.msra.mxu0 %v1930
        %1994 = vmatprep.subr.bf16.mxu0 %v1929
        %1995 = vmatpush1.bf16.msra.mxu0 %v1928
        %1996 = vmatprep.subr.bf16.mxu0 %v1927
        %1997 = vmatpush1.bf16.msra.mxu0 %v1926
        %1998 = vmatprep.subr.bf16.mxu0 %v1925
        %1999 = vmatpush1.bf16.msra.mxu0 %v1924
        %2000 = vmatprep.subr.bf16.mxu0 %v1923
        %2001 = vmatpush1.bf16.msra.mxu0 %v1922
        %2002 = vmatprep.subr.bf16.mxu0 %v1953
        %2003 = vmatpush2.bf16.msra.mxu0 %v1952
        %2004 = vmatprep.subr.bf16.mxu0 %v1951
        %2005 = vmatpush2.bf16.msra.mxu0 %v1950
        %2006 = vmatprep.subr.bf16.mxu0 %v1949
        %2007 = vmatpush2.bf16.msra.mxu0 %v1948
        %2008 = vmatprep.subr.bf16.mxu0 %v1947
        %2009 = vmatpush2.bf16.msra.mxu0 %v1946
        %2010 = vmatprep.subr.bf16.mxu0 %v1945
        %2011 = vmatpush2.bf16.msra.mxu0 %v1944
        %2012 = vmatprep.subr.bf16.mxu0 %v1943
        %2013 = vmatpush2.bf16.msra.mxu0 %v1942
        %2014 = vmatprep.subr.bf16.mxu0 %v1941
        %2015 = vmatpush2.bf16.msra.mxu0 %v1940
        %2016 = vmatprep.subr.bf16.mxu0 %v1939
        %2017 = vmatpush2.bf16.msra.mxu0 %v1938
        %2018 = vmatprep.mubr.bf16.mxu0 %v1779
        %2019 = vmatmul.mubr.bf16.gmra.mxu0 %v1778
        %v2020 = vpop.f32.mrf.mxu0
        %v2021 = vadd.f32 %v1819, %v2020
        %v2022 = vpop.f32.mrf.mxu0
        %v2023 = vadd.f32 %v1823, %v2022
        %v2024 = vpop.f32.mrf.mxu0
        %v2025 = vpop.f32.mrf.mxu0
        %2026 = vdwg.mxu0
        %v2027 = vrot.slane %v2021, 4
        %v2028 = vadd.f32 %v2021, %v2027
        %v2029 = vrot.slane %v2028, 2
        %v2030 = vadd.f32 %v2028, %v2029
        %v2031 = vrot.slane %v2030, 1
        %v2032 = vadd.f32 %v2030, %v2031
        %v2033 = vrot.slane %v2023, 4
        %v2034 = vadd.f32 %v2023, %v2033
        %v2035 = vrot.slane %v2034, 2
        %v2036 = vadd.f32 %v2034, %v2035
        %v2037 = vrot.slane %v2036, 1
        %v2038 = vadd.f32 %v2036, %v2037
        %v2039 = vmul.f32 %v2021, %v2021
        %v2040 = vmul.f32 %v2023, %v2023
        %v2041 = vrot.slane %v2039, 4
        %v2042 = vadd.f32 %v2039, %v2041
        %v2043 = vrot.slane %v2042, 2
        %v2044 = vadd.f32 %v2042, %v2043
        %v2045 = vrot.slane %v2044, 1
        %v2046 = vadd.f32 %v2044, %v2045
        %v2047 = vrot.slane %v2040, 4
        %v2048 = vadd.f32 %v2040, %v2047
        %v2049 = vrot.slane %v2048, 2
        %v2050 = vadd.f32 %v2048, %v2049
        %v2051 = vrot.slane %v2050, 1
        %v2052 = vadd.f32 %v2050, %v2051
        %v2053 = vmul.f32 %v2032, 0.125
        %v2054 = vmul.f32 %v2038, 0.125
        %v2055 = vmul.f32 %v2046, 0.125
        %v2056 = vmul.f32 %v2052, 0.125
        %v2057 = vmul.f32 %v2053, %v2053
        %v2058 = vmul.f32 %v2054, %v2054
        %v2059 = vsub.f32 %v2055, %v2057
        %v2060 = vsub.f32 %v2056, %v2058
        %v2061 = vmax.f32 %v2059, 0.0
        %v2062 = vmax.f32 %v2060, 0.0
        %v2063 = vsub.f32 %v2021, %v2053
        %v2064 = vsub.f32 %v2023, %v2054
        %v2065 = vadd.f32 %v2061, 1e-05
        %v2066 = vadd.f32 %v2062, 1e-05
        %v2067 = vrsqrt.pop %v2065
        %v2068 = vrsqrt.pop %v2066
        %v2069 = vmul.f32 %v2063, %v2067
        %v2070 = vmul.f32 %v2064, %v2068
        %s2071 = scalar_lea.vmem %s8, 4
        %v2072 = vld [vmem:[%s2071] sm:$0x3]
        %v2074 = vlaneseq
        %v2075 = vshrl.u32 %v2074, 7
        %v2076 = vsub.s32 0, %v2075
        %v2077 = vrot.slane %v2072, %v2076
        %v2078 = vlaneseq
        %v2079 = vshrl.u32 %v2078, 7
        %v2080 = vsub.s32 1, %v2079
        %v2081 = vrot.slane %v2072, %v2080
        %v2084 = vmul.f32 %v2077, %v2069
        %v2085 = vmul.f32 %v2081, %v2070
        %s2086 = scalar_lea.vmem %s9, 4
        %v2087 = vld [vmem:[%s2086] sm:$0x3]
        %v2089 = vlaneseq
        %v2090 = vshrl.u32 %v2089, 7
        %v2091 = vsub.s32 0, %v2090
        %v2092 = vrot.slane %v2087, %v2091
        %v2093 = vlaneseq
        %v2094 = vshrl.u32 %v2093, 7
        %v2095 = vsub.s32 1, %v2094
        %v2096 = vrot.slane %v2087, %v2095
        %v2099 = vadd.f32 %v2084, %v2092
        %v2100 = vadd.f32 %v2085, %v2096
        %v2101 = vmax.f32 %v2099, 0.0
        %v2102 = vmax.f32 %v2100, 0.0
        %2103 = vst [vmem:[%s717] sm:$0xff] %v2101
        %2104 = vst [vmem:[%s717 + $0x8] sm:$0xff] %v2102
        %p2105 = scmp.eq.s32.totalorder %s37, 0
        %s2106 = scalar_select %p2105, 1.0, 0.0
        %v2107 = vstv %s2106
        %v2108 = vmul.f32 %v2107, %v2101
        %v2109 = vmul.f32 %v2107, %v2102
        %s2110 = ssub.f32 1.0, %s2106
        %v2111 = vld [vmem:[%s2] sm:$0xff]
        %v2112 = vld [vmem:[%s2 + $0x8] sm:$0xff]
        %v2113 = vstv %s2110
        %v2114 = vmul.f32 %v2113, %v2111
        %v2115 = vmul.f32 %v2113, %v2112
        %v2116 = vadd.f32 %v2108, %v2114
        %v2117 = vadd.f32 %v2109, %v2115
        %v2118 = vpack.c.bf16 %v2116, %v2116
        %v2119 = vpack.c.bf16 %v2117, %v2117
        %v2120 = vld [vmem:[#allocation7] sm:$0xff]
        %v2121 = vld [vmem:[#allocation7 + $0x8] sm:$0xff]
        %v2122 = vld [vmem:[#allocation7 + $0x10] sm:$0xff]
        %v2123 = vld [vmem:[#allocation7 + $0x18] sm:$0xff]
        %v2124 = vld [vmem:[#allocation7 + $0x20] sm:$0xff]
        %v2125 = vld [vmem:[#allocation7 + $0x28] sm:$0xff]
        %v2126 = vld [vmem:[#allocation7 + $0x30] sm:$0xff]
        %v2127 = vld [vmem:[#allocation7 + $0x38] sm:$0xff]
        %v2128 = vld [vmem:[#allocation7 + $0x40] sm:$0xff]
        %v2129 = vld [vmem:[#allocation7 + $0x48] sm:$0xff]
        %v2130 = vld [vmem:[#allocation7 + $0x50] sm:$0xff]
        %v2131 = vld [vmem:[#allocation7 + $0x58] sm:$0xff]
        %v2132 = vld [vmem:[#allocation7 + $0x60] sm:$0xff]
        %v2133 = vld [vmem:[#allocation7 + $0x68] sm:$0xff]
        %v2134 = vld [vmem:[#allocation7 + $0x70] sm:$0xff]
        %v2135 = vld [vmem:[#allocation7 + $0x78] sm:$0xff]
        %v2136 = vld [vmem:[#allocation7 + $0x80] sm:$0xff]
        %v2137 = vld [vmem:[#allocation7 + $0x88] sm:$0xff]
        %v2138 = vld [vmem:[#allocation7 + $0x90] sm:$0xff]
        %v2139 = vld [vmem:[#allocation7 + $0x98] sm:$0xff]
        %v2140 = vld [vmem:[#allocation7 + $0xa0] sm:$0xff]
        %v2141 = vld [vmem:[#allocation7 + $0xa8] sm:$0xff]
        %v2142 = vld [vmem:[#allocation7 + $0xb0] sm:$0xff]
        %v2143 = vld [vmem:[#allocation7 + $0xb8] sm:$0xff]
        %v2144 = vld [vmem:[#allocation7 + $0xc0] sm:$0xff]
        %v2145 = vld [vmem:[#allocation7 + $0xc8] sm:$0xff]
        %v2146 = vld [vmem:[#allocation7 + $0xd0] sm:$0xff]
        %v2147 = vld [vmem:[#allocation7 + $0xd8] sm:$0xff]
        %v2148 = vld [vmem:[#allocation7 + $0xe0] sm:$0xff]
        %v2149 = vld [vmem:[#allocation7 + $0xe8] sm:$0xff]
        %v2150 = vld [vmem:[#allocation7 + $0xf0] sm:$0xff]
        %v2151 = vld [vmem:[#allocation7 + $0xf8] sm:$0xff]
        %v2152 = vld [vmem:[#allocation8] sm:$0xff]
        %v2153 = vld [vmem:[#allocation8 + $0x8] sm:$0xff]
        %v2154 = vld [vmem:[#allocation8 + $0x10] sm:$0xff]
        %v2155 = vld [vmem:[#allocation8 + $0x18] sm:$0xff]
        %v2156 = vld [vmem:[#allocation8 + $0x20] sm:$0xff]
        %v2157 = vld [vmem:[#allocation8 + $0x28] sm:$0xff]
        %v2158 = vld [vmem:[#allocation8 + $0x30] sm:$0xff]
        %v2159 = vld [vmem:[#allocation8 + $0x38] sm:$0xff]
        %v2160 = vld [vmem:[#allocation8 + $0x40] sm:$0xff]
        %v2161 = vld [vmem:[#allocation8 + $0x48] sm:$0xff]
        %v2162 = vld [vmem:[#allocation8 + $0x50] sm:$0xff]
        %v2163 = vld [vmem:[#allocation8 + $0x58] sm:$0xff]
        %v2164 = vld [vmem:[#allocation8 + $0x60] sm:$0xff]
        %v2165 = vld [vmem:[#allocation8 + $0x68] sm:$0xff]
        %v2166 = vld [vmem:[#allocation8 + $0x70] sm:$0xff]
        %v2167 = vld [vmem:[#allocation8 + $0x78] sm:$0xff]
        %v2168 = vld [vmem:[#allocation8 + $0x80] sm:$0xff]
        %v2186 = vunpack.c.l.b16 %v2152
        %v2187 = vunpack.c.h.b16 %v2152
        %v2188 = vunpack.c.l.b16 %v2153
        %v2189 = vunpack.c.h.b16 %v2153
        %v2190 = vunpack.c.l.b16 %v2154
        %v2191 = vunpack.c.h.b16 %v2154
        %v2192 = vunpack.c.l.b16 %v2155
        %v2193 = vunpack.c.h.b16 %v2155
        %v2194 = vunpack.c.l.b16 %v2156
        %v2195 = vunpack.c.h.b16 %v2156
        %v2196 = vunpack.c.l.b16 %v2157
        %v2197 = vunpack.c.h.b16 %v2157
        %v2198 = vunpack.c.l.b16 %v2158
        %v2199 = vunpack.c.h.b16 %v2158
        %v2200 = vunpack.c.l.b16 %v2159
        %v2201 = vunpack.c.h.b16 %v2159
        %v2202 = vunpack.c.l.b16 %v2160
        %v2203 = vunpack.c.h.b16 %v2160
        %v2204 = vunpack.c.l.b16 %v2161
        %v2205 = vunpack.c.h.b16 %v2161
        %v2206 = vunpack.c.l.b16 %v2162
        %v2207 = vunpack.c.h.b16 %v2162
        %v2208 = vunpack.c.l.b16 %v2163
        %v2209 = vunpack.c.h.b16 %v2163
        %v2210 = vunpack.c.l.b16 %v2164
        %v2211 = vunpack.c.h.b16 %v2164
        %v2212 = vunpack.c.l.b16 %v2165
        %v2213 = vunpack.c.h.b16 %v2165
        %v2214 = vunpack.c.l.b16 %v2166
        %v2215 = vunpack.c.h.b16 %v2166
        %v2216 = vunpack.c.l.b16 %v2167
        %v2217 = vunpack.c.h.b16 %v2167
        %v2218 = vunpack.c.l.b16 %v2168
        %v2219 = vunpack.c.h.b16 %v2168
        %v2220 = vpack.c.b16 %v2188, %v2186
        %v2221 = vpack.c.b16 %v2189, %v2187
        %v2222 = vpack.c.b16 %v2192, %v2190
        %v2223 = vpack.c.b16 %v2193, %v2191
        %v2224 = vpack.c.b16 %v2196, %v2194
        %v2225 = vpack.c.b16 %v2197, %v2195
        %v2226 = vpack.c.b16 %v2200, %v2198
        %v2227 = vpack.c.b16 %v2201, %v2199
        %v2228 = vpack.c.b16 %v2204, %v2202
        %v2229 = vpack.c.b16 %v2205, %v2203
        %v2230 = vpack.c.b16 %v2208, %v2206
        %v2231 = vpack.c.b16 %v2209, %v2207
        %v2232 = vpack.c.b16 %v2212, %v2210
        %v2233 = vpack.c.b16 %v2213, %v2211
        %v2234 = vpack.c.b16 %v2216, %v2214
        %v2235 = vpack.c.b16 %v2217, %v2215
        %v2236 = vpack.c.b16 %v2218, %v2218
        %v2237 = vpack.c.b16 %v2219, %v2219
        %v2255 = vsel %vm869, %v2236, 0
        %v2258 = vsel %vm869, %v2237, 0
        %2260 = vmatprep.subr.bf16.mxu0 %v2235
        %2261 = vmatpush1.bf16.msra.mxu0 %v2234
        %2262 = vmatprep.subr.bf16.mxu0 %v2233
        %2263 = vmatpush1.bf16.msra.mxu0 %v2232
        %2264 = vmatprep.subr.bf16.mxu0 %v2231
        %2265 = vmatpush1.bf16.msra.mxu0 %v2230
        %2266 = vmatprep.subr.bf16.mxu0 %v2229
        %2267 = vmatpush1.bf16.msra.mxu0 %v2228
        %2268 = vmatprep.subr.bf16.mxu0 %v2227
        %2269 = vmatpush1.bf16.msra.mxu0 %v2226
        %2270 = vmatprep.subr.bf16.mxu0 %v2225
        %2271 = vmatpush1.bf16.msra.mxu0 %v2224
        %2272 = vmatprep.subr.bf16.mxu0 %v2223
        %2273 = vmatpush1.bf16.msra.mxu0 %v2222
        %2274 = vmatprep.subr.bf16.mxu0 %v2221
        %2275 = vmatpush1.bf16.msra.mxu0 %v2220
        %2276 = vmatprep.subr.bf16.mxu0 0
        %2277 = vmatpush2.bf16.msra.mxu0 0
        %2278 = vmatprep.subr.bf16.mxu0 0
        %2279 = vmatpush2.bf16.msra.mxu0 0
        %2280 = vmatprep.subr.bf16.mxu0 0
        %2281 = vmatpush2.bf16.msra.mxu0 0
        %2282 = vmatprep.subr.bf16.mxu0 0
        %2283 = vmatpush2.bf16.msra.mxu0 0
        %2284 = vmatprep.subr.bf16.mxu0 0
        %2285 = vmatpush2.bf16.msra.mxu0 0
        %2286 = vmatprep.subr.bf16.mxu0 0
        %2287 = vmatpush2.bf16.msra.mxu0 0
        %2288 = vmatprep.subr.bf16.mxu0 0
        %2289 = vmatpush2.bf16.msra.mxu0 0
        %2290 = vmatprep.subr.bf16.mxu0 %v2258
        %2291 = vmatpush2.bf16.msra.mxu0 %v2255
        %2292 = vmatprep.mubr.bf16.mxu0 %v867
        %2293 = vmatmul.mubr.bf16.gmra.mxu0 %v729
        %v2294 = vpop.f32.mrf.mxu0
        %v2295 = vadd.f32 0.0, %v2294
        %v2296 = vpop.f32.mrf.mxu0
        %v2297 = vadd.f32 0.0, %v2296
        %v2298 = vpop.f32.mrf.mxu0
        %v2299 = vpop.f32.mrf.mxu0
        %2300 = vdwg.mxu0
        %v2333 = vunpack.c.l.b16 %v2120
        %v2334 = vunpack.c.h.b16 %v2120
        %v2335 = vunpack.c.l.b16 %v2121
        %v2336 = vunpack.c.h.b16 %v2121
        %v2337 = vunpack.c.l.b16 %v2122
        %v2338 = vunpack.c.h.b16 %v2122
        %v2339 = vunpack.c.l.b16 %v2123
        %v2340 = vunpack.c.h.b16 %v2123
        %v2341 = vunpack.c.l.b16 %v2124
        %v2342 = vunpack.c.h.b16 %v2124
        %v2343 = vunpack.c.l.b16 %v2125
        %v2344 = vunpack.c.h.b16 %v2125
        %v2345 = vunpack.c.l.b16 %v2126
        %v2346 = vunpack.c.h.b16 %v2126
        %v2347 = vunpack.c.l.b16 %v2127
        %v2348 = vunpack.c.h.b16 %v2127
        %v2349 = vunpack.c.l.b16 %v2128
        %v2350 = vunpack.c.h.b16 %v2128
        %v2351 = vunpack.c.l.b16 %v2129
        %v2352 = vunpack.c.h.b16 %v2129
        %v2353 = vunpack.c.l.b16 %v2130
        %v2354 = vunpack.c.h.b16 %v2130
        %v2355 = vunpack.c.l.b16 %v2131
        %v2356 = vunpack.c.h.b16 %v2131
        %v2357 = vunpack.c.l.b16 %v2132
        %v2358 = vunpack.c.h.b16 %v2132
        %v2359 = vunpack.c.l.b16 %v2133
        %v2360 = vunpack.c.h.b16 %v2133
        %v2361 = vunpack.c.l.b16 %v2134
        %v2362 = vunpack.c.h.b16 %v2134
        %v2363 = vunpack.c.l.b16 %v2135
        %v2364 = vunpack.c.h.b16 %v2135
        %v2365 = vunpack.c.l.b16 %v2136
        %v2366 = vunpack.c.h.b16 %v2136
        %v2367 = vunpack.c.l.b16 %v2137
        %v2368 = vunpack.c.h.b16 %v2137
        %v2369 = vunpack.c.l.b16 %v2138
        %v2370 = vunpack.c.h.b16 %v2138
        %v2371 = vunpack.c.l.b16 %v2139
        %v2372 = vunpack.c.h.b16 %v2139
        %v2373 = vunpack.c.l.b16 %v2140
        %v2374 = vunpack.c.h.b16 %v2140
        %v2375 = vunpack.c.l.b16 %v2141
        %v2376 = vunpack.c.h.b16 %v2141
        %v2377 = vunpack.c.l.b16 %v2142
        %v2378 = vunpack.c.h.b16 %v2142
        %v2379 = vunpack.c.l.b16 %v2143
        %v2380 = vunpack.c.h.b16 %v2143
        %v2381 = vunpack.c.l.b16 %v2144
        %v2382 = vunpack.c.h.b16 %v2144
        %v2383 = vunpack.c.l.b16 %v2145
        %v2384 = vunpack.c.h.b16 %v2145
        %v2385 = vunpack.c.l.b16 %v2146
        %v2386 = vunpack.c.h.b16 %v2146
        %v2387 = vunpack.c.l.b16 %v2147
        %v2388 = vunpack.c.h.b16 %v2147
        %v2389 = vunpack.c.l.b16 %v2148
        %v2390 = vunpack.c.h.b16 %v2148
        %v2391 = vunpack.c.l.b16 %v2149
        %v2392 = vunpack.c.h.b16 %v2149
        %v2393 = vunpack.c.l.b16 %v2150
        %v2394 = vunpack.c.h.b16 %v2150
        %v2395 = vunpack.c.l.b16 %v2151
        %v2396 = vunpack.c.h.b16 %v2151
        %v2397 = vpack.c.b16 %v2335, %v2333
        %v2398 = vpack.c.b16 %v2336, %v2334
        %v2399 = vpack.c.b16 %v2339, %v2337
        %v2400 = vpack.c.b16 %v2340, %v2338
        %v2401 = vpack.c.b16 %v2343, %v2341
        %v2402 = vpack.c.b16 %v2344, %v2342
        %v2403 = vpack.c.b16 %v2347, %v2345
        %v2404 = vpack.c.b16 %v2348, %v2346
        %v2405 = vpack.c.b16 %v2351, %v2349
        %v2406 = vpack.c.b16 %v2352, %v2350
        %v2407 = vpack.c.b16 %v2355, %v2353
        %v2408 = vpack.c.b16 %v2356, %v2354
        %v2409 = vpack.c.b16 %v2359, %v2357
        %v2410 = vpack.c.b16 %v2360, %v2358
        %v2411 = vpack.c.b16 %v2363, %v2361
        %v2412 = vpack.c.b16 %v2364, %v2362
        %v2413 = vpack.c.b16 %v2367, %v2365
        %v2414 = vpack.c.b16 %v2368, %v2366
        %v2415 = vpack.c.b16 %v2371, %v2369
        %v2416 = vpack.c.b16 %v2372, %v2370
        %v2417 = vpack.c.b16 %v2375, %v2373
        %v2418 = vpack.c.b16 %v2376, %v2374
        %v2419 = vpack.c.b16 %v2379, %v2377
        %v2420 = vpack.c.b16 %v2380, %v2378
        %v2421 = vpack.c.b16 %v2383, %v2381
        %v2422 = vpack.c.b16 %v2384, %v2382
        %v2423 = vpack.c.b16 %v2387, %v2385
        %v2424 = vpack.c.b16 %v2388, %v2386
        %v2425 = vpack.c.b16 %v2391, %v2389
        %v2426 = vpack.c.b16 %v2392, %v2390
        %v2427 = vpack.c.b16 %v2395, %v2393
        %v2428 = vpack.c.b16 %v2396, %v2394
        %2461 = vmatprep.subr.bf16.mxu0 %v2412
        %2462 = vmatpush1.bf16.msra.mxu0 %v2411
        %2463 = vmatprep.subr.bf16.mxu0 %v2410
        %2464 = vmatpush1.bf16.msra.mxu0 %v2409
        %2465 = vmatprep.subr.bf16.mxu0 %v2408
        %2466 = vmatpush1.bf16.msra.mxu0 %v2407
        %2467 = vmatprep.subr.bf16.mxu0 %v2406
        %2468 = vmatpush1.bf16.msra.mxu0 %v2405
        %2469 = vmatprep.subr.bf16.mxu0 %v2404
        %2470 = vmatpush1.bf16.msra.mxu0 %v2403
        %2471 = vmatprep.subr.bf16.mxu0 %v2402
        %2472 = vmatpush1.bf16.msra.mxu0 %v2401
        %2473 = vmatprep.subr.bf16.mxu0 %v2400
        %2474 = vmatpush1.bf16.msra.mxu0 %v2399
        %2475 = vmatprep.subr.bf16.mxu0 %v2398
        %2476 = vmatpush1.bf16.msra.mxu0 %v2397
        %2477 = vmatprep.subr.bf16.mxu0 %v2428
        %2478 = vmatpush2.bf16.msra.mxu0 %v2427
        %2479 = vmatprep.subr.bf16.mxu0 %v2426
        %2480 = vmatpush2.bf16.msra.mxu0 %v2425
        %2481 = vmatprep.subr.bf16.mxu0 %v2424
        %2482 = vmatpush2.bf16.msra.mxu0 %v2423
        %2483 = vmatprep.subr.bf16.mxu0 %v2422
        %2484 = vmatpush2.bf16.msra.mxu0 %v2421
        %2485 = vmatprep.subr.bf16.mxu0 %v2420
        %2486 = vmatpush2.bf16.msra.mxu0 %v2419
        %2487 = vmatprep.subr.bf16.mxu0 %v2418
        %2488 = vmatpush2.bf16.msra.mxu0 %v2417
        %2489 = vmatprep.subr.bf16.mxu0 %v2416
        %2490 = vmatpush2.bf16.msra.mxu0 %v2415
        %2491 = vmatprep.subr.bf16.mxu0 %v2414
        %2492 = vmatpush2.bf16.msra.mxu0 %v2413
        %2493 = vmatprep.mubr.bf16.mxu0 %v2119
        %2494 = vmatmul.mubr.bf16.gmra.mxu0 %v2118
        %v2495 = vpop.f32.mrf.mxu0
        %v2496 = vadd.f32 %v2295, %v2495
        %v2497 = vpop.f32.mrf.mxu0
        %v2498 = vadd.f32 %v2297, %v2497
        %v2499 = vpop.f32.mrf.mxu0
        %v2500 = vpop.f32.mrf.mxu0
        %2501 = vdwg.mxu0
        %v2502 = vld [vmem:[%s12] sm:$0x3]
        %v2504 = vlaneseq
        %v2505 = vshrl.u32 %v2504, 7
        %v2506 = vsub.s32 0, %v2505
        %v2507 = vrot.slane %v2502, %v2506
        %v2508 = vlaneseq
        %v2509 = vshrl.u32 %v2508, 7
        %v2510 = vsub.s32 1, %v2509
        %v2511 = vrot.slane %v2502, %v2510
        %v2514 = vadd.f32 %v2496, %v2507
        %v2515 = vadd.f32 %v2498, %v2511
        %v2516 = vmax.f32 %v2514, 0.0
        %v2517 = vmax.f32 %v2515, 0.0
        %v2518 = vpack.c.bf16 %v2516, %v2516
        %v2519 = vpack.c.bf16 %v2517, %v2517
        %v2520 = vld [vmem:[%s13] sm:$0xff]
        %v2521 = vld [vmem:[%s13 + $0x8] sm:$0xff]
        %v2522 = vld [vmem:[%s13 + $0x10] sm:$0xff]
        %v2523 = vld [vmem:[%s13 + $0x18] sm:$0xff]
        %v2524 = vld [vmem:[%s13 + $0x20] sm:$0xff]
        %v2525 = vld [vmem:[%s13 + $0x28] sm:$0xff]
        %v2526 = vld [vmem:[%s13 + $0x30] sm:$0xff]
        %v2527 = vld [vmem:[%s13 + $0x38] sm:$0xff]
        %v2528 = vld [vmem:[%s13 + $0x40] sm:$0xff]
        %v2529 = vld [vmem:[%s13 + $0x48] sm:$0xff]
        %v2530 = vld [vmem:[%s13 + $0x50] sm:$0xff]
        %v2531 = vld [vmem:[%s13 + $0x58] sm:$0xff]
        %v2532 = vld [vmem:[%s13 + $0x60] sm:$0xff]
        %v2533 = vld [vmem:[%s13 + $0x68] sm:$0xff]
        %v2534 = vld [vmem:[%s13 + $0x70] sm:$0xff]
        %v2535 = vld [vmem:[%s13 + $0x78] sm:$0xff]
        %v2536 = vld [vmem:[%s13 + $0x80] sm:$0xff]
        %v2537 = vld [vmem:[%s13 + $0x88] sm:$0xff]
        %v2538 = vld [vmem:[%s13 + $0x90] sm:$0xff]
        %v2539 = vld [vmem:[%s13 + $0x98] sm:$0xff]
        %v2540 = vld [vmem:[%s13 + $0xa0] sm:$0xff]
        %v2541 = vld [vmem:[%s13 + $0xa8] sm:$0xff]
        %v2542 = vld [vmem:[%s13 + $0xb0] sm:$0xff]
        %v2543 = vld [vmem:[%s13 + $0xb8] sm:$0xff]
        %v2544 = vld [vmem:[%s13 + $0xc0] sm:$0xff]
        %v2545 = vld [vmem:[%s13 + $0xc8] sm:$0xff]
        %v2546 = vld [vmem:[%s13 + $0xd0] sm:$0xff]
        %v2547 = vld [vmem:[%s13 + $0xd8] sm:$0xff]
        %v2548 = vld [vmem:[%s13 + $0xe0] sm:$0xff]
        %v2549 = vld [vmem:[%s13 + $0xe8] sm:$0xff]
        %v2550 = vld [vmem:[%s13 + $0xf0] sm:$0xff]
        %v2551 = vld [vmem:[%s13 + $0xf8] sm:$0xff]
        %v2552 = vld [vmem:[%s14] sm:$0x3]
        %v2554 = vlaneseq
        %v2555 = vshrl.u32 %v2554, 7
        %v2556 = vsub.s32 0, %v2555
        %v2557 = vrot.slane %v2552, %v2556
        %v2558 = vlaneseq
        %v2559 = vshrl.u32 %v2558, 7
        %v2560 = vsub.s32 1, %v2559
        %v2561 = vrot.slane %v2552, %v2560
        %v2596 = vunpack.c.l.b16 %v2520
        %v2597 = vunpack.c.h.b16 %v2520
        %v2598 = vunpack.c.l.b16 %v2521
        %v2599 = vunpack.c.h.b16 %v2521
        %v2600 = vunpack.c.l.b16 %v2522
        %v2601 = vunpack.c.h.b16 %v2522
        %v2602 = vunpack.c.l.b16 %v2523
        %v2603 = vunpack.c.h.b16 %v2523
        %v2604 = vunpack.c.l.b16 %v2524
        %v2605 = vunpack.c.h.b16 %v2524
        %v2606 = vunpack.c.l.b16 %v2525
        %v2607 = vunpack.c.h.b16 %v2525
        %v2608 = vunpack.c.l.b16 %v2526
        %v2609 = vunpack.c.h.b16 %v2526
        %v2610 = vunpack.c.l.b16 %v2527
        %v2611 = vunpack.c.h.b16 %v2527
        %v2612 = vunpack.c.l.b16 %v2528
        %v2613 = vunpack.c.h.b16 %v2528
        %v2614 = vunpack.c.l.b16 %v2529
        %v2615 = vunpack.c.h.b16 %v2529
        %v2616 = vunpack.c.l.b16 %v2530
        %v2617 = vunpack.c.h.b16 %v2530
        %v2618 = vunpack.c.l.b16 %v2531
        %v2619 = vunpack.c.h.b16 %v2531
        %v2620 = vunpack.c.l.b16 %v2532
        %v2621 = vunpack.c.h.b16 %v2532
        %v2622 = vunpack.c.l.b16 %v2533
        %v2623 = vunpack.c.h.b16 %v2533
        %v2624 = vunpack.c.l.b16 %v2534
        %v2625 = vunpack.c.h.b16 %v2534
        %v2626 = vunpack.c.l.b16 %v2535
        %v2627 = vunpack.c.h.b16 %v2535
        %v2628 = vunpack.c.l.b16 %v2536
        %v2629 = vunpack.c.h.b16 %v2536
        %v2630 = vunpack.c.l.b16 %v2537
        %v2631 = vunpack.c.h.b16 %v2537
        %v2632 = vunpack.c.l.b16 %v2538
        %v2633 = vunpack.c.h.b16 %v2538
        %v2634 = vunpack.c.l.b16 %v2539
        %v2635 = vunpack.c.h.b16 %v2539
        %v2636 = vunpack.c.l.b16 %v2540
        %v2637 = vunpack.c.h.b16 %v2540
        %v2638 = vunpack.c.l.b16 %v2541
        %v2639 = vunpack.c.h.b16 %v2541
        %v2640 = vunpack.c.l.b16 %v2542
        %v2641 = vunpack.c.h.b16 %v2542
        %v2642 = vunpack.c.l.b16 %v2543
        %v2643 = vunpack.c.h.b16 %v2543
        %v2644 = vunpack.c.l.b16 %v2544
        %v2645 = vunpack.c.h.b16 %v2544
        %v2646 = vunpack.c.l.b16 %v2545
        %v2647 = vunpack.c.h.b16 %v2545
        %v2648 = vunpack.c.l.b16 %v2546
        %v2649 = vunpack.c.h.b16 %v2546
        %v2650 = vunpack.c.l.b16 %v2547
        %v2651 = vunpack.c.h.b16 %v2547
        %v2652 = vunpack.c.l.b16 %v2548
        %v2653 = vunpack.c.h.b16 %v2548
        %v2654 = vunpack.c.l.b16 %v2549
        %v2655 = vunpack.c.h.b16 %v2549
        %v2656 = vunpack.c.l.b16 %v2550
        %v2657 = vunpack.c.h.b16 %v2550
        %v2658 = vunpack.c.l.b16 %v2551
        %v2659 = vunpack.c.h.b16 %v2551
        %v2660 = vpack.c.b16 %v2598, %v2596
        %v2661 = vpack.c.b16 %v2599, %v2597
        %v2662 = vpack.c.b16 %v2602, %v2600
        %v2663 = vpack.c.b16 %v2603, %v2601
        %v2664 = vpack.c.b16 %v2606, %v2604
        %v2665 = vpack.c.b16 %v2607, %v2605
        %v2666 = vpack.c.b16 %v2610, %v2608
        %v2667 = vpack.c.b16 %v2611, %v2609
        %v2668 = vpack.c.b16 %v2614, %v2612
        %v2669 = vpack.c.b16 %v2615, %v2613
        %v2670 = vpack.c.b16 %v2618, %v2616
        %v2671 = vpack.c.b16 %v2619, %v2617
        %v2672 = vpack.c.b16 %v2622, %v2620
        %v2673 = vpack.c.b16 %v2623, %v2621
        %v2674 = vpack.c.b16 %v2626, %v2624
        %v2675 = vpack.c.b16 %v2627, %v2625
        %v2676 = vpack.c.b16 %v2630, %v2628
        %v2677 = vpack.c.b16 %v2631, %v2629
        %v2678 = vpack.c.b16 %v2634, %v2632
        %v2679 = vpack.c.b16 %v2635, %v2633
        %v2680 = vpack.c.b16 %v2638, %v2636
        %v2681 = vpack.c.b16 %v2639, %v2637
        %v2682 = vpack.c.b16 %v2642, %v2640
        %v2683 = vpack.c.b16 %v2643, %v2641
        %v2684 = vpack.c.b16 %v2646, %v2644
        %v2685 = vpack.c.b16 %v2647, %v2645
        %v2686 = vpack.c.b16 %v2650, %v2648
        %v2687 = vpack.c.b16 %v2651, %v2649
        %v2688 = vpack.c.b16 %v2654, %v2652
        %v2689 = vpack.c.b16 %v2655, %v2653
        %v2690 = vpack.c.b16 %v2658, %v2656
        %v2691 = vpack.c.b16 %v2659, %v2657
        %2724 = vmatprep.subr.bf16.mxu0 %v2675
        %2725 = vmatpush1.bf16.msra.mxu0 %v2674
        %2726 = vmatprep.subr.bf16.mxu0 %v2673
        %2727 = vmatpush1.bf16.msra.mxu0 %v2672
        %2728 = vmatprep.subr.bf16.mxu0 %v2671
        %2729 = vmatpush1.bf16.msra.mxu0 %v2670
        %2730 = vmatprep.subr.bf16.mxu0 %v2669
        %2731 = vmatpush1.bf16.msra.mxu0 %v2668
        %2732 = vmatprep.subr.bf16.mxu0 %v2667
        %2733 = vmatpush1.bf16.msra.mxu0 %v2666
        %2734 = vmatprep.subr.bf16.mxu0 %v2665
        %2735 = vmatpush1.bf16.msra.mxu0 %v2664
        %2736 = vmatprep.subr.bf16.mxu0 %v2663
        %2737 = vmatpush1.bf16.msra.mxu0 %v2662
        %2738 = vmatprep.subr.bf16.mxu0 %v2661
        %2739 = vmatpush1.bf16.msra.mxu0 %v2660
        %2740 = vmatprep.subr.bf16.mxu0 %v2691
        %2741 = vmatpush2.bf16.msra.mxu0 %v2690
        %2742 = vmatprep.subr.bf16.mxu0 %v2689
        %2743 = vmatpush2.bf16.msra.mxu0 %v2688
        %2744 = vmatprep.subr.bf16.mxu0 %v2687
        %2745 = vmatpush2.bf16.msra.mxu0 %v2686
        %2746 = vmatprep.subr.bf16.mxu0 %v2685
        %2747 = vmatpush2.bf16.msra.mxu0 %v2684
        %2748 = vmatprep.subr.bf16.mxu0 %v2683
        %2749 = vmatpush2.bf16.msra.mxu0 %v2682
        %2750 = vmatprep.subr.bf16.mxu0 %v2681
        %2751 = vmatpush2.bf16.msra.mxu0 %v2680
        %2752 = vmatprep.subr.bf16.mxu0 %v2679
        %2753 = vmatpush2.bf16.msra.mxu0 %v2678
        %2754 = vmatprep.subr.bf16.mxu0 %v2677
        %2755 = vmatpush2.bf16.msra.mxu0 %v2676
        %2756 = vmatprep.mubr.bf16.mxu0 %v2519
        %2757 = vmatmul.mubr.bf16.gmra.mxu0 %v2518
        %v2758 = vpop.f32.mrf.mxu0
        %v2759 = vadd.f32 %v2557, %v2758
        %v2760 = vpop.f32.mrf.mxu0
        %v2761 = vadd.f32 %v2561, %v2760
        %v2762 = vpop.f32.mrf.mxu0
        %v2763 = vpop.f32.mrf.mxu0
        %2764 = vdwg.mxu0
        %v2765 = vrot.slane %v2759, 4
        %v2766 = vadd.f32 %v2759, %v2765
        %v2767 = vrot.slane %v2766, 2
        %v2768 = vadd.f32 %v2766, %v2767
        %v2769 = vrot.slane %v2768, 1
        %v2770 = vadd.f32 %v2768, %v2769
        %v2771 = vrot.slane %v2761, 4
        %v2772 = vadd.f32 %v2761, %v2771
        %v2773 = vrot.slane %v2772, 2
        %v2774 = vadd.f32 %v2772, %v2773
        %v2775 = vrot.slane %v2774, 1
        %v2776 = vadd.f32 %v2774, %v2775
        %v2777 = vmul.f32 %v2759, %v2759
        %v2778 = vmul.f32 %v2761, %v2761
        %v2779 = vrot.slane %v2777, 4
        %v2780 = vadd.f32 %v2777, %v2779
        %v2781 = vrot.slane %v2780, 2
        %v2782 = vadd.f32 %v2780, %v2781
        %v2783 = vrot.slane %v2782, 1
        %v2784 = vadd.f32 %v2782, %v2783
        %v2785 = vrot.slane %v2778, 4
        %v2786 = vadd.f32 %v2778, %v2785
        %v2787 = vrot.slane %v2786, 2
        %v2788 = vadd.f32 %v2786, %v2787
        %v2789 = vrot.slane %v2788, 1
        %v2790 = vadd.f32 %v2788, %v2789
        %v2791 = vmul.f32 %v2770, 0.125
        %v2792 = vmul.f32 %v2776, 0.125
        %v2793 = vmul.f32 %v2784, 0.125
        %v2794 = vmul.f32 %v2790, 0.125
        %v2795 = vmul.f32 %v2791, %v2791
        %v2796 = vmul.f32 %v2792, %v2792
        %v2797 = vsub.f32 %v2793, %v2795
        %v2798 = vsub.f32 %v2794, %v2796
        %v2799 = vmax.f32 %v2797, 0.0
        %v2800 = vmax.f32 %v2798, 0.0
        %v2801 = vsub.f32 %v2759, %v2791
        %v2802 = vsub.f32 %v2761, %v2792
        %v2803 = vadd.f32 %v2799, 1e-05
        %v2804 = vadd.f32 %v2800, 1e-05
        %v2805 = vrsqrt.pop %v2803
        %v2806 = vrsqrt.pop %v2804
        %v2807 = vmul.f32 %v2801, %v2805
        %v2808 = vmul.f32 %v2802, %v2806
        %v2809 = vld [vmem:[%s15] sm:$0x3]
        %v2811 = vlaneseq
        %v2812 = vshrl.u32 %v2811, 7
        %v2813 = vsub.s32 0, %v2812
        %v2814 = vrot.slane %v2809, %v2813
        %v2815 = vlaneseq
        %v2816 = vshrl.u32 %v2815, 7
        %v2817 = vsub.s32 1, %v2816
        %v2818 = vrot.slane %v2809, %v2817
        %v2821 = vmul.f32 %v2814, %v2807
        %v2822 = vmul.f32 %v2818, %v2808
        %v2823 = vld [vmem:[%s16] sm:$0x3]
        %v2825 = vlaneseq
        %v2826 = vshrl.u32 %v2825, 7
        %v2827 = vsub.s32 0, %v2826
        %v2828 = vrot.slane %v2823, %v2827
        %v2829 = vlaneseq
        %v2830 = vshrl.u32 %v2829, 7
        %v2831 = vsub.s32 1, %v2830
        %v2832 = vrot.slane %v2823, %v2831
        %v2835 = vadd.f32 %v2821, %v2828
        %v2836 = vadd.f32 %v2822, %v2832
        %v2837 = vmax.f32 %v2835, 0.0
        %v2838 = vmax.f32 %v2836, 0.0
        %v2839 = vpack.c.bf16 %v2837, %v2837
        %v2840 = vpack.c.bf16 %v2838, %v2838
        %s2841 = scalar_lea.vmem %s13, 256
        %v2842 = vld [vmem:[%s2841] sm:$0xff]
        %v2843 = vld [vmem:[%s2841 + $0x8] sm:$0xff]
        %v2844 = vld [vmem:[%s2841 + $0x10] sm:$0xff]
        %v2845 = vld [vmem:[%s2841 + $0x18] sm:$0xff]
        %v2846 = vld [vmem:[%s2841 + $0x20] sm:$0xff]
        %v2847 = vld [vmem:[%s2841 + $0x28] sm:$0xff]
        %v2848 = vld [vmem:[%s2841 + $0x30] sm:$0xff]
        %v2849 = vld [vmem:[%s2841 + $0x38] sm:$0xff]
        %v2850 = vld [vmem:[%s2841 + $0x40] sm:$0xff]
        %v2851 = vld [vmem:[%s2841 + $0x48] sm:$0xff]
        %v2852 = vld [vmem:[%s2841 + $0x50] sm:$0xff]
        %v2853 = vld [vmem:[%s2841 + $0x58] sm:$0xff]
        %v2854 = vld [vmem:[%s2841 + $0x60] sm:$0xff]
        %v2855 = vld [vmem:[%s2841 + $0x68] sm:$0xff]
        %v2856 = vld [vmem:[%s2841 + $0x70] sm:$0xff]
        %v2857 = vld [vmem:[%s2841 + $0x78] sm:$0xff]
        %v2858 = vld [vmem:[%s2841 + $0x80] sm:$0xff]
        %v2859 = vld [vmem:[%s2841 + $0x88] sm:$0xff]
        %v2860 = vld [vmem:[%s2841 + $0x90] sm:$0xff]
        %v2861 = vld [vmem:[%s2841 + $0x98] sm:$0xff]
        %v2862 = vld [vmem:[%s2841 + $0xa0] sm:$0xff]
        %v2863 = vld [vmem:[%s2841 + $0xa8] sm:$0xff]
        %v2864 = vld [vmem:[%s2841 + $0xb0] sm:$0xff]
        %v2865 = vld [vmem:[%s2841 + $0xb8] sm:$0xff]
        %v2866 = vld [vmem:[%s2841 + $0xc0] sm:$0xff]
        %v2867 = vld [vmem:[%s2841 + $0xc8] sm:$0xff]
        %v2868 = vld [vmem:[%s2841 + $0xd0] sm:$0xff]
        %v2869 = vld [vmem:[%s2841 + $0xd8] sm:$0xff]
        %v2870 = vld [vmem:[%s2841 + $0xe0] sm:$0xff]
        %v2871 = vld [vmem:[%s2841 + $0xe8] sm:$0xff]
        %v2872 = vld [vmem:[%s2841 + $0xf0] sm:$0xff]
        %v2873 = vld [vmem:[%s2841 + $0xf8] sm:$0xff]
        %s2874 = scalar_lea.vmem %s14, 2
        %v2875 = vld [vmem:[%s2874] sm:$0x3]
        %v2877 = vlaneseq
        %v2878 = vshrl.u32 %v2877, 7
        %v2879 = vsub.s32 0, %v2878
        %v2880 = vrot.slane %v2875, %v2879
        %v2881 = vlaneseq
        %v2882 = vshrl.u32 %v2881, 7
        %v2883 = vsub.s32 1, %v2882
        %v2884 = vrot.slane %v2875, %v2883
        %v2919 = vunpack.c.l.b16 %v2842
        %v2920 = vunpack.c.h.b16 %v2842
        %v2921 = vunpack.c.l.b16 %v2843
        %v2922 = vunpack.c.h.b16 %v2843
        %v2923 = vunpack.c.l.b16 %v2844
        %v2924 = vunpack.c.h.b16 %v2844
        %v2925 = vunpack.c.l.b16 %v2845
        %v2926 = vunpack.c.h.b16 %v2845
        %v2927 = vunpack.c.l.b16 %v2846
        %v2928 = vunpack.c.h.b16 %v2846
        %v2929 = vunpack.c.l.b16 %v2847
        %v2930 = vunpack.c.h.b16 %v2847
        %v2931 = vunpack.c.l.b16 %v2848
        %v2932 = vunpack.c.h.b16 %v2848
        %v2933 = vunpack.c.l.b16 %v2849
        %v2934 = vunpack.c.h.b16 %v2849
        %v2935 = vunpack.c.l.b16 %v2850
        %v2936 = vunpack.c.h.b16 %v2850
        %v2937 = vunpack.c.l.b16 %v2851
        %v2938 = vunpack.c.h.b16 %v2851
        %v2939 = vunpack.c.l.b16 %v2852
        %v2940 = vunpack.c.h.b16 %v2852
        %v2941 = vunpack.c.l.b16 %v2853
        %v2942 = vunpack.c.h.b16 %v2853
        %v2943 = vunpack.c.l.b16 %v2854
        %v2944 = vunpack.c.h.b16 %v2854
        %v2945 = vunpack.c.l.b16 %v2855
        %v2946 = vunpack.c.h.b16 %v2855
        %v2947 = vunpack.c.l.b16 %v2856
        %v2948 = vunpack.c.h.b16 %v2856
        %v2949 = vunpack.c.l.b16 %v2857
        %v2950 = vunpack.c.h.b16 %v2857
        %v2951 = vunpack.c.l.b16 %v2858
        %v2952 = vunpack.c.h.b16 %v2858
        %v2953 = vunpack.c.l.b16 %v2859
        %v2954 = vunpack.c.h.b16 %v2859
        %v2955 = vunpack.c.l.b16 %v2860
        %v2956 = vunpack.c.h.b16 %v2860
        %v2957 = vunpack.c.l.b16 %v2861
        %v2958 = vunpack.c.h.b16 %v2861
        %v2959 = vunpack.c.l.b16 %v2862
        %v2960 = vunpack.c.h.b16 %v2862
        %v2961 = vunpack.c.l.b16 %v2863
        %v2962 = vunpack.c.h.b16 %v2863
        %v2963 = vunpack.c.l.b16 %v2864
        %v2964 = vunpack.c.h.b16 %v2864
        %v2965 = vunpack.c.l.b16 %v2865
        %v2966 = vunpack.c.h.b16 %v2865
        %v2967 = vunpack.c.l.b16 %v2866
        %v2968 = vunpack.c.h.b16 %v2866
        %v2969 = vunpack.c.l.b16 %v2867
        %v2970 = vunpack.c.h.b16 %v2867
        %v2971 = vunpack.c.l.b16 %v2868
        %v2972 = vunpack.c.h.b16 %v2868
        %v2973 = vunpack.c.l.b16 %v2869
        %v2974 = vunpack.c.h.b16 %v2869
        %v2975 = vunpack.c.l.b16 %v2870
        %v2976 = vunpack.c.h.b16 %v2870
        %v2977 = vunpack.c.l.b16 %v2871
        %v2978 = vunpack.c.h.b16 %v2871
        %v2979 = vunpack.c.l.b16 %v2872
        %v2980 = vunpack.c.h.b16 %v2872
        %v2981 = vunpack.c.l.b16 %v2873
        %v2982 = vunpack.c.h.b16 %v2873
        %v2983 = vpack.c.b16 %v2921, %v2919
        %v2984 = vpack.c.b16 %v2922, %v2920
        %v2985 = vpack.c.b16 %v2925, %v2923
        %v2986 = vpack.c.b16 %v2926, %v2924
        %v2987 = vpack.c.b16 %v2929, %v2927
        %v2988 = vpack.c.b16 %v2930, %v2928
        %v2989 = vpack.c.b16 %v2933, %v2931
        %v2990 = vpack.c.b16 %v2934, %v2932
        %v2991 = vpack.c.b16 %v2937, %v2935
        %v2992 = vpack.c.b16 %v2938, %v2936
        %v2993 = vpack.c.b16 %v2941, %v2939
        %v2994 = vpack.c.b16 %v2942, %v2940
        %v2995 = vpack.c.b16 %v2945, %v2943
        %v2996 = vpack.c.b16 %v2946, %v2944
        %v2997 = vpack.c.b16 %v2949, %v2947
        %v2998 = vpack.c.b16 %v2950, %v2948
        %v2999 = vpack.c.b16 %v2953, %v2951
        %v3000 = vpack.c.b16 %v2954, %v2952
        %v3001 = vpack.c.b16 %v2957, %v2955
        %v3002 = vpack.c.b16 %v2958, %v2956
        %v3003 = vpack.c.b16 %v2961, %v2959
        %v3004 = vpack.c.b16 %v2962, %v2960
        %v3005 = vpack.c.b16 %v2965, %v2963
        %v3006 = vpack.c.b16 %v2966, %v2964
        %v3007 = vpack.c.b16 %v2969, %v2967
        %v3008 = vpack.c.b16 %v2970, %v2968
        %v3009 = vpack.c.b16 %v2973, %v2971
        %v3010 = vpack.c.b16 %v2974, %v2972
        %v3011 = vpack.c.b16 %v2977, %v2975
        %v3012 = vpack.c.b16 %v2978, %v2976
        %v3013 = vpack.c.b16 %v2981, %v2979
        %v3014 = vpack.c.b16 %v2982, %v2980
        %3047 = vmatprep.subr.bf16.mxu0 %v2998
        %3048 = vmatpush1.bf16.msra.mxu0 %v2997
        %3049 = vmatprep.subr.bf16.mxu0 %v2996
        %3050 = vmatpush1.bf16.msra.mxu0 %v2995
        %3051 = vmatprep.subr.bf16.mxu0 %v2994
        %3052 = vmatpush1.bf16.msra.mxu0 %v2993
        %3053 = vmatprep.subr.bf16.mxu0 %v2992
        %3054 = vmatpush1.bf16.msra.mxu0 %v2991
        %3055 = vmatprep.subr.bf16.mxu0 %v2990
        %3056 = vmatpush1.bf16.msra.mxu0 %v2989
        %3057 = vmatprep.subr.bf16.mxu0 %v2988
        %3058 = vmatpush1.bf16.msra.mxu0 %v2987
        %3059 = vmatprep.subr.bf16.mxu0 %v2986
        %3060 = vmatpush1.bf16.msra.mxu0 %v2985
        %3061 = vmatprep.subr.bf16.mxu0 %v2984
        %3062 = vmatpush1.bf16.msra.mxu0 %v2983
        %3063 = vmatprep.subr.bf16.mxu0 %v3014
        %3064 = vmatpush2.bf16.msra.mxu0 %v3013
        %3065 = vmatprep.subr.bf16.mxu0 %v3012
        %3066 = vmatpush2.bf16.msra.mxu0 %v3011
        %3067 = vmatprep.subr.bf16.mxu0 %v3010
        %3068 = vmatpush2.bf16.msra.mxu0 %v3009
        %3069 = vmatprep.subr.bf16.mxu0 %v3008
        %3070 = vmatpush2.bf16.msra.mxu0 %v3007
        %3071 = vmatprep.subr.bf16.mxu0 %v3006
        %3072 = vmatpush2.bf16.msra.mxu0 %v3005
        %3073 = vmatprep.subr.bf16.mxu0 %v3004
        %3074 = vmatpush2.bf16.msra.mxu0 %v3003
        %3075 = vmatprep.subr.bf16.mxu0 %v3002
        %3076 = vmatpush2.bf16.msra.mxu0 %v3001
        %3077 = vmatprep.subr.bf16.mxu0 %v3000
        %3078 = vmatpush2.bf16.msra.mxu0 %v2999
        %3079 = vmatprep.mubr.bf16.mxu0 %v2840
        %3080 = vmatmul.mubr.bf16.gmra.mxu0 %v2839
        %v3081 = vpop.f32.mrf.mxu0
        %v3082 = vadd.f32 %v2880, %v3081
        %v3083 = vpop.f32.mrf.mxu0
        %v3084 = vadd.f32 %v2884, %v3083
        %v3085 = vpop.f32.mrf.mxu0
        %v3086 = vpop.f32.mrf.mxu0
        %3087 = vdwg.mxu0
        %v3088 = vrot.slane %v3082, 4
        %v3089 = vadd.f32 %v3082, %v3088
        %v3090 = vrot.slane %v3089, 2
        %v3091 = vadd.f32 %v3089, %v3090
        %v3092 = vrot.slane %v3091, 1
        %v3093 = vadd.f32 %v3091, %v3092
        %v3094 = vrot.slane %v3084, 4
        %v3095 = vadd.f32 %v3084, %v3094
        %v3096 = vrot.slane %v3095, 2
        %v3097 = vadd.f32 %v3095, %v3096
        %v3098 = vrot.slane %v3097, 1
        %v3099 = vadd.f32 %v3097, %v3098
        %v3100 = vmul.f32 %v3082, %v3082
        %v3101 = vmul.f32 %v3084, %v3084
        %v3102 = vrot.slane %v3100, 4
        %v3103 = vadd.f32 %v3100, %v3102
        %v3104 = vrot.slane %v3103, 2
        %v3105 = vadd.f32 %v3103, %v3104
        %v3106 = vrot.slane %v3105, 1
        %v3107 = vadd.f32 %v3105, %v3106
        %v3108 = vrot.slane %v3101, 4
        %v3109 = vadd.f32 %v3101, %v3108
        %v3110 = vrot.slane %v3109, 2
        %v3111 = vadd.f32 %v3109, %v3110
        %v3112 = vrot.slane %v3111, 1
        %v3113 = vadd.f32 %v3111, %v3112
        %v3114 = vmul.f32 %v3093, 0.125
        %v3115 = vmul.f32 %v3099, 0.125
        %v3116 = vmul.f32 %v3107, 0.125
        %v3117 = vmul.f32 %v3113, 0.125
        %v3118 = vmul.f32 %v3114, %v3114
        %v3119 = vmul.f32 %v3115, %v3115
        %v3120 = vsub.f32 %v3116, %v3118
        %v3121 = vsub.f32 %v3117, %v3119
        %v3122 = vmax.f32 %v3120, 0.0
        %v3123 = vmax.f32 %v3121, 0.0
        %v3124 = vsub.f32 %v3082, %v3114
        %v3125 = vsub.f32 %v3084, %v3115
        %v3126 = vadd.f32 %v3122, 1e-05
        %v3127 = vadd.f32 %v3123, 1e-05
        %v3128 = vrsqrt.pop %v3126
        %v3129 = vrsqrt.pop %v3127
        %v3130 = vmul.f32 %v3124, %v3128
        %v3131 = vmul.f32 %v3125, %v3129
        %s3132 = scalar_lea.vmem %s15, 2
        %v3133 = vld [vmem:[%s3132] sm:$0x3]
        %v3135 = vlaneseq
        %v3136 = vshrl.u32 %v3135, 7
        %v3137 = vsub.s32 0, %v3136
        %v3138 = vrot.slane %v3133, %v3137
        %v3139 = vlaneseq
        %v3140 = vshrl.u32 %v3139, 7
        %v3141 = vsub.s32 1, %v3140
        %v3142 = vrot.slane %v3133, %v3141
        %v3145 = vmul.f32 %v3138, %v3130
        %v3146 = vmul.f32 %v3142, %v3131
        %s3147 = scalar_lea.vmem %s16, 2
        %v3148 = vld [vmem:[%s3147] sm:$0x3]
        %v3150 = vlaneseq
        %v3151 = vshrl.u32 %v3150, 7
        %v3152 = vsub.s32 0, %v3151
        %v3153 = vrot.slane %v3148, %v3152
        %v3154 = vlaneseq
        %v3155 = vshrl.u32 %v3154, 7
        %v3156 = vsub.s32 1, %v3155
        %v3157 = vrot.slane %v3148, %v3156
        %v3160 = vadd.f32 %v3145, %v3153
        %v3161 = vadd.f32 %v3146, %v3157
        %v3162 = vmax.f32 %v3160, 0.0
        %v3163 = vmax.f32 %v3161, 0.0
        %v3164 = vld [vmem:[%s17] sm:$0x3]
        %v3165 = vunpack.c.l.bf16 %v3164
        %v3167 = vlaneseq
        %v3168 = vshrl.u32 %v3167, 7
        %v3169 = vsub.s32 0, %v3168
        %v3170 = vrot.slane %v3165, %v3169
        %v3171 = vlaneseq
        %v3172 = vshrl.u32 %v3171, 7
        %v3173 = vsub.s32 2, %v3172
        %v3174 = vrot.slane %v3165, %v3173
        %v3177 = vlaneseq
        %v3178 = vshrl.u32 %v3177, 7
        %v3179 = vsub.s32 0, %v3178
        %v3180 = vrot.slane %v3170, %v3179
        %v3181 = vlaneseq
        %v3182 = vshrl.u32 %v3181, 7
        %v3183 = vsub.s32 0, %v3182
        %v3184 = vrot.slane %v3174, %v3183
        %v3185 = vmul.f32 %v3162, %v3180
        %v3186 = vmul.f32 %v3163, %v3184
        %v3187 = vadd.f32 %v3185, %v3186
        %3188 = vadd.xlane.f32.xlu0 %v3187
        %v3189 = vpop.xlane.xlu0 %3188
        %v3190 = vld [vmem:[#allocation2] sm:$0x1]
        %v3192 = vlaneseq
        %v3193 = vshrl.u32 %v3192, 7
        %v3194 = vsub.s32 0, %v3193
        %v3195 = vrot.slane %v3190, %v3194
        %v3197 = vadd.f32 %v3189, %v3195
        %3199 = vset.pattern.permute.xlu0 0
        %3200 = vperm.xlu0 %3199, %v3197
        %v3201 = vpop.permute.xlu0 %3200
        %3203 = vst [vmem:[%s721] sm:$0xff] %v3201
        %p3204 = scmp.lt.s32.totalorder %s37, 1
        %s3205 = scalar_select %p3204, %s37, 1
        %s3206 = smul.addr %s3205, 2
        %s3207 = smul.addr %s3206, 8
        %s3208 = scalar_lea.vmem %s19, %s3207
        %p3209 = scmp.lt.s32.totalorder %s37, 1
        %s3210 = scalar_select %p3209, %s37, 1
        %s3211 = smul.addr %s3210, 8
        %s3212 = scalar_lea.vmem %s20, %s3211
        // Predicated region
        $region113: #{_forward_pallas.1} parent=95 // pred_check
          %p3213 = pneg %p464
        $region114: #{_forward_pallas.1} parent=95 // pred_check_branch
          %3215 = sbr.rel (%p3213) target = $region116
        $region115: #{_forward_pallas.1} parent=95 // pred_region
          _
        $region116: #{_forward_pallas.1} parent=95 // pred_fallthru
          _
        // Predicated region
        $region117: #{_forward_pallas.1} parent=95 // pred_check
          %p3216 = pneg %p490
        $region118: #{_forward_pallas.1} parent=95 // pred_check_branch
          %3218 = sbr.rel (%p3216) target = $region120
        $region119: #{_forward_pallas.1} parent=95 // pred_region
          _
        $region120: #{_forward_pallas.1} parent=95 // pred_fallthru
          _
      $region96: #{_forward_pallas.1} parent=5 // pred_fallthru
        _
      %p3219 = scmp.le.s32.totalorder 2, %s32
      // Predicated region
      $region121: #{_forward_pallas.1} parent=5 // pred_check
        %p3220 = pneg %p3219
      $region122: #{_forward_pallas.1} parent=5 // pred_check_branch
        %3222 = sbr.rel (%p3220) target = $region124
      $region123: #{_forward_pallas.1} parent=5 // pred_region
        %s3223 = ssub.s32 %s32, 2
        // Predicated region
        $region125: #{_forward_pallas.1} parent=123 // pred_check
          %p3224 = pneg %p470
        $region126: #{_forward_pallas.1} parent=123 // pred_check_branch
          %3226 = sbr.rel (%p3224) target = $region128
        $region127: #{_forward_pallas.1} parent=123 // pred_region
          %p3227 = scmp.lt.s32.totalorder %s38, 1
          %s3228 = scalar_select %p3227, %s38, 1
          %s3229 = smul.addr %s3228, 2
          %s3230 = smul.addr %s3229, 8
          %s3231 = scalar_lea.vmem %s19, %s3230
        $region128: #{_forward_pallas.1} parent=123 // pred_fallthru
          _
        // Predicated region
        $region129: #{_forward_pallas.1} parent=123 // pred_check
          %p3232 = pneg %p496
        $region130: #{_forward_pallas.1} parent=123 // pred_check_branch
          %3234 = sbr.rel (%p3232) target = $region132
        $region131: #{_forward_pallas.1} parent=123 // pred_region
          %p3235 = scmp.lt.s32.totalorder %s38, 1
          %s3236 = scalar_select %p3235, %s38, 1
          %s3237 = smul.addr %s3236, 8
          %s3238 = scalar_lea.vmem %s20, %s3237
        $region132: #{_forward_pallas.1} parent=123 // pred_fallthru
          _
      $region124: #{_forward_pallas.1} parent=5 // pred_fallthru
        _
    $region6: #{_forward_pallas.1} parent=1 // loop_footer
      %s36 = sadd.s32 1, %s32
    $region7: #{_forward_pallas.1} parent=1 // loop_footer_branch
      %31 = sbr.rel target = $region3
    $region8: #{_forward_pallas.1} parent=1 // loop_exit
      _
    %3239 = vsyncpa [#allocation4], 1
    %s3240 = scalar_lea.sflag [#allocation4], 1
    %3241 = vsyncpa %s3240, 1
    %3242 = vsyncpa [#allocation6], 1
    %3243 = vsyncpa [#allocation9], 1

</llo_original>
